<compile_context>
chip_gen: v5e
topology: v5e:2x2
jax: 0.10.0
libtpu: 0.0.40
codegen_flags: <defaults>
</compile_context>

<pallas_src>
import functools

import jax
import jax.numpy as jnp
from jax import lax
from jax.experimental import pallas as pl
from jax.experimental.pallas import tpu as pltpu


# ---------------------------------------------------------------------------
# Helpers
# ---------------------------------------------------------------------------
def _round_up(x, m):
    return ((x + m - 1) // m) * m


def _vmem_capacity_bytes():
    try:
        return int(pltpu.get_tpu_info().vmem_capacity_bytes)
    except Exception:
        return 64 * 1024 * 1024  # conservative fallback (v7x per-core VMEM)


def _plan_time_chunk(T, B, H, nd):
    """Pick the time chunk Tc from the chip's VMEM capacity.

    Returns (Tc, nchunks, vmem_limit_bytes_or_None).
    """
    cap = _vmem_capacity_bytes()
    budget = int(0.40 * cap)
    Hl = _round_up(H, 128)
    b16 = _round_up(B, 16)          # bf16 sublane tile
    b8 = _round_up(B, 8)            # f32 sublane tile
    # Per-time-step VMEM bytes across all directions, x2 for double buffering.
    gi_step = 3 * b16 * Hl * 2      # bf16 gi
    out_step = b8 * Hl * 4          # f32 out
    per_step = 2 * nd * (gi_step + out_step)
    # Weights (double-buffered by the pipeline even though constant), bias,
    # hidden-state scratch, plus slack.
    fixed = nd * (2 * 3 * _round_up(H, 16) * Hl * 2 + 2 * 8 * Hl * 4
                  + b8 * Hl * 4) + (1 << 20)
    tc = int(max(1, min(64, T, (budget - fixed) // max(per_step, 1))))
    nchunks = -(-T // tc)
    need = fixed + per_step * tc
    limit = None
    if need > 12 * 1024 * 1024:
        limit = int(min(0.9 * cap, max(2 * need, 32 * 1024 * 1024)))
    return tc, nchunks, limit


# ---------------------------------------------------------------------------
# Pallas kernel factory: one layer, all directions interleaved, one time chunk
# per grid step.  Ref layout (positional):
#   per direction d: gi_d (Tc,3,B,H) bf16, whh_d (3,H,H) bf16, bhn_d (1,H) f32
#   per direction d: out_d (Tc,B,H) f32
#   scratch: h_scr (nd,B,H) f32 -- hidden state carried across time chunks
# grid = (num_time_chunks,)  ["arbitrary": the recurrence is sequential]
# ---------------------------------------------------------------------------
def _make_gru_kernel(nd, Tc, full_unroll, loop_unroll=4):
    def kernel(*refs):
        gi_refs = [refs[3 * d + 0] for d in range(nd)]
        whh_refs = [refs[3 * d + 1] for d in range(nd)]
        bhn_refs = [refs[3 * d + 2] for d in range(nd)]
        out_refs = [refs[3 * nd + d] for d in range(nd)]
        h_scr = refs[4 * nd]

        # h_0 = 0 (PyTorch default when no initial hidden state is given).
        @pl.when(pl.program_id(0) == 0)
        def _init():
            h_scr[...] = jnp.zeros_like(h_scr)

        # Hoist weight / bias loads out of the time loop.
        w = [[whh_refs[d][g] for g in range(3)] for d in range(nd)]
        bn = [bhn_refs[d][...] for d in range(nd)]

        # Register-carried hidden state: one scratch read per chunk here,
        # one scratch write at the end of the chunk.
        h = [h_scr[d] for d in range(nd)]

        def step(t, h_list):
            new_h = []
            for d in range(nd):
                # Forward walks the chunk front-to-back; backward walks it
                # back-to-front (its chunks are also visited in reverse via the
                # BlockSpec index_map) -- no explicit sequence reversal.
                tt = t if d == 0 else Tc - 1 - t
                h_prev = h_list[d]
                hb = h_prev.astype(jnp.bfloat16)
                gh_r = jnp.dot(hb, w[d][0], preferred_element_type=jnp.float32)
                gh_z = jnp.dot(hb, w[d][1], preferred_element_type=jnp.float32)
                gh_n = jnp.dot(hb, w[d][2], preferred_element_type=jnp.float32)
                gi_t = gi_refs[d][tt]                      # (3, B, H) bf16
                r = jax.nn.sigmoid(gi_t[0].astype(jnp.float32) + gh_r)
                z = jax.nn.sigmoid(gi_t[1].astype(jnp.float32) + gh_z)
                n = jnp.tanh(gi_t[2].astype(jnp.float32) + r * (gh_n + bn[d]))
                h_new = n + z * (h_prev - n)               # == (1-z)*n + z*h
                out_refs[d][tt] = h_new
                new_h.append(h_new)
            return new_h

        if full_unroll:
            # Small per-step working set: full unroll gives the LLO scheduler
            # visibility to interleave MXU / EUP / stores across steps.
            for t in range(Tc):
                h = step(t, h)
        else:
            # Large per-step working set: partial unroll bounds vreg pressure.
            h = list(lax.fori_loop(
                0, Tc, lambda t, hs: tuple(step(t, list(hs))), tuple(h),
                unroll=loop_unroll))

        for d in range(nd):
            h_scr[d] = h[d]

    return kernel


# ---------------------------------------------------------------------------
# One GRU layer: all directions fused into a single pallas_call.
# ---------------------------------------------------------------------------
def run_gru_layer(x_btd, layer_params, hidden_size):
    """x_btd: (B, T, Din) batch-first.  Returns (B, T, H * num_directions)."""
    B, T, _ = x_btd.shape
    H = hidden_size
    nd = len(layer_params)

    Tc, nchunks, vmem_limit = _plan_time_chunk(T, B, H, nd)
    Tp = Tc * nchunks
    pad = Tp - T

    x_tbd = jnp.transpose(x_btd, (1, 0, 2)).astype(jnp.float32)     # (T, B, Din)
    xb = x_tbd.astype(jnp.bfloat16)

    inputs, in_specs = [], []
    for d, (wih, whh, bih, bhh) in enumerate(layer_params):
        # Hoisted input projection for the whole sequence: one big MXU matmul
        # in the wrapper (bf16 feed, f32 accumulate).  Fold b_hr/b_hz here.
        bias = bih + jnp.concatenate([bhh[:2 * H], jnp.zeros((H,), jnp.float32)])
        gi = jnp.einsum('tbd,hd->tbh', xb, wih.astype(jnp.bfloat16),
                        preferred_element_type=jnp.float32) + bias   # (T,B,3H)
        gi = gi.reshape(T, B, 3, H).transpose(0, 2, 1, 3)            # (T,3,B,H)
        gi = gi.astype(jnp.bfloat16)
        # Forward pads the time axis at the end, backward at the front, so
        # padded steps are always processed AFTER every real step.
        tpad = (0, pad) if d == 0 else (pad, 0)
        gi = jnp.pad(gi, (tpad, (0, 0), (0, 0), (0, 0)))             # (Tp,3,B,H)

        whh3 = jnp.stack([whh[g * H:(g + 1) * H, :].T for g in range(3)])
        bhn = bhh[2 * H:].reshape(1, H)

        if d == 0:
            gi_map = lambda c: (c, 0, 0, 0)
        else:
            gi_map = lambda c: (nchunks - 1 - c, 0, 0, 0)

        inputs += [gi, whh3.astype(jnp.bfloat16), bhn]
        in_specs += [
            pl.BlockSpec((Tc, 3, B, H), gi_map),
            pl.BlockSpec((3, H, H), lambda c: (0, 0, 0)),
            pl.BlockSpec((1, H), lambda c: (0, 0)),
        ]

    out_shapes, out_specs = [], []
    for d in range(nd):
        out_shapes.append(jax.ShapeDtypeStruct((Tp, B, H), jnp.float32))
        if d == 0:
            out_specs.append(pl.BlockSpec((Tc, B, H), lambda c: (c, 0, 0)))
        else:
            out_specs.append(
                pl.BlockSpec((Tc, B, H), lambda c: (nchunks - 1 - c, 0, 0)))

    # Full unroll only when the carried hidden state is a handful of vregs.
    full_unroll = (_round_up(B, 8) * _round_up(H, 128) * 4 * nd) <= 8 * 4096
    kernel = _make_gru_kernel(nd, Tc, full_unroll)

    cp_kwargs = dict(dimension_semantics=("arbitrary",))
    if vmem_limit is not None:
        cp_kwargs["vmem_limit_bytes"] = vmem_limit

    # TODO(synk): on v7x (2 TensorCores) the batch could additionally be split
    # across cores via a CORE_PARALLEL grid axis; not needed at these shapes.
    outs = pl.pallas_call(
        kernel,
        out_shape=tuple(out_shapes),
        grid_spec=pltpu.PrefetchScalarGridSpec(
            num_scalar_prefetch=0,
            grid=(nchunks,),
            in_specs=in_specs,
            out_specs=out_specs,
            scratch_shapes=[pltpu.VMEM((nd, B, H), jnp.float32)],
        ),
        compiler_params=pltpu.CompilerParams(**cp_kwargs),
    )(*inputs)
    if not isinstance(outs, (tuple, list)):
        outs = (outs,)

    dir_outs = []
    for d in range(nd):
        o = outs[d][:T] if d == 0 else outs[d][pad:pad + T]   # strip time pad
        dir_outs.append(jnp.transpose(o, (1, 0, 2)))          # (B, T, H)
    return jnp.concatenate(dir_outs, axis=-1)


# ---------------------------------------------------------------------------
# Full GRU_PT.forward: stacked layers x directions, returns the output
# sequence (result[0] in PyTorch), shape (B, T, hidden_size * num_dir).
# ---------------------------------------------------------------------------
def gru_pt_forward(x, params, hidden_size, bidirectional=None):
    # TODO(synk): inter-layer dropout (active only in training mode) is not
    # applied; this config uses dropout=0.0 so semantics match exactly.
    del bidirectional  # implied by the params structure
    layer_in = x
    for layer_params in params:
        layer_in = run_gru_layer(layer_in, layer_params, hidden_size)
    return layer_in


# ---------------------------------------------------------------------------
# Deterministic parameter init (same shapes / uniform(-1/sqrt(H), 1/sqrt(H))
# scheme as torch.nn.GRU).
# ---------------------------------------------------------------------------
def init_gru_params(key, input_size, hidden_size, num_layers, bidirectional):
    num_dir = 2 if bidirectional else 1
    bound = 1.0 / jnp.sqrt(jnp.float32(hidden_size))
    params = []
    for layer in range(num_layers):
        layer_in = input_size if layer == 0 else hidden_size * num_dir
        dirs = []
        for _ in range(num_dir):
            key, k1, k2, k3, k4 = jax.random.split(key, 5)
            wih = jax.random.uniform(k1, (3 * hidden_size, layer_in),
                                     minval=-bound, maxval=bound, dtype=jnp.float32)
            whh = jax.random.uniform(k2, (3 * hidden_size, hidden_size),
                                     minval=-bound, maxval=bound, dtype=jnp.float32)
            bih = jax.random.uniform(k3, (3 * hidden_size,),
                                     minval=-bound, maxval=bound, dtype=jnp.float32)
            bhh = jax.random.uniform(k4, (3 * hidden_size,),
                                     minval=-bound, maxval=bound, dtype=jnp.float32)
            dirs.append((wih, whh, bih, bhh))
        params.append(dirs)
    return params


# ---------------------------------------------------------------------------
# Pure-JAX references.
#   _gru_layer_ref_f32 : plain torch equations, all f32 (loose check).
#   _gru_layer_ref_bf16: mirrors the kernel's bf16-matmul / f32-accumulate
#                        numerics (tight check; differs only by sum order).
# ---------------------------------------------------------------------------
def _gru_layer_ref_f32(x_tbd, wih, whh, bih, bhh, H):
    B = x_tbd.shape[1]
    h0 = jnp.zeros((B, H), jnp.float32)

    def step(h, x_t):
        gi = x_t @ wih.T + bih
        gh = h @ whh.T + bhh
        r = jax.nn.sigmoid(gi[:, :H] + gh[:, :H])
        z = jax.nn.sigmoid(gi[:, H:2 * H] + gh[:, H:2 * H])
        n = jnp.tanh(gi[:, 2 * H:] + r * gh[:, 2 * H:])
        h_new = (1.0 - z) * n + z * h
        return h_new, h_new

    _, out = lax.scan(step, h0, x_tbd)
    return out


def _gru_layer_ref_bf16(x_tbd, wih, whh, bih, bhh, H):
    B = x_tbd.shape[1]
    bias = bih + jnp.concatenate([bhh[:2 * H], jnp.zeros((H,), jnp.float32)])
    gi_seq = (jnp.einsum('tbd,hd->tbh', x_tbd.astype(jnp.bfloat16),
                         wih.astype(jnp.bfloat16),
                         preferred_element_type=jnp.float32)
              + bias).astype(jnp.bfloat16)
    w = [whh[g * H:(g + 1) * H, :].T.astype(jnp.bfloat16) for g in range(3)]
    bhn = bhh[2 * H:]
    h0 = jnp.zeros((B, H), jnp.float32)

    def step(h, gi_t):
        hb = h.astype(jnp.bfloat16)
        gh = [jnp.dot(hb, w[g], preferred_element_type=jnp.float32)
              for g in range(3)]
        gi_f = gi_t.astype(jnp.float32)
        r = jax.nn.sigmoid(gi_f[:, :H] + gh[0])
        z = jax.nn.sigmoid(gi_f[:, H:2 * H] + gh[1])
        n = jnp.tanh(gi_f[:, 2 * H:] + r * (gh[2] + bhn))
        h_new = n + z * (h - n)
        return h_new, h_new

    _, out = lax.scan(step, h0, gi_seq)
    return out


def _gru_forward_ref(x, params, H, layer_fn):
    layer_in = x
    for dirs in params:
        dir_outs = []
        for d, (wih, whh, bih, bhh) in enumerate(dirs):
            xt = jnp.transpose(layer_in, (1, 0, 2)).astype(jnp.float32)
            if d == 1:
                xt = xt[::-1]
            out = layer_fn(xt, wih, whh, bih, bhh, H)
            if d == 1:
                out = out[::-1]
            dir_outs.append(jnp.transpose(out, (1, 0, 2)))
        layer_in = jnp.concatenate(dir_outs, axis=-1)
    return layer_in


if __name__ == "__main__":
    # Module config (dropout=0.0 so forward is deterministic).
    input_size = 16
    hidden_size = 32
    num_layers = 2
    dropout = 0.0
    bidirectional = True

    B, T = 2, 8

    key = jax.random.PRNGKey(0)
    key, xkey = jax.random.split(key)
    x = jax.random.normal(xkey, (B, T, input_size), dtype=jnp.float32)

    params = init_gru_params(key, input_size, hidden_size, num_layers,
                             bidirectional)

    fwd = functools.partial(gru_pt_forward, params=params,
                            hidden_size=hidden_size,
                            bidirectional=bidirectional)
    out = jax.block_until_ready(jax.jit(fwd)(x))

    num_dir = 2 if bidirectional else 1
    assert out.shape == (B, T, hidden_size * num_dir), out.shape
    assert bool(jnp.all(jnp.isfinite(out)))

    # Tight check vs a reference that mirrors the kernel's bf16 matmul
    # numerics (remaining difference = summation order only).
    ref_bf16 = _gru_forward_ref(x, params, hidden_size, _gru_layer_ref_bf16)
    err_matched = float(jnp.max(jnp.abs(out - ref_bf16)))
    assert err_matched < 1e-2, err_matched

    # Loose check vs the full-f32 reference (bf16 MXU feed is the only source
    # of divergence).
    ref_f32 = _gru_forward_ref(x, params, hidden_size, _gru_layer_ref_f32)
    err_f32 = float(jnp.max(jnp.abs(out - ref_f32)))
    assert err_f32 < 5e-2, err_f32

    print("KERNEL_OK")
</pallas_src>

<mosaic_0001>
module attributes {stable_mosaic.version = 11 : i64} {
  func.func @kernel(%arg0: i32, %arg1: memref<8x3x2x32xbf16, #tpu.memory_space<vmem>>, %arg2: memref<3x32x32xbf16, #tpu.memory_space<vmem>>, %arg3: memref<1x32xf32, #tpu.memory_space<vmem>>, %arg4: memref<8x3x2x32xbf16, #tpu.memory_space<vmem>>, %arg5: memref<3x32x32xbf16, #tpu.memory_space<vmem>>, %arg6: memref<1x32xf32, #tpu.memory_space<vmem>>, %arg7: memref<8x2x32xf32, #tpu.memory_space<vmem>>, %arg8: memref<8x2x32xf32, #tpu.memory_space<vmem>>, %arg9: memref<2x2x32xf32, #tpu.memory_space<vmem>>) attributes {dimension_semantics = [#tpu.dimension_semantics<arbitrary>], iteration_bounds = array<i64: 1>, scalar_prefetch = 0 : i64, scratch_operands = 1 : i64, tpu.core_type = #tpu.core_type<tc>, window_params = [{transform_indices = @transform_0, window_bounds = array<i64: 8, 3, 2, 32>}, {pipeline_mode = #tpu.pipeline_mode<synchronous>, transform_indices = @transform_1, window_bounds = array<i64: 3, 32, 32>}, {pipeline_mode = #tpu.pipeline_mode<synchronous>, transform_indices = @transform_2, window_bounds = array<i64: 1, 32>}, {transform_indices = @transform_3, window_bounds = array<i64: 8, 3, 2, 32>}, {pipeline_mode = #tpu.pipeline_mode<synchronous>, transform_indices = @transform_4, window_bounds = array<i64: 3, 32, 32>}, {pipeline_mode = #tpu.pipeline_mode<synchronous>, transform_indices = @transform_5, window_bounds = array<i64: 1, 32>}, {transform_indices = @transform_6, window_bounds = array<i64: 8, 2, 32>}, {transform_indices = @transform_7, window_bounds = array<i64: 8, 2, 32>}]} {
    %c0_i32 = arith.constant 0 : i32
    %0 = arith.cmpi eq, %arg0, %c0_i32 : i32
    %1 = arith.extui %0 : i1 to i32
    %c0_i32_0 = arith.constant 0 : i32
    %2 = arith.cmpi ne, %1, %c0_i32_0 : i32
    scf.if %2 {
      %cst_218 = arith.constant 0.000000e+00 : f32
      %635 = vector.broadcast %cst_218 : f32 to vector<2x2x32xf32>
      %c0_219 = arith.constant 0 : index
      %c0_220 = arith.constant 0 : index
      %c0_221 = arith.constant 0 : index
      %636 = vector.load %arg9[%c0_219, %c0_220, %c0_221] : memref<2x2x32xf32, #tpu.memory_space<vmem>>, vector<2x2x32xf32>
      tpu.vector_store %arg9[%c0_219, %c0_220, %c0_221], %635 {strides = array<i32>} : memref<2x2x32xf32, #tpu.memory_space<vmem>>, vector<2x2x32xf32>,
    } else {
    }
    %c0 = arith.constant 0 : index
    %c0_1 = arith.constant 0 : index
    %c0_2 = arith.constant 0 : index
    %3 = vector.load %arg2[%c0, %c0_1, %c0_2] : memref<3x32x32xbf16, #tpu.memory_space<vmem>>, vector<1x32x32xbf16>
    %4 = vector.shape_cast %3 : vector<1x32x32xbf16> to vector<32x32xbf16>
    %c1 = arith.constant 1 : index
    %c0_3 = arith.constant 0 : index
    %c0_4 = arith.constant 0 : index
    %5 = vector.load %arg2[%c1, %c0_3, %c0_4] : memref<3x32x32xbf16, #tpu.memory_space<vmem>>, vector<1x32x32xbf16>
    %6 = vector.shape_cast %5 : vector<1x32x32xbf16> to vector<32x32xbf16>
    %c2 = arith.constant 2 : index
    %c0_5 = arith.constant 0 : index
    %c0_6 = arith.constant 0 : index
    %7 = vector.load %arg2[%c2, %c0_5, %c0_6] : memref<3x32x32xbf16, #tpu.memory_space<vmem>>, vector<1x32x32xbf16>
    %8 = vector.shape_cast %7 : vector<1x32x32xbf16> to vector<32x32xbf16>
    %c0_7 = arith.constant 0 : index
    %c0_8 = arith.constant 0 : index
    %c0_9 = arith.constant 0 : index
    %9 = vector.load %arg5[%c0_7, %c0_8, %c0_9] : memref<3x32x32xbf16, #tpu.memory_space<vmem>>, vector<1x32x32xbf16>
    %10 = vector.shape_cast %9 : vector<1x32x32xbf16> to vector<32x32xbf16>
    %c1_10 = arith.constant 1 : index
    %c0_11 = arith.constant 0 : index
    %c0_12 = arith.constant 0 : index
    %11 = vector.load %arg5[%c1_10, %c0_11, %c0_12] : memref<3x32x32xbf16, #tpu.memory_space<vmem>>, vector<1x32x32xbf16>
    %12 = vector.shape_cast %11 : vector<1x32x32xbf16> to vector<32x32xbf16>
    %c2_13 = arith.constant 2 : index
    %c0_14 = arith.constant 0 : index
    %c0_15 = arith.constant 0 : index
    %13 = vector.load %arg5[%c2_13, %c0_14, %c0_15] : memref<3x32x32xbf16, #tpu.memory_space<vmem>>, vector<1x32x32xbf16>
    %14 = vector.shape_cast %13 : vector<1x32x32xbf16> to vector<32x32xbf16>
    %c0_16 = arith.constant 0 : index
    %c0_17 = arith.constant 0 : index
    %15 = vector.load %arg3[%c0_16, %c0_17] : memref<1x32xf32, #tpu.memory_space<vmem>>, vector<1x32xf32>
    %c0_18 = arith.constant 0 : index
    %c0_19 = arith.constant 0 : index
    %16 = vector.load %arg6[%c0_18, %c0_19] : memref<1x32xf32, #tpu.memory_space<vmem>>, vector<1x32xf32>
    %c0_20 = arith.constant 0 : index
    %c0_21 = arith.constant 0 : index
    %c0_22 = arith.constant 0 : index
    %17 = vector.load %arg9[%c0_20, %c0_21, %c0_22] : memref<2x2x32xf32, #tpu.memory_space<vmem>>, vector<1x2x32xf32>
    %18 = vector.shape_cast %17 : vector<1x2x32xf32> to vector<2x32xf32>
    %c1_23 = arith.constant 1 : index
    %c0_24 = arith.constant 0 : index
    %c0_25 = arith.constant 0 : index
    %19 = vector.load %arg9[%c1_23, %c0_24, %c0_25] : memref<2x2x32xf32, #tpu.memory_space<vmem>>, vector<1x2x32xf32>
    %20 = vector.shape_cast %19 : vector<1x2x32xf32> to vector<2x32xf32>
    %21 = arith.truncf %18 : vector<2x32xf32> to vector<2x32xbf16>
    %cst = arith.constant dense<0.000000e+00> : vector<2x32xf32>
    %22 = tpu.matmul %21, %4, %cst {dimension_numbers = #tpu.dot_dimension_numbers<[1], [0], [0], [1], [0, 0, 1, 1], [], []>} : vector<2x32xbf16>, vector<32x32xbf16>, vector<2x32xf32> -> vector<2x32xf32>
    %cst_26 = arith.constant dense<0.000000e+00> : vector<2x32xf32>
    %23 = tpu.matmul %21, %6, %cst_26 {dimension_numbers = #tpu.dot_dimension_numbers<[1], [0], [0], [1], [0, 0, 1, 1], [], []>} : vector<2x32xbf16>, vector<32x32xbf16>, vector<2x32xf32> -> vector<2x32xf32>
    %cst_27 = arith.constant dense<0.000000e+00> : vector<2x32xf32>
    %24 = tpu.matmul %21, %8, %cst_27 {dimension_numbers = #tpu.dot_dimension_numbers<[1], [0], [0], [1], [0, 0, 1, 1], [], []>} : vector<2x32xbf16>, vector<32x32xbf16>, vector<2x32xf32> -> vector<2x32xf32>
    %c0_28 = arith.constant 0 : index
    %c0_29 = arith.constant 0 : index
    %c0_30 = arith.constant 0 : index
    %c0_31 = arith.constant 0 : index
    %25 = vector.load %arg1[%c0_28, %c0_29, %c0_30, %c0_31] : memref<8x3x2x32xbf16, #tpu.memory_space<vmem>>, vector<1x3x2x32xbf16>
    %26 = vector.shape_cast %25 : vector<1x3x2x32xbf16> to vector<3x2x32xbf16>
    %27 = vector.extract_strided_slice %26 {offsets = [0, 0, 0], sizes = [1, 2, 32], strides = [1, 1, 1]} : vector<3x2x32xbf16> to vector<1x2x32xbf16>
    %28 = vector.shape_cast %27 : vector<1x2x32xbf16> to vector<2x32xbf16>
    %29 = arith.extf %28 : vector<2x32xbf16> to vector<2x32xf32>
    %30 = arith.addf %29, %22 : vector<2x32xf32>
    %31 = arith.negf %30 : vector<2x32xf32>
    %32 = math.exp %31 : vector<2x32xf32>
    %cst_32 = arith.constant 1.000000e+00 : f32
    %33 = vector.broadcast %cst_32 : f32 to vector<2x32xf32>
    %34 = arith.addf %33, %32 : vector<2x32xf32>
    %35 = arith.divf %33, %34 : vector<2x32xf32>
    %36 = vector.extract_strided_slice %26 {offsets = [1, 0, 0], sizes = [1, 2, 32], strides = [1, 1, 1]} : vector<3x2x32xbf16> to vector<1x2x32xbf16>
    %37 = vector.shape_cast %36 : vector<1x2x32xbf16> to vector<2x32xbf16>
    %38 = arith.extf %37 : vector<2x32xbf16> to vector<2x32xf32>
    %39 = arith.addf %38, %23 : vector<2x32xf32>
    %40 = arith.negf %39 : vector<2x32xf32>
    %41 = math.exp %40 : vector<2x32xf32>
    %cst_33 = arith.constant 1.000000e+00 : f32
    %42 = vector.broadcast %cst_33 : f32 to vector<2x32xf32>
    %43 = arith.addf %42, %41 : vector<2x32xf32>
    %44 = arith.divf %42, %43 : vector<2x32xf32>
    %45 = vector.extract_strided_slice %26 {offsets = [2, 0, 0], sizes = [1, 2, 32], strides = [1, 1, 1]} : vector<3x2x32xbf16> to vector<1x2x32xbf16>
    %46 = vector.shape_cast %45 : vector<1x2x32xbf16> to vector<2x32xbf16>
    %47 = arith.extf %46 : vector<2x32xbf16> to vector<2x32xf32>
    %48 = vector.broadcast %15 : vector<1x32xf32> to vector<2x32xf32>
    %49 = arith.addf %24, %48 : vector<2x32xf32>
    %50 = arith.mulf %35, %49 : vector<2x32xf32>
    %51 = arith.addf %47, %50 : vector<2x32xf32>
    %52 = math.tanh %51 : vector<2x32xf32>
    %53 = arith.subf %18, %52 : vector<2x32xf32>
    %54 = arith.mulf %44, %53 : vector<2x32xf32>
    %55 = arith.addf %52, %54 : vector<2x32xf32>
    %c0_34 = arith.constant 0 : index
    %c0_35 = arith.constant 0 : index
    %c0_36 = arith.constant 0 : index
    %56 = vector.load %arg7[%c0_34, %c0_35, %c0_36] : memref<8x2x32xf32, #tpu.memory_space<vmem>>, vector<1x2x32xf32>
    %57 = vector.shape_cast %56 : vector<1x2x32xf32> to vector<2x32xf32>
    %58 = vector.shape_cast %55 : vector<2x32xf32> to vector<1x2x32xf32>
    tpu.vector_store %arg7[%c0_34, %c0_35, %c0_36], %58 {strides = array<i32>} : memref<8x2x32xf32, #tpu.memory_space<vmem>>, vector<1x2x32xf32>,
    %59 = arith.truncf %20 : vector<2x32xf32> to vector<2x32xbf16>
    %cst_37 = arith.constant dense<0.000000e+00> : vector<2x32xf32>
    %60 = tpu.matmul %59, %10, %cst_37 {dimension_numbers = #tpu.dot_dimension_numbers<[1], [0], [0], [1], [0, 0, 1, 1], [], []>} : vector<2x32xbf16>, vector<32x32xbf16>, vector<2x32xf32> -> vector<2x32xf32>
    %cst_38 = arith.constant dense<0.000000e+00> : vector<2x32xf32>
    %61 = tpu.matmul %59, %12, %cst_38 {dimension_numbers = #tpu.dot_dimension_numbers<[1], [0], [0], [1], [0, 0, 1, 1], [], []>} : vector<2x32xbf16>, vector<32x32xbf16>, vector<2x32xf32> -> vector<2x32xf32>
    %cst_39 = arith.constant dense<0.000000e+00> : vector<2x32xf32>
    %62 = tpu.matmul %59, %14, %cst_39 {dimension_numbers = #tpu.dot_dimension_numbers<[1], [0], [0], [1], [0, 0, 1, 1], [], []>} : vector<2x32xbf16>, vector<32x32xbf16>, vector<2x32xf32> -> vector<2x32xf32>
    %c7 = arith.constant 7 : index
    %c0_40 = arith.constant 0 : index
    %c0_41 = arith.constant 0 : index
    %c0_42 = arith.constant 0 : index
    %63 = vector.load %arg4[%c7, %c0_40, %c0_41, %c0_42] : memref<8x3x2x32xbf16, #tpu.memory_space<vmem>>, vector<1x3x2x32xbf16>
    %64 = vector.shape_cast %63 : vector<1x3x2x32xbf16> to vector<3x2x32xbf16>
    %65 = vector.extract_strided_slice %64 {offsets = [0, 0, 0], sizes = [1, 2, 32], strides = [1, 1, 1]} : vector<3x2x32xbf16> to vector<1x2x32xbf16>
    %66 = vector.shape_cast %65 : vector<1x2x32xbf16> to vector<2x32xbf16>
    %67 = arith.extf %66 : vector<2x32xbf16> to vector<2x32xf32>
    %68 = arith.addf %67, %60 : vector<2x32xf32>
    %69 = arith.negf %68 : vector<2x32xf32>
    %70 = math.exp %69 : vector<2x32xf32>
    %cst_43 = arith.constant 1.000000e+00 : f32
    %71 = vector.broadcast %cst_43 : f32 to vector<2x32xf32>
    %72 = arith.addf %71, %70 : vector<2x32xf32>
    %73 = arith.divf %71, %72 : vector<2x32xf32>
    %74 = vector.extract_strided_slice %64 {offsets = [1, 0, 0], sizes = [1, 2, 32], strides = [1, 1, 1]} : vector<3x2x32xbf16> to vector<1x2x32xbf16>
    %75 = vector.shape_cast %74 : vector<1x2x32xbf16> to vector<2x32xbf16>
    %76 = arith.extf %75 : vector<2x32xbf16> to vector<2x32xf32>
    %77 = arith.addf %76, %61 : vector<2x32xf32>
    %78 = arith.negf %77 : vector<2x32xf32>
    %79 = math.exp %78 : vector<2x32xf32>
    %cst_44 = arith.constant 1.000000e+00 : f32
    %80 = vector.broadcast %cst_44 : f32 to vector<2x32xf32>
    %81 = arith.addf %80, %79 : vector<2x32xf32>
    %82 = arith.divf %80, %81 : vector<2x32xf32>
    %83 = vector.extract_strided_slice %64 {offsets = [2, 0, 0], sizes = [1, 2, 32], strides = [1, 1, 1]} : vector<3x2x32xbf16> to vector<1x2x32xbf16>
    %84 = vector.shape_cast %83 : vector<1x2x32xbf16> to vector<2x32xbf16>
    %85 = arith.extf %84 : vector<2x32xbf16> to vector<2x32xf32>
    %86 = vector.broadcast %16 : vector<1x32xf32> to vector<2x32xf32>
    %87 = arith.addf %62, %86 : vector<2x32xf32>
    %88 = arith.mulf %73, %87 : vector<2x32xf32>
    %89 = arith.addf %85, %88 : vector<2x32xf32>
    %90 = math.tanh %89 : vector<2x32xf32>
    %91 = arith.subf %20, %90 : vector<2x32xf32>
    %92 = arith.mulf %82, %91 : vector<2x32xf32>
    %93 = arith.addf %90, %92 : vector<2x32xf32>
    %c7_45 = arith.constant 7 : index
    %c0_46 = arith.constant 0 : index
    %c0_47 = arith.constant 0 : index
    %94 = vector.load %arg8[%c7_45, %c0_46, %c0_47] : memref<8x2x32xf32, #tpu.memory_space<vmem>>, vector<1x2x32xf32>
    %95 = vector.shape_cast %94 : vector<1x2x32xf32> to vector<2x32xf32>
    %96 = vector.shape_cast %93 : vector<2x32xf32> to vector<1x2x32xf32>
    tpu.vector_store %arg8[%c7_45, %c0_46, %c0_47], %96 {strides = array<i32>} : memref<8x2x32xf32, #tpu.memory_space<vmem>>, vector<1x2x32xf32>,
    %97 = arith.truncf %55 : vector<2x32xf32> to vector<2x32xbf16>
    %cst_48 = arith.constant dense<0.000000e+00> : vector<2x32xf32>
    %98 = tpu.matmul %97, %4, %cst_48 {dimension_numbers = #tpu.dot_dimension_numbers<[1], [0], [0], [1], [0, 0, 1, 1], [], []>} : vector<2x32xbf16>, vector<32x32xbf16>, vector<2x32xf32> -> vector<2x32xf32>
    %cst_49 = arith.constant dense<0.000000e+00> : vector<2x32xf32>
    %99 = tpu.matmul %97, %6, %cst_49 {dimension_numbers = #tpu.dot_dimension_numbers<[1], [0], [0], [1], [0, 0, 1, 1], [], []>} : vector<2x32xbf16>, vector<32x32xbf16>, vector<2x32xf32> -> vector<2x32xf32>
    %cst_50 = arith.constant dense<0.000000e+00> : vector<2x32xf32>
    %100 = tpu.matmul %97, %8, %cst_50 {dimension_numbers = #tpu.dot_dimension_numbers<[1], [0], [0], [1], [0, 0, 1, 1], [], []>} : vector<2x32xbf16>, vector<32x32xbf16>, vector<2x32xf32> -> vector<2x32xf32>
    %c1_51 = arith.constant 1 : index
    %c0_52 = arith.constant 0 : index
    %c0_53 = arith.constant 0 : index
    %c0_54 = arith.constant 0 : index
    %101 = vector.load %arg1[%c1_51, %c0_52, %c0_53, %c0_54] : memref<8x3x2x32xbf16, #tpu.memory_space<vmem>>, vector<1x3x2x32xbf16>
    %102 = vector.shape_cast %101 : vector<1x3x2x32xbf16> to vector<3x2x32xbf16>
    %103 = vector.extract_strided_slice %102 {offsets = [0, 0, 0], sizes = [1, 2, 32], strides = [1, 1, 1]} : vector<3x2x32xbf16> to vector<1x2x32xbf16>
    %104 = vector.shape_cast %103 : vector<1x2x32xbf16> to vector<2x32xbf16>
    %105 = arith.extf %104 : vector<2x32xbf16> to vector<2x32xf32>
    %106 = arith.addf %105, %98 : vector<2x32xf32>
    %107 = arith.negf %106 : vector<2x32xf32>
    %108 = math.exp %107 : vector<2x32xf32>
    %cst_55 = arith.constant 1.000000e+00 : f32
    %109 = vector.broadcast %cst_55 : f32 to vector<2x32xf32>
    %110 = arith.addf %109, %108 : vector<2x32xf32>
    %111 = arith.divf %109, %110 : vector<2x32xf32>
    %112 = vector.extract_strided_slice %102 {offsets = [1, 0, 0], sizes = [1, 2, 32], strides = [1, 1, 1]} : vector<3x2x32xbf16> to vector<1x2x32xbf16>
    %113 = vector.shape_cast %112 : vector<1x2x32xbf16> to vector<2x32xbf16>
    %114 = arith.extf %113 : vector<2x32xbf16> to vector<2x32xf32>
    %115 = arith.addf %114, %99 : vector<2x32xf32>
    %116 = arith.negf %115 : vector<2x32xf32>
    %117 = math.exp %116 : vector<2x32xf32>
    %cst_56 = arith.constant 1.000000e+00 : f32
    %118 = vector.broadcast %cst_56 : f32 to vector<2x32xf32>
    %119 = arith.addf %118, %117 : vector<2x32xf32>
    %120 = arith.divf %118, %119 : vector<2x32xf32>
    %121 = vector.extract_strided_slice %102 {offsets = [2, 0, 0], sizes = [1, 2, 32], strides = [1, 1, 1]} : vector<3x2x32xbf16> to vector<1x2x32xbf16>
    %122 = vector.shape_cast %121 : vector<1x2x32xbf16> to vector<2x32xbf16>
    %123 = arith.extf %122 : vector<2x32xbf16> to vector<2x32xf32>
    %124 = vector.broadcast %15 : vector<1x32xf32> to vector<2x32xf32>
    %125 = arith.addf %100, %124 : vector<2x32xf32>
    %126 = arith.mulf %111, %125 : vector<2x32xf32>
    %127 = arith.addf %123, %126 : vector<2x32xf32>
    %128 = math.tanh %127 : vector<2x32xf32>
    %129 = arith.subf %55, %128 : vector<2x32xf32>
    %130 = arith.mulf %120, %129 : vector<2x32xf32>
    %131 = arith.addf %128, %130 : vector<2x32xf32>
    %c1_57 = arith.constant 1 : index
    %c0_58 = arith.constant 0 : index
    %c0_59 = arith.constant 0 : index
    %132 = vector.load %arg7[%c1_57, %c0_58, %c0_59] : memref<8x2x32xf32, #tpu.memory_space<vmem>>, vector<1x2x32xf32>
    %133 = vector.shape_cast %132 : vector<1x2x32xf32> to vector<2x32xf32>
    %134 = vector.shape_cast %131 : vector<2x32xf32> to vector<1x2x32xf32>
    tpu.vector_store %arg7[%c1_57, %c0_58, %c0_59], %134 {strides = array<i32>} : memref<8x2x32xf32, #tpu.memory_space<vmem>>, vector<1x2x32xf32>,
    %135 = arith.truncf %93 : vector<2x32xf32> to vector<2x32xbf16>
    %cst_60 = arith.constant dense<0.000000e+00> : vector<2x32xf32>
    %136 = tpu.matmul %135, %10, %cst_60 {dimension_numbers = #tpu.dot_dimension_numbers<[1], [0], [0], [1], [0, 0, 1, 1], [], []>} : vector<2x32xbf16>, vector<32x32xbf16>, vector<2x32xf32> -> vector<2x32xf32>
    %cst_61 = arith.constant dense<0.000000e+00> : vector<2x32xf32>
    %137 = tpu.matmul %135, %12, %cst_61 {dimension_numbers = #tpu.dot_dimension_numbers<[1], [0], [0], [1], [0, 0, 1, 1], [], []>} : vector<2x32xbf16>, vector<32x32xbf16>, vector<2x32xf32> -> vector<2x32xf32>
    %cst_62 = arith.constant dense<0.000000e+00> : vector<2x32xf32>
    %138 = tpu.matmul %135, %14, %cst_62 {dimension_numbers = #tpu.dot_dimension_numbers<[1], [0], [0], [1], [0, 0, 1, 1], [], []>} : vector<2x32xbf16>, vector<32x32xbf16>, vector<2x32xf32> -> vector<2x32xf32>
    %c6 = arith.constant 6 : index
    %c0_63 = arith.constant 0 : index
    %c0_64 = arith.constant 0 : index
    %c0_65 = arith.constant 0 : index
    %139 = vector.load %arg4[%c6, %c0_63, %c0_64, %c0_65] : memref<8x3x2x32xbf16, #tpu.memory_space<vmem>>, vector<1x3x2x32xbf16>
    %140 = vector.shape_cast %139 : vector<1x3x2x32xbf16> to vector<3x2x32xbf16>
    %141 = vector.extract_strided_slice %140 {offsets = [0, 0, 0], sizes = [1, 2, 32], strides = [1, 1, 1]} : vector<3x2x32xbf16> to vector<1x2x32xbf16>
    %142 = vector.shape_cast %141 : vector<1x2x32xbf16> to vector<2x32xbf16>
    %143 = arith.extf %142 : vector<2x32xbf16> to vector<2x32xf32>
    %144 = arith.addf %143, %136 : vector<2x32xf32>
    %145 = arith.negf %144 : vector<2x32xf32>
    %146 = math.exp %145 : vector<2x32xf32>
    %cst_66 = arith.constant 1.000000e+00 : f32
    %147 = vector.broadcast %cst_66 : f32 to vector<2x32xf32>
    %148 = arith.addf %147, %146 : vector<2x32xf32>
    %149 = arith.divf %147, %148 : vector<2x32xf32>
    %150 = vector.extract_strided_slice %140 {offsets = [1, 0, 0], sizes = [1, 2, 32], strides = [1, 1, 1]} : vector<3x2x32xbf16> to vector<1x2x32xbf16>
    %151 = vector.shape_cast %150 : vector<1x2x32xbf16> to vector<2x32xbf16>
    %152 = arith.extf %151 : vector<2x32xbf16> to vector<2x32xf32>
    %153 = arith.addf %152, %137 : vector<2x32xf32>
    %154 = arith.negf %153 : vector<2x32xf32>
    %155 = math.exp %154 : vector<2x32xf32>
    %cst_67 = arith.constant 1.000000e+00 : f32
    %156 = vector.broadcast %cst_67 : f32 to vector<2x32xf32>
    %157 = arith.addf %156, %155 : vector<2x32xf32>
    %158 = arith.divf %156, %157 : vector<2x32xf32>
    %159 = vector.extract_strided_slice %140 {offsets = [2, 0, 0], sizes = [1, 2, 32], strides = [1, 1, 1]} : vector<3x2x32xbf16> to vector<1x2x32xbf16>
    %160 = vector.shape_cast %159 : vector<1x2x32xbf16> to vector<2x32xbf16>
    %161 = arith.extf %160 : vector<2x32xbf16> to vector<2x32xf32>
    %162 = vector.broadcast %16 : vector<1x32xf32> to vector<2x32xf32>
    %163 = arith.addf %138, %162 : vector<2x32xf32>
    %164 = arith.mulf %149, %163 : vector<2x32xf32>
    %165 = arith.addf %161, %164 : vector<2x32xf32>
    %166 = math.tanh %165 : vector<2x32xf32>
    %167 = arith.subf %93, %166 : vector<2x32xf32>
    %168 = arith.mulf %158, %167 : vector<2x32xf32>
    %169 = arith.addf %166, %168 : vector<2x32xf32>
    %c6_68 = arith.constant 6 : index
    %c0_69 = arith.constant 0 : index
    %c0_70 = arith.constant 0 : index
    %170 = vector.load %arg8[%c6_68, %c0_69, %c0_70] : memref<8x2x32xf32, #tpu.memory_space<vmem>>, vector<1x2x32xf32>
    %171 = vector.shape_cast %170 : vector<1x2x32xf32> to vector<2x32xf32>
    %172 = vector.shape_cast %169 : vector<2x32xf32> to vector<1x2x32xf32>
    tpu.vector_store %arg8[%c6_68, %c0_69, %c0_70], %172 {strides = array<i32>} : memref<8x2x32xf32, #tpu.memory_space<vmem>>, vector<1x2x32xf32>,
    %173 = arith.truncf %131 : vector<2x32xf32> to vector<2x32xbf16>
    %cst_71 = arith.constant dense<0.000000e+00> : vector<2x32xf32>
    %174 = tpu.matmul %173, %4, %cst_71 {dimension_numbers = #tpu.dot_dimension_numbers<[1], [0], [0], [1], [0, 0, 1, 1], [], []>} : vector<2x32xbf16>, vector<32x32xbf16>, vector<2x32xf32> -> vector<2x32xf32>
    %cst_72 = arith.constant dense<0.000000e+00> : vector<2x32xf32>
    %175 = tpu.matmul %173, %6, %cst_72 {dimension_numbers = #tpu.dot_dimension_numbers<[1], [0], [0], [1], [0, 0, 1, 1], [], []>} : vector<2x32xbf16>, vector<32x32xbf16>, vector<2x32xf32> -> vector<2x32xf32>
    %cst_73 = arith.constant dense<0.000000e+00> : vector<2x32xf32>
    %176 = tpu.matmul %173, %8, %cst_73 {dimension_numbers = #tpu.dot_dimension_numbers<[1], [0], [0], [1], [0, 0, 1, 1], [], []>} : vector<2x32xbf16>, vector<32x32xbf16>, vector<2x32xf32> -> vector<2x32xf32>
    %c2_74 = arith.constant 2 : index
    %c0_75 = arith.constant 0 : index
    %c0_76 = arith.constant 0 : index
    %c0_77 = arith.constant 0 : index
    %177 = vector.load %arg1[%c2_74, %c0_75, %c0_76, %c0_77] : memref<8x3x2x32xbf16, #tpu.memory_space<vmem>>, vector<1x3x2x32xbf16>
    %178 = vector.shape_cast %177 : vector<1x3x2x32xbf16> to vector<3x2x32xbf16>
    %179 = vector.extract_strided_slice %178 {offsets = [0, 0, 0], sizes = [1, 2, 32], strides = [1, 1, 1]} : vector<3x2x32xbf16> to vector<1x2x32xbf16>
    %180 = vector.shape_cast %179 : vector<1x2x32xbf16> to vector<2x32xbf16>
    %181 = arith.extf %180 : vector<2x32xbf16> to vector<2x32xf32>
    %182 = arith.addf %181, %174 : vector<2x32xf32>
    %183 = arith.negf %182 : vector<2x32xf32>
    %184 = math.exp %183 : vector<2x32xf32>
    %cst_78 = arith.constant 1.000000e+00 : f32
    %185 = vector.broadcast %cst_78 : f32 to vector<2x32xf32>
    %186 = arith.addf %185, %184 : vector<2x32xf32>
    %187 = arith.divf %185, %186 : vector<2x32xf32>
    %188 = vector.extract_strided_slice %178 {offsets = [1, 0, 0], sizes = [1, 2, 32], strides = [1, 1, 1]} : vector<3x2x32xbf16> to vector<1x2x32xbf16>
    %189 = vector.shape_cast %188 : vector<1x2x32xbf16> to vector<2x32xbf16>
    %190 = arith.extf %189 : vector<2x32xbf16> to vector<2x32xf32>
    %191 = arith.addf %190, %175 : vector<2x32xf32>
    %192 = arith.negf %191 : vector<2x32xf32>
    %193 = math.exp %192 : vector<2x32xf32>
    %cst_79 = arith.constant 1.000000e+00 : f32
    %194 = vector.broadcast %cst_79 : f32 to vector<2x32xf32>
    %195 = arith.addf %194, %193 : vector<2x32xf32>
    %196 = arith.divf %194, %195 : vector<2x32xf32>
    %197 = vector.extract_strided_slice %178 {offsets = [2, 0, 0], sizes = [1, 2, 32], strides = [1, 1, 1]} : vector<3x2x32xbf16> to vector<1x2x32xbf16>
    %198 = vector.shape_cast %197 : vector<1x2x32xbf16> to vector<2x32xbf16>
    %199 = arith.extf %198 : vector<2x32xbf16> to vector<2x32xf32>
    %200 = vector.broadcast %15 : vector<1x32xf32> to vector<2x32xf32>
    %201 = arith.addf %176, %200 : vector<2x32xf32>
    %202 = arith.mulf %187, %201 : vector<2x32xf32>
    %203 = arith.addf %199, %202 : vector<2x32xf32>
    %204 = math.tanh %203 : vector<2x32xf32>
    %205 = arith.subf %131, %204 : vector<2x32xf32>
    %206 = arith.mulf %196, %205 : vector<2x32xf32>
    %207 = arith.addf %204, %206 : vector<2x32xf32>
    %c2_80 = arith.constant 2 : index
    %c0_81 = arith.constant 0 : index
    %c0_82 = arith.constant 0 : index
    %208 = vector.load %arg7[%c2_80, %c0_81, %c0_82] : memref<8x2x32xf32, #tpu.memory_space<vmem>>, vector<1x2x32xf32>
    %209 = vector.shape_cast %208 : vector<1x2x32xf32> to vector<2x32xf32>
    %210 = vector.shape_cast %207 : vector<2x32xf32> to vector<1x2x32xf32>
    tpu.vector_store %arg7[%c2_80, %c0_81, %c0_82], %210 {strides = array<i32>} : memref<8x2x32xf32, #tpu.memory_space<vmem>>, vector<1x2x32xf32>,
    %211 = arith.truncf %169 : vector<2x32xf32> to vector<2x32xbf16>
    %cst_83 = arith.constant dense<0.000000e+00> : vector<2x32xf32>
    %212 = tpu.matmul %211, %10, %cst_83 {dimension_numbers = #tpu.dot_dimension_numbers<[1], [0], [0], [1], [0, 0, 1, 1], [], []>} : vector<2x32xbf16>, vector<32x32xbf16>, vector<2x32xf32> -> vector<2x32xf32>
    %cst_84 = arith.constant dense<0.000000e+00> : vector<2x32xf32>
    %213 = tpu.matmul %211, %12, %cst_84 {dimension_numbers = #tpu.dot_dimension_numbers<[1], [0], [0], [1], [0, 0, 1, 1], [], []>} : vector<2x32xbf16>, vector<32x32xbf16>, vector<2x32xf32> -> vector<2x32xf32>
    %cst_85 = arith.constant dense<0.000000e+00> : vector<2x32xf32>
    %214 = tpu.matmul %211, %14, %cst_85 {dimension_numbers = #tpu.dot_dimension_numbers<[1], [0], [0], [1], [0, 0, 1, 1], [], []>} : vector<2x32xbf16>, vector<32x32xbf16>, vector<2x32xf32> -> vector<2x32xf32>
    %c5 = arith.constant 5 : index
    %c0_86 = arith.constant 0 : index
    %c0_87 = arith.constant 0 : index
    %c0_88 = arith.constant 0 : index
    %215 = vector.load %arg4[%c5, %c0_86, %c0_87, %c0_88] : memref<8x3x2x32xbf16, #tpu.memory_space<vmem>>, vector<1x3x2x32xbf16>
    %216 = vector.shape_cast %215 : vector<1x3x2x32xbf16> to vector<3x2x32xbf16>
    %217 = vector.extract_strided_slice %216 {offsets = [0, 0, 0], sizes = [1, 2, 32], strides = [1, 1, 1]} : vector<3x2x32xbf16> to vector<1x2x32xbf16>
    %218 = vector.shape_cast %217 : vector<1x2x32xbf16> to vector<2x32xbf16>
    %219 = arith.extf %218 : vector<2x32xbf16> to vector<2x32xf32>
    %220 = arith.addf %219, %212 : vector<2x32xf32>
    %221 = arith.negf %220 : vector<2x32xf32>
    %222 = math.exp %221 : vector<2x32xf32>
    %cst_89 = arith.constant 1.000000e+00 : f32
    %223 = vector.broadcast %cst_89 : f32 to vector<2x32xf32>
    %224 = arith.addf %223, %222 : vector<2x32xf32>
    %225 = arith.divf %223, %224 : vector<2x32xf32>
    %226 = vector.extract_strided_slice %216 {offsets = [1, 0, 0], sizes = [1, 2, 32], strides = [1, 1, 1]} : vector<3x2x32xbf16> to vector<1x2x32xbf16>
    %227 = vector.shape_cast %226 : vector<1x2x32xbf16> to vector<2x32xbf16>
    %228 = arith.extf %227 : vector<2x32xbf16> to vector<2x32xf32>
    %229 = arith.addf %228, %213 : vector<2x32xf32>
    %230 = arith.negf %229 : vector<2x32xf32>
    %231 = math.exp %230 : vector<2x32xf32>
    %cst_90 = arith.constant 1.000000e+00 : f32
    %232 = vector.broadcast %cst_90 : f32 to vector<2x32xf32>
    %233 = arith.addf %232, %231 : vector<2x32xf32>
    %234 = arith.divf %232, %233 : vector<2x32xf32>
    %235 = vector.extract_strided_slice %216 {offsets = [2, 0, 0], sizes = [1, 2, 32], strides = [1, 1, 1]} : vector<3x2x32xbf16> to vector<1x2x32xbf16>
    %236 = vector.shape_cast %235 : vector<1x2x32xbf16> to vector<2x32xbf16>
    %237 = arith.extf %236 : vector<2x32xbf16> to vector<2x32xf32>
    %238 = vector.broadcast %16 : vector<1x32xf32> to vector<2x32xf32>
    %239 = arith.addf %214, %238 : vector<2x32xf32>
    %240 = arith.mulf %225, %239 : vector<2x32xf32>
    %241 = arith.addf %237, %240 : vector<2x32xf32>
    %242 = math.tanh %241 : vector<2x32xf32>
    %243 = arith.subf %169, %242 : vector<2x32xf32>
    %244 = arith.mulf %234, %243 : vector<2x32xf32>
    %245 = arith.addf %242, %244 : vector<2x32xf32>
    %c5_91 = arith.constant 5 : index
    %c0_92 = arith.constant 0 : index
    %c0_93 = arith.constant 0 : index
    %246 = vector.load %arg8[%c5_91, %c0_92, %c0_93] : memref<8x2x32xf32, #tpu.memory_space<vmem>>, vector<1x2x32xf32>
    %247 = vector.shape_cast %246 : vector<1x2x32xf32> to vector<2x32xf32>
    %248 = vector.shape_cast %245 : vector<2x32xf32> to vector<1x2x32xf32>
    tpu.vector_store %arg8[%c5_91, %c0_92, %c0_93], %248 {strides = array<i32>} : memref<8x2x32xf32, #tpu.memory_space<vmem>>, vector<1x2x32xf32>,
    %249 = arith.truncf %207 : vector<2x32xf32> to vector<2x32xbf16>
    %cst_94 = arith.constant dense<0.000000e+00> : vector<2x32xf32>
    %250 = tpu.matmul %249, %4, %cst_94 {dimension_numbers = #tpu.dot_dimension_numbers<[1], [0], [0], [1], [0, 0, 1, 1], [], []>} : vector<2x32xbf16>, vector<32x32xbf16>, vector<2x32xf32> -> vector<2x32xf32>
    %cst_95 = arith.constant dense<0.000000e+00> : vector<2x32xf32>
    %251 = tpu.matmul %249, %6, %cst_95 {dimension_numbers = #tpu.dot_dimension_numbers<[1], [0], [0], [1], [0, 0, 1, 1], [], []>} : vector<2x32xbf16>, vector<32x32xbf16>, vector<2x32xf32> -> vector<2x32xf32>
    %cst_96 = arith.constant dense<0.000000e+00> : vector<2x32xf32>
    %252 = tpu.matmul %249, %8, %cst_96 {dimension_numbers = #tpu.dot_dimension_numbers<[1], [0], [0], [1], [0, 0, 1, 1], [], []>} : vector<2x32xbf16>, vector<32x32xbf16>, vector<2x32xf32> -> vector<2x32xf32>
    %c3 = arith.constant 3 : index
    %c0_97 = arith.constant 0 : index
    %c0_98 = arith.constant 0 : index
    %c0_99 = arith.constant 0 : index
    %253 = vector.load %arg1[%c3, %c0_97, %c0_98, %c0_99] : memref<8x3x2x32xbf16, #tpu.memory_space<vmem>>, vector<1x3x2x32xbf16>
    %254 = vector.shape_cast %253 : vector<1x3x2x32xbf16> to vector<3x2x32xbf16>
    %255 = vector.extract_strided_slice %254 {offsets = [0, 0, 0], sizes = [1, 2, 32], strides = [1, 1, 1]} : vector<3x2x32xbf16> to vector<1x2x32xbf16>
    %256 = vector.shape_cast %255 : vector<1x2x32xbf16> to vector<2x32xbf16>
    %257 = arith.extf %256 : vector<2x32xbf16> to vector<2x32xf32>
    %258 = arith.addf %257, %250 : vector<2x32xf32>
    %259 = arith.negf %258 : vector<2x32xf32>
    %260 = math.exp %259 : vector<2x32xf32>
    %cst_100 = arith.constant 1.000000e+00 : f32
    %261 = vector.broadcast %cst_100 : f32 to vector<2x32xf32>
    %262 = arith.addf %261, %260 : vector<2x32xf32>
    %263 = arith.divf %261, %262 : vector<2x32xf32>
    %264 = vector.extract_strided_slice %254 {offsets = [1, 0, 0], sizes = [1, 2, 32], strides = [1, 1, 1]} : vector<3x2x32xbf16> to vector<1x2x32xbf16>
    %265 = vector.shape_cast %264 : vector<1x2x32xbf16> to vector<2x32xbf16>
    %266 = arith.extf %265 : vector<2x32xbf16> to vector<2x32xf32>
    %267 = arith.addf %266, %251 : vector<2x32xf32>
    %268 = arith.negf %267 : vector<2x32xf32>
    %269 = math.exp %268 : vector<2x32xf32>
    %cst_101 = arith.constant 1.000000e+00 : f32
    %270 = vector.broadcast %cst_101 : f32 to vector<2x32xf32>
    %271 = arith.addf %270, %269 : vector<2x32xf32>
    %272 = arith.divf %270, %271 : vector<2x32xf32>
    %273 = vector.extract_strided_slice %254 {offsets = [2, 0, 0], sizes = [1, 2, 32], strides = [1, 1, 1]} : vector<3x2x32xbf16> to vector<1x2x32xbf16>
    %274 = vector.shape_cast %273 : vector<1x2x32xbf16> to vector<2x32xbf16>
    %275 = arith.extf %274 : vector<2x32xbf16> to vector<2x32xf32>
    %276 = vector.broadcast %15 : vector<1x32xf32> to vector<2x32xf32>
    %277 = arith.addf %252, %276 : vector<2x32xf32>
    %278 = arith.mulf %263, %277 : vector<2x32xf32>
    %279 = arith.addf %275, %278 : vector<2x32xf32>
    %280 = math.tanh %279 : vector<2x32xf32>
    %281 = arith.subf %207, %280 : vector<2x32xf32>
    %282 = arith.mulf %272, %281 : vector<2x32xf32>
    %283 = arith.addf %280, %282 : vector<2x32xf32>
    %c3_102 = arith.constant 3 : index
    %c0_103 = arith.constant 0 : index
    %c0_104 = arith.constant 0 : index
    %284 = vector.load %arg7[%c3_102, %c0_103, %c0_104] : memref<8x2x32xf32, #tpu.memory_space<vmem>>, vector<1x2x32xf32>
    %285 = vector.shape_cast %284 : vector<1x2x32xf32> to vector<2x32xf32>
    %286 = vector.shape_cast %283 : vector<2x32xf32> to vector<1x2x32xf32>
    tpu.vector_store %arg7[%c3_102, %c0_103, %c0_104], %286 {strides = array<i32>} : memref<8x2x32xf32, #tpu.memory_space<vmem>>, vector<1x2x32xf32>,
    %287 = arith.truncf %245 : vector<2x32xf32> to vector<2x32xbf16>
    %cst_105 = arith.constant dense<0.000000e+00> : vector<2x32xf32>
    %288 = tpu.matmul %287, %10, %cst_105 {dimension_numbers = #tpu.dot_dimension_numbers<[1], [0], [0], [1], [0, 0, 1, 1], [], []>} : vector<2x32xbf16>, vector<32x32xbf16>, vector<2x32xf32> -> vector<2x32xf32>
    %cst_106 = arith.constant dense<0.000000e+00> : vector<2x32xf32>
    %289 = tpu.matmul %287, %12, %cst_106 {dimension_numbers = #tpu.dot_dimension_numbers<[1], [0], [0], [1], [0, 0, 1, 1], [], []>} : vector<2x32xbf16>, vector<32x32xbf16>, vector<2x32xf32> -> vector<2x32xf32>
    %cst_107 = arith.constant dense<0.000000e+00> : vector<2x32xf32>
    %290 = tpu.matmul %287, %14, %cst_107 {dimension_numbers = #tpu.dot_dimension_numbers<[1], [0], [0], [1], [0, 0, 1, 1], [], []>} : vector<2x32xbf16>, vector<32x32xbf16>, vector<2x32xf32> -> vector<2x32xf32>
    %c4 = arith.constant 4 : index
    %c0_108 = arith.constant 0 : index
    %c0_109 = arith.constant 0 : index
    %c0_110 = arith.constant 0 : index
    %291 = vector.load %arg4[%c4, %c0_108, %c0_109, %c0_110] : memref<8x3x2x32xbf16, #tpu.memory_space<vmem>>, vector<1x3x2x32xbf16>
    %292 = vector.shape_cast %291 : vector<1x3x2x32xbf16> to vector<3x2x32xbf16>
    %293 = vector.extract_strided_slice %292 {offsets = [0, 0, 0], sizes = [1, 2, 32], strides = [1, 1, 1]} : vector<3x2x32xbf16> to vector<1x2x32xbf16>
    %294 = vector.shape_cast %293 : vector<1x2x32xbf16> to vector<2x32xbf16>
    %295 = arith.extf %294 : vector<2x32xbf16> to vector<2x32xf32>
    %296 = arith.addf %295, %288 : vector<2x32xf32>
    %297 = arith.negf %296 : vector<2x32xf32>
    %298 = math.exp %297 : vector<2x32xf32>
    %cst_111 = arith.constant 1.000000e+00 : f32
    %299 = vector.broadcast %cst_111 : f32 to vector<2x32xf32>
    %300 = arith.addf %299, %298 : vector<2x32xf32>
    %301 = arith.divf %299, %300 : vector<2x32xf32>
    %302 = vector.extract_strided_slice %292 {offsets = [1, 0, 0], sizes = [1, 2, 32], strides = [1, 1, 1]} : vector<3x2x32xbf16> to vector<1x2x32xbf16>
    %303 = vector.shape_cast %302 : vector<1x2x32xbf16> to vector<2x32xbf16>
    %304 = arith.extf %303 : vector<2x32xbf16> to vector<2x32xf32>
    %305 = arith.addf %304, %289 : vector<2x32xf32>
    %306 = arith.negf %305 : vector<2x32xf32>
    %307 = math.exp %306 : vector<2x32xf32>
    %cst_112 = arith.constant 1.000000e+00 : f32
    %308 = vector.broadcast %cst_112 : f32 to vector<2x32xf32>
    %309 = arith.addf %308, %307 : vector<2x32xf32>
    %310 = arith.divf %308, %309 : vector<2x32xf32>
    %311 = vector.extract_strided_slice %292 {offsets = [2, 0, 0], sizes = [1, 2, 32], strides = [1, 1, 1]} : vector<3x2x32xbf16> to vector<1x2x32xbf16>
    %312 = vector.shape_cast %311 : vector<1x2x32xbf16> to vector<2x32xbf16>
    %313 = arith.extf %312 : vector<2x32xbf16> to vector<2x32xf32>
    %314 = vector.broadcast %16 : vector<1x32xf32> to vector<2x32xf32>
    %315 = arith.addf %290, %314 : vector<2x32xf32>
    %316 = arith.mulf %301, %315 : vector<2x32xf32>
    %317 = arith.addf %313, %316 : vector<2x32xf32>
    %318 = math.tanh %317 : vector<2x32xf32>
    %319 = arith.subf %245, %318 : vector<2x32xf32>
    %320 = arith.mulf %310, %319 : vector<2x32xf32>
    %321 = arith.addf %318, %320 : vector<2x32xf32>
    %c4_113 = arith.constant 4 : index
    %c0_114 = arith.constant 0 : index
    %c0_115 = arith.constant 0 : index
    %322 = vector.load %arg8[%c4_113, %c0_114, %c0_115] : memref<8x2x32xf32, #tpu.memory_space<vmem>>, vector<1x2x32xf32>
    %323 = vector.shape_cast %322 : vector<1x2x32xf32> to vector<2x32xf32>
    %324 = vector.shape_cast %321 : vector<2x32xf32> to vector<1x2x32xf32>
    tpu.vector_store %arg8[%c4_113, %c0_114, %c0_115], %324 {strides = array<i32>} : memref<8x2x32xf32, #tpu.memory_space<vmem>>, vector<1x2x32xf32>,
    %325 = arith.truncf %283 : vector<2x32xf32> to vector<2x32xbf16>
    %cst_116 = arith.constant dense<0.000000e+00> : vector<2x32xf32>
    %326 = tpu.matmul %325, %4, %cst_116 {dimension_numbers = #tpu.dot_dimension_numbers<[1], [0], [0], [1], [0, 0, 1, 1], [], []>} : vector<2x32xbf16>, vector<32x32xbf16>, vector<2x32xf32> -> vector<2x32xf32>
    %cst_117 = arith.constant dense<0.000000e+00> : vector<2x32xf32>
    %327 = tpu.matmul %325, %6, %cst_117 {dimension_numbers = #tpu.dot_dimension_numbers<[1], [0], [0], [1], [0, 0, 1, 1], [], []>} : vector<2x32xbf16>, vector<32x32xbf16>, vector<2x32xf32> -> vector<2x32xf32>
    %cst_118 = arith.constant dense<0.000000e+00> : vector<2x32xf32>
    %328 = tpu.matmul %325, %8, %cst_118 {dimension_numbers = #tpu.dot_dimension_numbers<[1], [0], [0], [1], [0, 0, 1, 1], [], []>} : vector<2x32xbf16>, vector<32x32xbf16>, vector<2x32xf32> -> vector<2x32xf32>
    %c4_119 = arith.constant 4 : index
    %c0_120 = arith.constant 0 : index
    %c0_121 = arith.constant 0 : index
    %c0_122 = arith.constant 0 : index
    %329 = vector.load %arg1[%c4_119, %c0_120, %c0_121, %c0_122] : memref<8x3x2x32xbf16, #tpu.memory_space<vmem>>, vector<1x3x2x32xbf16>
    %330 = vector.shape_cast %329 : vector<1x3x2x32xbf16> to vector<3x2x32xbf16>
    %331 = vector.extract_strided_slice %330 {offsets = [0, 0, 0], sizes = [1, 2, 32], strides = [1, 1, 1]} : vector<3x2x32xbf16> to vector<1x2x32xbf16>
    %332 = vector.shape_cast %331 : vector<1x2x32xbf16> to vector<2x32xbf16>
    %333 = arith.extf %332 : vector<2x32xbf16> to vector<2x32xf32>
    %334 = arith.addf %333, %326 : vector<2x32xf32>
    %335 = arith.negf %334 : vector<2x32xf32>
    %336 = math.exp %335 : vector<2x32xf32>
    %cst_123 = arith.constant 1.000000e+00 : f32
    %337 = vector.broadcast %cst_123 : f32 to vector<2x32xf32>
    %338 = arith.addf %337, %336 : vector<2x32xf32>
    %339 = arith.divf %337, %338 : vector<2x32xf32>
    %340 = vector.extract_strided_slice %330 {offsets = [1, 0, 0], sizes = [1, 2, 32], strides = [1, 1, 1]} : vector<3x2x32xbf16> to vector<1x2x32xbf16>
    %341 = vector.shape_cast %340 : vector<1x2x32xbf16> to vector<2x32xbf16>
    %342 = arith.extf %341 : vector<2x32xbf16> to vector<2x32xf32>
    %343 = arith.addf %342, %327 : vector<2x32xf32>
    %344 = arith.negf %343 : vector<2x32xf32>
    %345 = math.exp %344 : vector<2x32xf32>
    %cst_124 = arith.constant 1.000000e+00 : f32
    %346 = vector.broadcast %cst_124 : f32 to vector<2x32xf32>
    %347 = arith.addf %346, %345 : vector<2x32xf32>
    %348 = arith.divf %346, %347 : vector<2x32xf32>
    %349 = vector.extract_strided_slice %330 {offsets = [2, 0, 0], sizes = [1, 2, 32], strides = [1, 1, 1]} : vector<3x2x32xbf16> to vector<1x2x32xbf16>
    %350 = vector.shape_cast %349 : vector<1x2x32xbf16> to vector<2x32xbf16>
    %351 = arith.extf %350 : vector<2x32xbf16> to vector<2x32xf32>
    %352 = vector.broadcast %15 : vector<1x32xf32> to vector<2x32xf32>
    %353 = arith.addf %328, %352 : vector<2x32xf32>
    %354 = arith.mulf %339, %353 : vector<2x32xf32>
    %355 = arith.addf %351, %354 : vector<2x32xf32>
    %356 = math.tanh %355 : vector<2x32xf32>
    %357 = arith.subf %283, %356 : vector<2x32xf32>
    %358 = arith.mulf %348, %357 : vector<2x32xf32>
    %359 = arith.addf %356, %358 : vector<2x32xf32>
    %c4_125 = arith.constant 4 : index
    %c0_126 = arith.constant 0 : index
    %c0_127 = arith.constant 0 : index
    %360 = vector.load %arg7[%c4_125, %c0_126, %c0_127] : memref<8x2x32xf32, #tpu.memory_space<vmem>>, vector<1x2x32xf32>
    %361 = vector.shape_cast %360 : vector<1x2x32xf32> to vector<2x32xf32>
    %362 = vector.shape_cast %359 : vector<2x32xf32> to vector<1x2x32xf32>
    tpu.vector_store %arg7[%c4_125, %c0_126, %c0_127], %362 {strides = array<i32>} : memref<8x2x32xf32, #tpu.memory_space<vmem>>, vector<1x2x32xf32>,
    %363 = arith.truncf %321 : vector<2x32xf32> to vector<2x32xbf16>
    %cst_128 = arith.constant dense<0.000000e+00> : vector<2x32xf32>
    %364 = tpu.matmul %363, %10, %cst_128 {dimension_numbers = #tpu.dot_dimension_numbers<[1], [0], [0], [1], [0, 0, 1, 1], [], []>} : vector<2x32xbf16>, vector<32x32xbf16>, vector<2x32xf32> -> vector<2x32xf32>
    %cst_129 = arith.constant dense<0.000000e+00> : vector<2x32xf32>
    %365 = tpu.matmul %363, %12, %cst_129 {dimension_numbers = #tpu.dot_dimension_numbers<[1], [0], [0], [1], [0, 0, 1, 1], [], []>} : vector<2x32xbf16>, vector<32x32xbf16>, vector<2x32xf32> -> vector<2x32xf32>
    %cst_130 = arith.constant dense<0.000000e+00> : vector<2x32xf32>
    %366 = tpu.matmul %363, %14, %cst_130 {dimension_numbers = #tpu.dot_dimension_numbers<[1], [0], [0], [1], [0, 0, 1, 1], [], []>} : vector<2x32xbf16>, vector<32x32xbf16>, vector<2x32xf32> -> vector<2x32xf32>
    %c3_131 = arith.constant 3 : index
    %c0_132 = arith.constant 0 : index
    %c0_133 = arith.constant 0 : index
    %c0_134 = arith.constant 0 : index
    %367 = vector.load %arg4[%c3_131, %c0_132, %c0_133, %c0_134] : memref<8x3x2x32xbf16, #tpu.memory_space<vmem>>, vector<1x3x2x32xbf16>
    %368 = vector.shape_cast %367 : vector<1x3x2x32xbf16> to vector<3x2x32xbf16>
    %369 = vector.extract_strided_slice %368 {offsets = [0, 0, 0], sizes = [1, 2, 32], strides = [1, 1, 1]} : vector<3x2x32xbf16> to vector<1x2x32xbf16>
    %370 = vector.shape_cast %369 : vector<1x2x32xbf16> to vector<2x32xbf16>
    %371 = arith.extf %370 : vector<2x32xbf16> to vector<2x32xf32>
    %372 = arith.addf %371, %364 : vector<2x32xf32>
    %373 = arith.negf %372 : vector<2x32xf32>
    %374 = math.exp %373 : vector<2x32xf32>
    %cst_135 = arith.constant 1.000000e+00 : f32
    %375 = vector.broadcast %cst_135 : f32 to vector<2x32xf32>
    %376 = arith.addf %375, %374 : vector<2x32xf32>
    %377 = arith.divf %375, %376 : vector<2x32xf32>
    %378 = vector.extract_strided_slice %368 {offsets = [1, 0, 0], sizes = [1, 2, 32], strides = [1, 1, 1]} : vector<3x2x32xbf16> to vector<1x2x32xbf16>
    %379 = vector.shape_cast %378 : vector<1x2x32xbf16> to vector<2x32xbf16>
    %380 = arith.extf %379 : vector<2x32xbf16> to vector<2x32xf32>
    %381 = arith.addf %380, %365 : vector<2x32xf32>
    %382 = arith.negf %381 : vector<2x32xf32>
    %383 = math.exp %382 : vector<2x32xf32>
    %cst_136 = arith.constant 1.000000e+00 : f32
    %384 = vector.broadcast %cst_136 : f32 to vector<2x32xf32>
    %385 = arith.addf %384, %383 : vector<2x32xf32>
    %386 = arith.divf %384, %385 : vector<2x32xf32>
    %387 = vector.extract_strided_slice %368 {offsets = [2, 0, 0], sizes = [1, 2, 32], strides = [1, 1, 1]} : vector<3x2x32xbf16> to vector<1x2x32xbf16>
    %388 = vector.shape_cast %387 : vector<1x2x32xbf16> to vector<2x32xbf16>
    %389 = arith.extf %388 : vector<2x32xbf16> to vector<2x32xf32>
    %390 = vector.broadcast %16 : vector<1x32xf32> to vector<2x32xf32>
    %391 = arith.addf %366, %390 : vector<2x32xf32>
    %392 = arith.mulf %377, %391 : vector<2x32xf32>
    %393 = arith.addf %389, %392 : vector<2x32xf32>
    %394 = math.tanh %393 : vector<2x32xf32>
    %395 = arith.subf %321, %394 : vector<2x32xf32>
    %396 = arith.mulf %386, %395 : vector<2x32xf32>
    %397 = arith.addf %394, %396 : vector<2x32xf32>
    %c3_137 = arith.constant 3 : index
    %c0_138 = arith.constant 0 : index
    %c0_139 = arith.constant 0 : index
    %398 = vector.load %arg8[%c3_137, %c0_138, %c0_139] : memref<8x2x32xf32, #tpu.memory_space<vmem>>, vector<1x2x32xf32>
    %399 = vector.shape_cast %398 : vector<1x2x32xf32> to vector<2x32xf32>
    %400 = vector.shape_cast %397 : vector<2x32xf32> to vector<1x2x32xf32>
    tpu.vector_store %arg8[%c3_137, %c0_138, %c0_139], %400 {strides = array<i32>} : memref<8x2x32xf32, #tpu.memory_space<vmem>>, vector<1x2x32xf32>,
    %401 = arith.truncf %359 : vector<2x32xf32> to vector<2x32xbf16>
    %cst_140 = arith.constant dense<0.000000e+00> : vector<2x32xf32>
    %402 = tpu.matmul %401, %4, %cst_140 {dimension_numbers = #tpu.dot_dimension_numbers<[1], [0], [0], [1], [0, 0, 1, 1], [], []>} : vector<2x32xbf16>, vector<32x32xbf16>, vector<2x32xf32> -> vector<2x32xf32>
    %cst_141 = arith.constant dense<0.000000e+00> : vector<2x32xf32>
    %403 = tpu.matmul %401, %6, %cst_141 {dimension_numbers = #tpu.dot_dimension_numbers<[1], [0], [0], [1], [0, 0, 1, 1], [], []>} : vector<2x32xbf16>, vector<32x32xbf16>, vector<2x32xf32> -> vector<2x32xf32>
    %cst_142 = arith.constant dense<0.000000e+00> : vector<2x32xf32>
    %404 = tpu.matmul %401, %8, %cst_142 {dimension_numbers = #tpu.dot_dimension_numbers<[1], [0], [0], [1], [0, 0, 1, 1], [], []>} : vector<2x32xbf16>, vector<32x32xbf16>, vector<2x32xf32> -> vector<2x32xf32>
    %c5_143 = arith.constant 5 : index
    %c0_144 = arith.constant 0 : index
    %c0_145 = arith.constant 0 : index
    %c0_146 = arith.constant 0 : index
    %405 = vector.load %arg1[%c5_143, %c0_144, %c0_145, %c0_146] : memref<8x3x2x32xbf16, #tpu.memory_space<vmem>>, vector<1x3x2x32xbf16>
    %406 = vector.shape_cast %405 : vector<1x3x2x32xbf16> to vector<3x2x32xbf16>
    %407 = vector.extract_strided_slice %406 {offsets = [0, 0, 0], sizes = [1, 2, 32], strides = [1, 1, 1]} : vector<3x2x32xbf16> to vector<1x2x32xbf16>
    %408 = vector.shape_cast %407 : vector<1x2x32xbf16> to vector<2x32xbf16>
    %409 = arith.extf %408 : vector<2x32xbf16> to vector<2x32xf32>
    %410 = arith.addf %409, %402 : vector<2x32xf32>
    %411 = arith.negf %410 : vector<2x32xf32>
    %412 = math.exp %411 : vector<2x32xf32>
    %cst_147 = arith.constant 1.000000e+00 : f32
    %413 = vector.broadcast %cst_147 : f32 to vector<2x32xf32>
    %414 = arith.addf %413, %412 : vector<2x32xf32>
    %415 = arith.divf %413, %414 : vector<2x32xf32>
    %416 = vector.extract_strided_slice %406 {offsets = [1, 0, 0], sizes = [1, 2, 32], strides = [1, 1, 1]} : vector<3x2x32xbf16> to vector<1x2x32xbf16>
    %417 = vector.shape_cast %416 : vector<1x2x32xbf16> to vector<2x32xbf16>
    %418 = arith.extf %417 : vector<2x32xbf16> to vector<2x32xf32>
    %419 = arith.addf %418, %403 : vector<2x32xf32>
    %420 = arith.negf %419 : vector<2x32xf32>
    %421 = math.exp %420 : vector<2x32xf32>
    %cst_148 = arith.constant 1.000000e+00 : f32
    %422 = vector.broadcast %cst_148 : f32 to vector<2x32xf32>
    %423 = arith.addf %422, %421 : vector<2x32xf32>
    %424 = arith.divf %422, %423 : vector<2x32xf32>
    %425 = vector.extract_strided_slice %406 {offsets = [2, 0, 0], sizes = [1, 2, 32], strides = [1, 1, 1]} : vector<3x2x32xbf16> to vector<1x2x32xbf16>
    %426 = vector.shape_cast %425 : vector<1x2x32xbf16> to vector<2x32xbf16>
    %427 = arith.extf %426 : vector<2x32xbf16> to vector<2x32xf32>
    %428 = vector.broadcast %15 : vector<1x32xf32> to vector<2x32xf32>
    %429 = arith.addf %404, %428 : vector<2x32xf32>
    %430 = arith.mulf %415, %429 : vector<2x32xf32>
    %431 = arith.addf %427, %430 : vector<2x32xf32>
    %432 = math.tanh %431 : vector<2x32xf32>
    %433 = arith.subf %359, %432 : vector<2x32xf32>
    %434 = arith.mulf %424, %433 : vector<2x32xf32>
    %435 = arith.addf %432, %434 : vector<2x32xf32>
    %c5_149 = arith.constant 5 : index
    %c0_150 = arith.constant 0 : index
    %c0_151 = arith.constant 0 : index
    %436 = vector.load %arg7[%c5_149, %c0_150, %c0_151] : memref<8x2x32xf32, #tpu.memory_space<vmem>>, vector<1x2x32xf32>
    %437 = vector.shape_cast %436 : vector<1x2x32xf32> to vector<2x32xf32>
    %438 = vector.shape_cast %435 : vector<2x32xf32> to vector<1x2x32xf32>
    tpu.vector_store %arg7[%c5_149, %c0_150, %c0_151], %438 {strides = array<i32>} : memref<8x2x32xf32, #tpu.memory_space<vmem>>, vector<1x2x32xf32>,
    %439 = arith.truncf %397 : vector<2x32xf32> to vector<2x32xbf16>
    %cst_152 = arith.constant dense<0.000000e+00> : vector<2x32xf32>
    %440 = tpu.matmul %439, %10, %cst_152 {dimension_numbers = #tpu.dot_dimension_numbers<[1], [0], [0], [1], [0, 0, 1, 1], [], []>} : vector<2x32xbf16>, vector<32x32xbf16>, vector<2x32xf32> -> vector<2x32xf32>
    %cst_153 = arith.constant dense<0.000000e+00> : vector<2x32xf32>
    %441 = tpu.matmul %439, %12, %cst_153 {dimension_numbers = #tpu.dot_dimension_numbers<[1], [0], [0], [1], [0, 0, 1, 1], [], []>} : vector<2x32xbf16>, vector<32x32xbf16>, vector<2x32xf32> -> vector<2x32xf32>
    %cst_154 = arith.constant dense<0.000000e+00> : vector<2x32xf32>
    %442 = tpu.matmul %439, %14, %cst_154 {dimension_numbers = #tpu.dot_dimension_numbers<[1], [0], [0], [1], [0, 0, 1, 1], [], []>} : vector<2x32xbf16>, vector<32x32xbf16>, vector<2x32xf32> -> vector<2x32xf32>
    %c2_155 = arith.constant 2 : index
    %c0_156 = arith.constant 0 : index
    %c0_157 = arith.constant 0 : index
    %c0_158 = arith.constant 0 : index
    %443 = vector.load %arg4[%c2_155, %c0_156, %c0_157, %c0_158] : memref<8x3x2x32xbf16, #tpu.memory_space<vmem>>, vector<1x3x2x32xbf16>
    %444 = vector.shape_cast %443 : vector<1x3x2x32xbf16> to vector<3x2x32xbf16>
    %445 = vector.extract_strided_slice %444 {offsets = [0, 0, 0], sizes = [1, 2, 32], strides = [1, 1, 1]} : vector<3x2x32xbf16> to vector<1x2x32xbf16>
    %446 = vector.shape_cast %445 : vector<1x2x32xbf16> to vector<2x32xbf16>
    %447 = arith.extf %446 : vector<2x32xbf16> to vector<2x32xf32>
    %448 = arith.addf %447, %440 : vector<2x32xf32>
    %449 = arith.negf %448 : vector<2x32xf32>
    %450 = math.exp %449 : vector<2x32xf32>
    %cst_159 = arith.constant 1.000000e+00 : f32
    %451 = vector.broadcast %cst_159 : f32 to vector<2x32xf32>
    %452 = arith.addf %451, %450 : vector<2x32xf32>
    %453 = arith.divf %451, %452 : vector<2x32xf32>
    %454 = vector.extract_strided_slice %444 {offsets = [1, 0, 0], sizes = [1, 2, 32], strides = [1, 1, 1]} : vector<3x2x32xbf16> to vector<1x2x32xbf16>
    %455 = vector.shape_cast %454 : vector<1x2x32xbf16> to vector<2x32xbf16>
    %456 = arith.extf %455 : vector<2x32xbf16> to vector<2x32xf32>
    %457 = arith.addf %456, %441 : vector<2x32xf32>
    %458 = arith.negf %457 : vector<2x32xf32>
    %459 = math.exp %458 : vector<2x32xf32>
    %cst_160 = arith.constant 1.000000e+00 : f32
    %460 = vector.broadcast %cst_160 : f32 to vector<2x32xf32>
    %461 = arith.addf %460, %459 : vector<2x32xf32>
    %462 = arith.divf %460, %461 : vector<2x32xf32>
    %463 = vector.extract_strided_slice %444 {offsets = [2, 0, 0], sizes = [1, 2, 32], strides = [1, 1, 1]} : vector<3x2x32xbf16> to vector<1x2x32xbf16>
    %464 = vector.shape_cast %463 : vector<1x2x32xbf16> to vector<2x32xbf16>
    %465 = arith.extf %464 : vector<2x32xbf16> to vector<2x32xf32>
    %466 = vector.broadcast %16 : vector<1x32xf32> to vector<2x32xf32>
    %467 = arith.addf %442, %466 : vector<2x32xf32>
    %468 = arith.mulf %453, %467 : vector<2x32xf32>
    %469 = arith.addf %465, %468 : vector<2x32xf32>
    %470 = math.tanh %469 : vector<2x32xf32>
    %471 = arith.subf %397, %470 : vector<2x32xf32>
    %472 = arith.mulf %462, %471 : vector<2x32xf32>
    %473 = arith.addf %470, %472 : vector<2x32xf32>
    %c2_161 = arith.constant 2 : index
    %c0_162 = arith.constant 0 : index
    %c0_163 = arith.constant 0 : index
    %474 = vector.load %arg8[%c2_161, %c0_162, %c0_163] : memref<8x2x32xf32, #tpu.memory_space<vmem>>, vector<1x2x32xf32>
    %475 = vector.shape_cast %474 : vector<1x2x32xf32> to vector<2x32xf32>
    %476 = vector.shape_cast %473 : vector<2x32xf32> to vector<1x2x32xf32>
    tpu.vector_store %arg8[%c2_161, %c0_162, %c0_163], %476 {strides = array<i32>} : memref<8x2x32xf32, #tpu.memory_space<vmem>>, vector<1x2x32xf32>,
    %477 = arith.truncf %435 : vector<2x32xf32> to vector<2x32xbf16>
    %cst_164 = arith.constant dense<0.000000e+00> : vector<2x32xf32>
    %478 = tpu.matmul %477, %4, %cst_164 {dimension_numbers = #tpu.dot_dimension_numbers<[1], [0], [0], [1], [0, 0, 1, 1], [], []>} : vector<2x32xbf16>, vector<32x32xbf16>, vector<2x32xf32> -> vector<2x32xf32>
    %cst_165 = arith.constant dense<0.000000e+00> : vector<2x32xf32>
    %479 = tpu.matmul %477, %6, %cst_165 {dimension_numbers = #tpu.dot_dimension_numbers<[1], [0], [0], [1], [0, 0, 1, 1], [], []>} : vector<2x32xbf16>, vector<32x32xbf16>, vector<2x32xf32> -> vector<2x32xf32>
    %cst_166 = arith.constant dense<0.000000e+00> : vector<2x32xf32>
    %480 = tpu.matmul %477, %8, %cst_166 {dimension_numbers = #tpu.dot_dimension_numbers<[1], [0], [0], [1], [0, 0, 1, 1], [], []>} : vector<2x32xbf16>, vector<32x32xbf16>, vector<2x32xf32> -> vector<2x32xf32>
    %c6_167 = arith.constant 6 : index
    %c0_168 = arith.constant 0 : index
    %c0_169 = arith.constant 0 : index
    %c0_170 = arith.constant 0 : index
    %481 = vector.load %arg1[%c6_167, %c0_168, %c0_169, %c0_170] : memref<8x3x2x32xbf16, #tpu.memory_space<vmem>>, vector<1x3x2x32xbf16>
    %482 = vector.shape_cast %481 : vector<1x3x2x32xbf16> to vector<3x2x32xbf16>
    %483 = vector.extract_strided_slice %482 {offsets = [0, 0, 0], sizes = [1, 2, 32], strides = [1, 1, 1]} : vector<3x2x32xbf16> to vector<1x2x32xbf16>
    %484 = vector.shape_cast %483 : vector<1x2x32xbf16> to vector<2x32xbf16>
    %485 = arith.extf %484 : vector<2x32xbf16> to vector<2x32xf32>
    %486 = arith.addf %485, %478 : vector<2x32xf32>
    %487 = arith.negf %486 : vector<2x32xf32>
    %488 = math.exp %487 : vector<2x32xf32>
    %cst_171 = arith.constant 1.000000e+00 : f32
    %489 = vector.broadcast %cst_171 : f32 to vector<2x32xf32>
    %490 = arith.addf %489, %488 : vector<2x32xf32>
    %491 = arith.divf %489, %490 : vector<2x32xf32>
    %492 = vector.extract_strided_slice %482 {offsets = [1, 0, 0], sizes = [1, 2, 32], strides = [1, 1, 1]} : vector<3x2x32xbf16> to vector<1x2x32xbf16>
    %493 = vector.shape_cast %492 : vector<1x2x32xbf16> to vector<2x32xbf16>
    %494 = arith.extf %493 : vector<2x32xbf16> to vector<2x32xf32>
    %495 = arith.addf %494, %479 : vector<2x32xf32>
    %496 = arith.negf %495 : vector<2x32xf32>
    %497 = math.exp %496 : vector<2x32xf32>
    %cst_172 = arith.constant 1.000000e+00 : f32
    %498 = vector.broadcast %cst_172 : f32 to vector<2x32xf32>
    %499 = arith.addf %498, %497 : vector<2x32xf32>
    %500 = arith.divf %498, %499 : vector<2x32xf32>
    %501 = vector.extract_strided_slice %482 {offsets = [2, 0, 0], sizes = [1, 2, 32], strides = [1, 1, 1]} : vector<3x2x32xbf16> to vector<1x2x32xbf16>
    %502 = vector.shape_cast %501 : vector<1x2x32xbf16> to vector<2x32xbf16>
    %503 = arith.extf %502 : vector<2x32xbf16> to vector<2x32xf32>
    %504 = vector.broadcast %15 : vector<1x32xf32> to vector<2x32xf32>
    %505 = arith.addf %480, %504 : vector<2x32xf32>
    %506 = arith.mulf %491, %505 : vector<2x32xf32>
    %507 = arith.addf %503, %506 : vector<2x32xf32>
    %508 = math.tanh %507 : vector<2x32xf32>
    %509 = arith.subf %435, %508 : vector<2x32xf32>
    %510 = arith.mulf %500, %509 : vector<2x32xf32>
    %511 = arith.addf %508, %510 : vector<2x32xf32>
    %c6_173 = arith.constant 6 : index
    %c0_174 = arith.constant 0 : index
    %c0_175 = arith.constant 0 : index
    %512 = vector.load %arg7[%c6_173, %c0_174, %c0_175] : memref<8x2x32xf32, #tpu.memory_space<vmem>>, vector<1x2x32xf32>
    %513 = vector.shape_cast %512 : vector<1x2x32xf32> to vector<2x32xf32>
    %514 = vector.shape_cast %511 : vector<2x32xf32> to vector<1x2x32xf32>
    tpu.vector_store %arg7[%c6_173, %c0_174, %c0_175], %514 {strides = array<i32>} : memref<8x2x32xf32, #tpu.memory_space<vmem>>, vector<1x2x32xf32>,
    %515 = arith.truncf %473 : vector<2x32xf32> to vector<2x32xbf16>
    %cst_176 = arith.constant dense<0.000000e+00> : vector<2x32xf32>
    %516 = tpu.matmul %515, %10, %cst_176 {dimension_numbers = #tpu.dot_dimension_numbers<[1], [0], [0], [1], [0, 0, 1, 1], [], []>} : vector<2x32xbf16>, vector<32x32xbf16>, vector<2x32xf32> -> vector<2x32xf32>
    %cst_177 = arith.constant dense<0.000000e+00> : vector<2x32xf32>
    %517 = tpu.matmul %515, %12, %cst_177 {dimension_numbers = #tpu.dot_dimension_numbers<[1], [0], [0], [1], [0, 0, 1, 1], [], []>} : vector<2x32xbf16>, vector<32x32xbf16>, vector<2x32xf32> -> vector<2x32xf32>
    %cst_178 = arith.constant dense<0.000000e+00> : vector<2x32xf32>
    %518 = tpu.matmul %515, %14, %cst_178 {dimension_numbers = #tpu.dot_dimension_numbers<[1], [0], [0], [1], [0, 0, 1, 1], [], []>} : vector<2x32xbf16>, vector<32x32xbf16>, vector<2x32xf32> -> vector<2x32xf32>
    %c1_179 = arith.constant 1 : index
    %c0_180 = arith.constant 0 : index
    %c0_181 = arith.constant 0 : index
    %c0_182 = arith.constant 0 : index
    %519 = vector.load %arg4[%c1_179, %c0_180, %c0_181, %c0_182] : memref<8x3x2x32xbf16, #tpu.memory_space<vmem>>, vector<1x3x2x32xbf16>
    %520 = vector.shape_cast %519 : vector<1x3x2x32xbf16> to vector<3x2x32xbf16>
    %521 = vector.extract_strided_slice %520 {offsets = [0, 0, 0], sizes = [1, 2, 32], strides = [1, 1, 1]} : vector<3x2x32xbf16> to vector<1x2x32xbf16>
    %522 = vector.shape_cast %521 : vector<1x2x32xbf16> to vector<2x32xbf16>
    %523 = arith.extf %522 : vector<2x32xbf16> to vector<2x32xf32>
    %524 = arith.addf %523, %516 : vector<2x32xf32>
    %525 = arith.negf %524 : vector<2x32xf32>
    %526 = math.exp %525 : vector<2x32xf32>
    %cst_183 = arith.constant 1.000000e+00 : f32
    %527 = vector.broadcast %cst_183 : f32 to vector<2x32xf32>
    %528 = arith.addf %527, %526 : vector<2x32xf32>
    %529 = arith.divf %527, %528 : vector<2x32xf32>
    %530 = vector.extract_strided_slice %520 {offsets = [1, 0, 0], sizes = [1, 2, 32], strides = [1, 1, 1]} : vector<3x2x32xbf16> to vector<1x2x32xbf16>
    %531 = vector.shape_cast %530 : vector<1x2x32xbf16> to vector<2x32xbf16>
    %532 = arith.extf %531 : vector<2x32xbf16> to vector<2x32xf32>
    %533 = arith.addf %532, %517 : vector<2x32xf32>
    %534 = arith.negf %533 : vector<2x32xf32>
    %535 = math.exp %534 : vector<2x32xf32>
    %cst_184 = arith.constant 1.000000e+00 : f32
    %536 = vector.broadcast %cst_184 : f32 to vector<2x32xf32>
    %537 = arith.addf %536, %535 : vector<2x32xf32>
    %538 = arith.divf %536, %537 : vector<2x32xf32>
    %539 = vector.extract_strided_slice %520 {offsets = [2, 0, 0], sizes = [1, 2, 32], strides = [1, 1, 1]} : vector<3x2x32xbf16> to vector<1x2x32xbf16>
    %540 = vector.shape_cast %539 : vector<1x2x32xbf16> to vector<2x32xbf16>
    %541 = arith.extf %540 : vector<2x32xbf16> to vector<2x32xf32>
    %542 = vector.broadcast %16 : vector<1x32xf32> to vector<2x32xf32>
    %543 = arith.addf %518, %542 : vector<2x32xf32>
    %544 = arith.mulf %529, %543 : vector<2x32xf32>
    %545 = arith.addf %541, %544 : vector<2x32xf32>
    %546 = math.tanh %545 : vector<2x32xf32>
    %547 = arith.subf %473, %546 : vector<2x32xf32>
    %548 = arith.mulf %538, %547 : vector<2x32xf32>
    %549 = arith.addf %546, %548 : vector<2x32xf32>
    %c1_185 = arith.constant 1 : index
    %c0_186 = arith.constant 0 : index
    %c0_187 = arith.constant 0 : index
    %550 = vector.load %arg8[%c1_185, %c0_186, %c0_187] : memref<8x2x32xf32, #tpu.memory_space<vmem>>, vector<1x2x32xf32>
    %551 = vector.shape_cast %550 : vector<1x2x32xf32> to vector<2x32xf32>
    %552 = vector.shape_cast %549 : vector<2x32xf32> to vector<1x2x32xf32>
    tpu.vector_store %arg8[%c1_185, %c0_186, %c0_187], %552 {strides = array<i32>} : memref<8x2x32xf32, #tpu.memory_space<vmem>>, vector<1x2x32xf32>,
    %553 = arith.truncf %511 : vector<2x32xf32> to vector<2x32xbf16>
    %cst_188 = arith.constant dense<0.000000e+00> : vector<2x32xf32>
    %554 = tpu.matmul %553, %4, %cst_188 {dimension_numbers = #tpu.dot_dimension_numbers<[1], [0], [0], [1], [0, 0, 1, 1], [], []>} : vector<2x32xbf16>, vector<32x32xbf16>, vector<2x32xf32> -> vector<2x32xf32>
    %cst_189 = arith.constant dense<0.000000e+00> : vector<2x32xf32>
    %555 = tpu.matmul %553, %6, %cst_189 {dimension_numbers = #tpu.dot_dimension_numbers<[1], [0], [0], [1], [0, 0, 1, 1], [], []>} : vector<2x32xbf16>, vector<32x32xbf16>, vector<2x32xf32> -> vector<2x32xf32>
    %cst_190 = arith.constant dense<0.000000e+00> : vector<2x32xf32>
    %556 = tpu.matmul %553, %8, %cst_190 {dimension_numbers = #tpu.dot_dimension_numbers<[1], [0], [0], [1], [0, 0, 1, 1], [], []>} : vector<2x32xbf16>, vector<32x32xbf16>, vector<2x32xf32> -> vector<2x32xf32>
    %c7_191 = arith.constant 7 : index
    %c0_192 = arith.constant 0 : index
    %c0_193 = arith.constant 0 : index
    %c0_194 = arith.constant 0 : index
    %557 = vector.load %arg1[%c7_191, %c0_192, %c0_193, %c0_194] : memref<8x3x2x32xbf16, #tpu.memory_space<vmem>>, vector<1x3x2x32xbf16>
    %558 = vector.shape_cast %557 : vector<1x3x2x32xbf16> to vector<3x2x32xbf16>
    %559 = vector.extract_strided_slice %558 {offsets = [0, 0, 0], sizes = [1, 2, 32], strides = [1, 1, 1]} : vector<3x2x32xbf16> to vector<1x2x32xbf16>
    %560 = vector.shape_cast %559 : vector<1x2x32xbf16> to vector<2x32xbf16>
    %561 = arith.extf %560 : vector<2x32xbf16> to vector<2x32xf32>
    %562 = arith.addf %561, %554 : vector<2x32xf32>
    %563 = arith.negf %562 : vector<2x32xf32>
    %564 = math.exp %563 : vector<2x32xf32>
    %cst_195 = arith.constant 1.000000e+00 : f32
    %565 = vector.broadcast %cst_195 : f32 to vector<2x32xf32>
    %566 = arith.addf %565, %564 : vector<2x32xf32>
    %567 = arith.divf %565, %566 : vector<2x32xf32>
    %568 = vector.extract_strided_slice %558 {offsets = [1, 0, 0], sizes = [1, 2, 32], strides = [1, 1, 1]} : vector<3x2x32xbf16> to vector<1x2x32xbf16>
    %569 = vector.shape_cast %568 : vector<1x2x32xbf16> to vector<2x32xbf16>
    %570 = arith.extf %569 : vector<2x32xbf16> to vector<2x32xf32>
    %571 = arith.addf %570, %555 : vector<2x32xf32>
    %572 = arith.negf %571 : vector<2x32xf32>
    %573 = math.exp %572 : vector<2x32xf32>
    %cst_196 = arith.constant 1.000000e+00 : f32
    %574 = vector.broadcast %cst_196 : f32 to vector<2x32xf32>
    %575 = arith.addf %574, %573 : vector<2x32xf32>
    %576 = arith.divf %574, %575 : vector<2x32xf32>
    %577 = vector.extract_strided_slice %558 {offsets = [2, 0, 0], sizes = [1, 2, 32], strides = [1, 1, 1]} : vector<3x2x32xbf16> to vector<1x2x32xbf16>
    %578 = vector.shape_cast %577 : vector<1x2x32xbf16> to vector<2x32xbf16>
    %579 = arith.extf %578 : vector<2x32xbf16> to vector<2x32xf32>
    %580 = vector.broadcast %15 : vector<1x32xf32> to vector<2x32xf32>
    %581 = arith.addf %556, %580 : vector<2x32xf32>
    %582 = arith.mulf %567, %581 : vector<2x32xf32>
    %583 = arith.addf %579, %582 : vector<2x32xf32>
    %584 = math.tanh %583 : vector<2x32xf32>
    %585 = arith.subf %511, %584 : vector<2x32xf32>
    %586 = arith.mulf %576, %585 : vector<2x32xf32>
    %587 = arith.addf %584, %586 : vector<2x32xf32>
    %c7_197 = arith.constant 7 : index
    %c0_198 = arith.constant 0 : index
    %c0_199 = arith.constant 0 : index
    %588 = vector.load %arg7[%c7_197, %c0_198, %c0_199] : memref<8x2x32xf32, #tpu.memory_space<vmem>>, vector<1x2x32xf32>
    %589 = vector.shape_cast %588 : vector<1x2x32xf32> to vector<2x32xf32>
    %590 = vector.shape_cast %587 : vector<2x32xf32> to vector<1x2x32xf32>
    tpu.vector_store %arg7[%c7_197, %c0_198, %c0_199], %590 {strides = array<i32>} : memref<8x2x32xf32, #tpu.memory_space<vmem>>, vector<1x2x32xf32>,
    %591 = arith.truncf %549 : vector<2x32xf32> to vector<2x32xbf16>
    %cst_200 = arith.constant dense<0.000000e+00> : vector<2x32xf32>
    %592 = tpu.matmul %591, %10, %cst_200 {dimension_numbers = #tpu.dot_dimension_numbers<[1], [0], [0], [1], [0, 0, 1, 1], [], []>} : vector<2x32xbf16>, vector<32x32xbf16>, vector<2x32xf32> -> vector<2x32xf32>
    %cst_201 = arith.constant dense<0.000000e+00> : vector<2x32xf32>
    %593 = tpu.matmul %591, %12, %cst_201 {dimension_numbers = #tpu.dot_dimension_numbers<[1], [0], [0], [1], [0, 0, 1, 1], [], []>} : vector<2x32xbf16>, vector<32x32xbf16>, vector<2x32xf32> -> vector<2x32xf32>
    %cst_202 = arith.constant dense<0.000000e+00> : vector<2x32xf32>
    %594 = tpu.matmul %591, %14, %cst_202 {dimension_numbers = #tpu.dot_dimension_numbers<[1], [0], [0], [1], [0, 0, 1, 1], [], []>} : vector<2x32xbf16>, vector<32x32xbf16>, vector<2x32xf32> -> vector<2x32xf32>
    %c0_203 = arith.constant 0 : index
    %c0_204 = arith.constant 0 : index
    %c0_205 = arith.constant 0 : index
    %c0_206 = arith.constant 0 : index
    %595 = vector.load %arg4[%c0_203, %c0_204, %c0_205, %c0_206] : memref<8x3x2x32xbf16, #tpu.memory_space<vmem>>, vector<1x3x2x32xbf16>
    %596 = vector.shape_cast %595 : vector<1x3x2x32xbf16> to vector<3x2x32xbf16>
    %597 = vector.extract_strided_slice %596 {offsets = [0, 0, 0], sizes = [1, 2, 32], strides = [1, 1, 1]} : vector<3x2x32xbf16> to vector<1x2x32xbf16>
    %598 = vector.shape_cast %597 : vector<1x2x32xbf16> to vector<2x32xbf16>
    %599 = arith.extf %598 : vector<2x32xbf16> to vector<2x32xf32>
    %600 = arith.addf %599, %592 : vector<2x32xf32>
    %601 = arith.negf %600 : vector<2x32xf32>
    %602 = math.exp %601 : vector<2x32xf32>
    %cst_207 = arith.constant 1.000000e+00 : f32
    %603 = vector.broadcast %cst_207 : f32 to vector<2x32xf32>
    %604 = arith.addf %603, %602 : vector<2x32xf32>
    %605 = arith.divf %603, %604 : vector<2x32xf32>
    %606 = vector.extract_strided_slice %596 {offsets = [1, 0, 0], sizes = [1, 2, 32], strides = [1, 1, 1]} : vector<3x2x32xbf16> to vector<1x2x32xbf16>
    %607 = vector.shape_cast %606 : vector<1x2x32xbf16> to vector<2x32xbf16>
    %608 = arith.extf %607 : vector<2x32xbf16> to vector<2x32xf32>
    %609 = arith.addf %608, %593 : vector<2x32xf32>
    %610 = arith.negf %609 : vector<2x32xf32>
    %611 = math.exp %610 : vector<2x32xf32>
    %cst_208 = arith.constant 1.000000e+00 : f32
    %612 = vector.broadcast %cst_208 : f32 to vector<2x32xf32>
    %613 = arith.addf %612, %611 : vector<2x32xf32>
    %614 = arith.divf %612, %613 : vector<2x32xf32>
    %615 = vector.extract_strided_slice %596 {offsets = [2, 0, 0], sizes = [1, 2, 32], strides = [1, 1, 1]} : vector<3x2x32xbf16> to vector<1x2x32xbf16>
    %616 = vector.shape_cast %615 : vector<1x2x32xbf16> to vector<2x32xbf16>
    %617 = arith.extf %616 : vector<2x32xbf16> to vector<2x32xf32>
    %618 = vector.broadcast %16 : vector<1x32xf32> to vector<2x32xf32>
    %619 = arith.addf %594, %618 : vector<2x32xf32>
    %620 = arith.mulf %605, %619 : vector<2x32xf32>
    %621 = arith.addf %617, %620 : vector<2x32xf32>
    %622 = math.tanh %621 : vector<2x32xf32>
    %623 = arith.subf %549, %622 : vector<2x32xf32>
    %624 = arith.mulf %614, %623 : vector<2x32xf32>
    %625 = arith.addf %622, %624 : vector<2x32xf32>
    %c0_209 = arith.constant 0 : index
    %c0_210 = arith.constant 0 : index
    %c0_211 = arith.constant 0 : index
    %626 = vector.load %arg8[%c0_209, %c0_210, %c0_211] : memref<8x2x32xf32, #tpu.memory_space<vmem>>, vector<1x2x32xf32>
    %627 = vector.shape_cast %626 : vector<1x2x32xf32> to vector<2x32xf32>
    %628 = vector.shape_cast %625 : vector<2x32xf32> to vector<1x2x32xf32>
    tpu.vector_store %arg8[%c0_209, %c0_210, %c0_211], %628 {strides = array<i32>} : memref<8x2x32xf32, #tpu.memory_space<vmem>>, vector<1x2x32xf32>,
    %c0_212 = arith.constant 0 : index
    %c0_213 = arith.constant 0 : index
    %c0_214 = arith.constant 0 : index
    %629 = vector.load %arg9[%c0_212, %c0_213, %c0_214] : memref<2x2x32xf32, #tpu.memory_space<vmem>>, vector<1x2x32xf32>
    %630 = vector.shape_cast %629 : vector<1x2x32xf32> to vector<2x32xf32>
    %631 = vector.shape_cast %587 : vector<2x32xf32> to vector<1x2x32xf32>
    tpu.vector_store %arg9[%c0_212, %c0_213, %c0_214], %631 {strides = array<i32>} : memref<2x2x32xf32, #tpu.memory_space<vmem>>, vector<1x2x32xf32>,
    %c1_215 = arith.constant 1 : index
    %c0_216 = arith.constant 0 : index
    %c0_217 = arith.constant 0 : index
    %632 = vector.load %arg9[%c1_215, %c0_216, %c0_217] : memref<2x2x32xf32, #tpu.memory_space<vmem>>, vector<1x2x32xf32>
    %633 = vector.shape_cast %632 : vector<1x2x32xf32> to vector<2x32xf32>
    %634 = vector.shape_cast %625 : vector<2x32xf32> to vector<1x2x32xf32>
    tpu.vector_store %arg9[%c1_215, %c0_216, %c0_217], %634 {strides = array<i32>} : memref<2x2x32xf32, #tpu.memory_space<vmem>>, vector<1x2x32xf32>,
    return
  }
  func.func @transform_0(%arg0: i32) -> (i32, i32, i32, i32) {
    %c0_i32 = arith.constant 0 : i32
    %c0_i32_0 = arith.constant 0 : i32
    %c0_i32_1 = arith.constant 0 : i32
    %c0_i32_2 = arith.constant 0 : i32
    return %arg0, %c0_i32, %c0_i32_0, %c0_i32_1 : i32, i32, i32, i32
  }
  func.func @transform_1(%arg0: i32) -> (i32, i32, i32) {
    %c0_i32 = arith.constant 0 : i32
    %c0_i32_0 = arith.constant 0 : i32
    %c0_i32_1 = arith.constant 0 : i32
    %c0_i32_2 = arith.constant 0 : i32
    return %c0_i32, %c0_i32_0, %c0_i32_1 : i32, i32, i32
  }
  func.func @transform_2(%arg0: i32) -> (i32, i32) {
    %c0_i32 = arith.constant 0 : i32
    %c0_i32_0 = arith.constant 0 : i32
    %c0_i32_1 = arith.constant 0 : i32
    return %c0_i32, %c0_i32_0 : i32, i32
  }
  func.func @transform_3(%arg0: i32) -> (i32, i32, i32, i32) {
    %c0_i32 = arith.constant 0 : i32
    %0 = arith.subi %c0_i32, %arg0 : i32
    %c0_i32_0 = arith.constant 0 : i32
    %c0_i32_1 = arith.constant 0 : i32
    %c0_i32_2 = arith.constant 0 : i32
    %c0_i32_3 = arith.constant 0 : i32
    return %0, %c0_i32_0, %c0_i32_1, %c0_i32_2 : i32, i32, i32, i32
  }
  func.func @transform_4(%arg0: i32) -> (i32, i32, i32) {
    %c0_i32 = arith.constant 0 : i32
    %c0_i32_0 = arith.constant 0 : i32
    %c0_i32_1 = arith.constant 0 : i32
    %c0_i32_2 = arith.constant 0 : i32
    return %c0_i32, %c0_i32_0, %c0_i32_1 : i32, i32, i32
  }
  func.func @transform_5(%arg0: i32) -> (i32, i32) {
    %c0_i32 = arith.constant 0 : i32
    %c0_i32_0 = arith.constant 0 : i32
    %c0_i32_1 = arith.constant 0 : i32
    return %c0_i32, %c0_i32_0 : i32, i32
  }
  func.func @transform_6(%arg0: i32) -> (i32, i32, i32) {
    %c0_i32 = arith.constant 0 : i32
    %c0_i32_0 = arith.constant 0 : i32
    %c0_i32_1 = arith.constant 0 : i32
    return %arg0, %c0_i32, %c0_i32_0 : i32, i32, i32
  }
  func.func @transform_7(%arg0: i32) -> (i32, i32, i32) {
    %c0_i32 = arith.constant 0 : i32
    %0 = arith.subi %c0_i32, %arg0 : i32
    %c0_i32_0 = arith.constant 0 : i32
    %c0_i32_1 = arith.constant 0 : i32
    %c0_i32_2 = arith.constant 0 : i32
    return %0, %c0_i32_0, %c0_i32_1 : i32, i32, i32
  }
}

</mosaic_0001>

<llo_original>
// kernel: gru_pt_forward.2
$region0: #{gru_pt_forward.2}
  #allocation0 [shape = 'u32[]', space=smem, size = 0x4, offset = 0x4, fixed_abs, tag = 'smem constant byte address 0x4 - core index']
  #allocation1 [shape = 'u32[72,128]{1,0:T(1,128)}', space=vmem, size = 0x9000, scoped, tag = 'internal scratch']
  #allocation2 [shape = 'f32[2,2,32]{2,1,0:T(2,128)}', space=vmem, size = 0x800, scoped, tag = 'scratch operand']
  %s0 = inlined_call_operand.vmem [shape: bf16[8,3,2,32], index: 0, kind: input, shape index: {}]
  %s1 = inlined_call_operand.vmem [shape: bf16[3,32,32], index: 1, kind: input, shape index: {}]
  %s2 = inlined_call_operand.vmem [shape: f32[1,32], index: 2, kind: input, shape index: {}]
  %s3 = inlined_call_operand.vmem [shape: bf16[8,3,2,32], index: 3, kind: input, shape index: {}]
  %s4 = inlined_call_operand.vmem [shape: bf16[3,32,32], index: 4, kind: input, shape index: {}]
  %s5 = inlined_call_operand.vmem [shape: f32[1,32], index: 5, kind: input, shape index: {}]
  %s6 = inlined_call_operand.vmem [shape: f32[8,2,32], index: 6, kind: output, shape index: {0}]
  %s7 = inlined_call_operand.vmem [shape: f32[8,2,32], index: 7, kind: output, shape index: {1}]
  %8 = xla_tuple %s6, %s7
  %s9 = sld [smem:[#allocation0]]
  $region46: #{gru_pt_forward.2} parent=0
    _
  %s11 = ssub.s32 1, %s9
  %s12 = scalar_select 0, %s11, %s9
  // Predicated region
  $region2: #{gru_pt_forward.2} parent=0 // pred_check
    _
  $region3: #{gru_pt_forward.2} parent=0 // pred_check_branch
    %14 = sbr.rel (0) target = $region5
  $region4: #{gru_pt_forward.2} parent=0 // pred_region
    _
  $region5: #{gru_pt_forward.2} parent=0 // pred_fallthru
    _
  // Predicated region
  $region6: #{gru_pt_forward.2} parent=0 // pred_check
    _
  $region7: #{gru_pt_forward.2} parent=0 // pred_check_branch
    %16 = sbr.rel (0) target = $region9
  $region8: #{gru_pt_forward.2} parent=0 // pred_region
    _
  $region9: #{gru_pt_forward.2} parent=0 // pred_fallthru
    _
  // Predicated region
  $region10: #{gru_pt_forward.2} parent=0 // pred_check
    _
  $region11: #{gru_pt_forward.2} parent=0 // pred_check_branch
    %18 = sbr.rel (0) target = $region13
  $region12: #{gru_pt_forward.2} parent=0 // pred_region
    _
  $region13: #{gru_pt_forward.2} parent=0 // pred_fallthru
    _
  // Predicated region
  $region14: #{gru_pt_forward.2} parent=0 // pred_check
    _
  $region15: #{gru_pt_forward.2} parent=0 // pred_check_branch
    %20 = sbr.rel (0) target = $region17
  $region16: #{gru_pt_forward.2} parent=0 // pred_region
    %s21 = ssub.s32 0, 0
    %s22 = smul.u32 8, %s21
    %p23 = scmp.lt.s32.totalorder %s22, 7
    %s24 = scalar_select %p23, %s22, 7
    %s25 = smul.addr %s24, 3
    %s26 = scalar_lea.vmem %s3, %s25
    %s27 = ssub.s32 0, 0
    %s28 = smul.u32 8, %s27
  $region17: #{gru_pt_forward.2} parent=0 // pred_fallthru
    _
  // Predicated region
  $region18: #{gru_pt_forward.2} parent=0 // pred_check
    _
  $region19: #{gru_pt_forward.2} parent=0 // pred_check_branch
    %30 = sbr.rel (0) target = $region21
  $region20: #{gru_pt_forward.2} parent=0 // pred_region
    _
  $region21: #{gru_pt_forward.2} parent=0 // pred_fallthru
    _
  // Predicated region
  $region22: #{gru_pt_forward.2} parent=0 // pred_check
    _
  $region23: #{gru_pt_forward.2} parent=0 // pred_check_branch
    %32 = sbr.rel (0) target = $region25
  $region24: #{gru_pt_forward.2} parent=0 // pred_region
    _
  $region25: #{gru_pt_forward.2} parent=0 // pred_fallthru
    _
  %s33 = ssub.s32 0, 0
  %s34 = smul.u32 8, %s33
  %p35 = scmp.lt.s32.totalorder %s34, 7
  %s36 = scalar_select %p35, %s34, 7
  %s37 = smul.addr %s36, 3
  %s38 = scalar_lea.vmem %s3, %s37
  %s39 = ssub.s32 0, 0
  %s40 = smul.u32 8, %s39
  %p41 = scmp.lt.s32.totalorder %s40, 7
  %s42 = scalar_select %p41, %s40, 7
  %s43 = smul.addr %s42, 2
  %s44 = scalar_lea.vmem %s7, %s43
  %s45 = ssub.s32 0, 0
  %s46 = smul.u32 8, %s45
  %p47 = scmp.lt.s32.totalorder %s46, 7
  %s48 = scalar_select %p47, %s46, 7
  %s49 = smul.addr %s48, 3
  %s50 = scalar_lea.vmem %s3, %s49
  %s51 = ssub.s32 0, 0
  %s52 = smul.u32 8, %s51
  %s53 = ssub.s32 0, 0
  %s54 = smul.u32 8, %s53
  %p55 = scmp.lt.s32.totalorder %s54, 7
  %s56 = scalar_select %p55, %s54, 7
  %s57 = smul.addr %s56, 2
  %s58 = scalar_lea.vmem %s7, %s57
  %s59 = ssub.s32 0, 0
  %s60 = smul.u32 8, %s59
  %p62 = scmp.eq.s32.totalorder 0, 0
  // Predicated region
  $region26: #{gru_pt_forward.2} parent=0 // pred_check
    %p63 = pneg %p62
  $region27: #{gru_pt_forward.2} parent=0 // pred_check_branch
    %65 = sbr.rel (%p63) target = $region29
  $region28: #{gru_pt_forward.2} parent=0 // pred_region
    %vm66 = vcmask 254976
    %67 = vst.msk [vmem:[#allocation2] sm:$0x3] %vm66, 0.0
    %68 = vst.msk [vmem:[#allocation2 + $0x2] sm:$0x3] %vm66, 0.0
  $region29: #{gru_pt_forward.2} parent=0 // pred_fallthru
    _
  %v69 = vld [vmem:[%s1] sm:$0xf]
  %v70 = vld [vmem:[%s1 + $0x4] sm:$0xf]
  %v71 = vld [vmem:[%s1 + $0x8] sm:$0xf]
  %v72 = vld [vmem:[%s1 + $0xc] sm:$0xf]
  %s73 = scalar_lea.vmem %s1, 16
  %v74 = vld [vmem:[%s73] sm:$0xf]
  %v75 = vld [vmem:[%s73 + $0x4] sm:$0xf]
  %v76 = vld [vmem:[%s73 + $0x8] sm:$0xf]
  %v77 = vld [vmem:[%s73 + $0xc] sm:$0xf]
  %s78 = scalar_lea.vmem %s1, 32
  %v79 = vld [vmem:[%s78] sm:$0xf]
  %v80 = vld [vmem:[%s78 + $0x4] sm:$0xf]
  %v81 = vld [vmem:[%s78 + $0x8] sm:$0xf]
  %v82 = vld [vmem:[%s78 + $0xc] sm:$0xf]
  %v83 = vld [vmem:[%s4] sm:$0xf]
  %v84 = vld [vmem:[%s4 + $0x4] sm:$0xf]
  %v85 = vld [vmem:[%s4 + $0x8] sm:$0xf]
  %v86 = vld [vmem:[%s4 + $0xc] sm:$0xf]
  %s87 = scalar_lea.vmem %s4, 16
  %v88 = vld [vmem:[%s87] sm:$0xf]
  %v89 = vld [vmem:[%s87 + $0x4] sm:$0xf]
  %v90 = vld [vmem:[%s87 + $0x8] sm:$0xf]
  %v91 = vld [vmem:[%s87 + $0xc] sm:$0xf]
  %s92 = scalar_lea.vmem %s4, 32
  %v93 = vld [vmem:[%s92] sm:$0xf]
  %v94 = vld [vmem:[%s92 + $0x4] sm:$0xf]
  %v95 = vld [vmem:[%s92 + $0x8] sm:$0xf]
  %v96 = vld [vmem:[%s92 + $0xc] sm:$0xf]
  %v97 = vld [vmem:[%s2] sm:$0x1]
  %v98 = vld [vmem:[%s5] sm:$0x1]
  %v99 = vld [vmem:[#allocation2] sm:$0x3]
  %s100 = scalar_lea.vmem [#allocation2], 2
  %v101 = vld [vmem:[%s100] sm:$0x3]
  %v102 = vpack.c.bf16 %v99, %v99
  %v107 = vunpack.c.l.b16 %v69
  %v108 = vunpack.c.l.b16 %v70
  %v109 = vunpack.c.l.b16 %v71
  %v110 = vunpack.c.l.b16 %v72
  %v111 = vpack.c.b16 %v108, %v107
  %v112 = vpack.c.b16 %v110, %v109
  %vm115 = vcmask 261120
  %v117 = vsel %vm115, %v102, 0
  %119 = vmatpush.bf16.msra.mxu0 0
  %120 = vmatpush.bf16.msra.mxu0 0
  %121 = vmatpush.bf16.msra.mxu0 0
  %122 = vmatpush.bf16.msra.mxu0 0
  %123 = vmatpush.bf16.msra.mxu0 0
  %124 = vmatpush.bf16.msra.mxu0 0
  %125 = vmatpush.bf16.msra.mxu0 %v112
  %126 = vmatpush.bf16.msra.mxu0 %v111
  %127 = vmatmul.bf16.gmra.mxu0 %v117
  %v128 = vpop.f32.mrf.mxu0
  %v129 = vadd.f32 0.0, %v128
  %v130 = vpop.f32.mrf.mxu0
  %131 = vdwg.mxu0
  %v136 = vunpack.c.l.b16 %v74
  %v137 = vunpack.c.l.b16 %v75
  %v138 = vunpack.c.l.b16 %v76
  %v139 = vunpack.c.l.b16 %v77
  %v140 = vpack.c.b16 %v137, %v136
  %v141 = vpack.c.b16 %v139, %v138
  %144 = vmatpush.bf16.msra.mxu0 0
  %145 = vmatpush.bf16.msra.mxu0 0
  %146 = vmatpush.bf16.msra.mxu0 0
  %147 = vmatpush.bf16.msra.mxu0 0
  %148 = vmatpush.bf16.msra.mxu0 0
  %149 = vmatpush.bf16.msra.mxu0 0
  %150 = vmatpush.bf16.msra.mxu0 %v141
  %151 = vmatpush.bf16.msra.mxu0 %v140
  %152 = vmatmul.bf16.gmra.mxu0 %v117
  %v153 = vpop.f32.mrf.mxu0
  %v154 = vadd.f32 0.0, %v153
  %v155 = vpop.f32.mrf.mxu0
  %156 = vdwg.mxu0
  %v157 = vld [vmem:[%s0] sm:$0x1]
  %v158 = vld [vmem:[%s0 + $0x1] sm:$0x1]
  %v159 = vld [vmem:[%s0 + $0x2] sm:$0x1]
  %v160 = vunpack.c.l.bf16 %v157
  %v161 = vadd.f32 %v160, %v129
  %v162 = vxor.u32 %v161, 2147483648
  %v163 = vmul.f32 %v162, 1.442695
  %v164 = vpow.pop %v163
  %v165 = vadd.f32 %v164, 1.0
  %v166 = vrcp.pop %v165
  %v167 = vmul.f32 %v165, %v166
  %v168 = vsub.f32 1.0, %v167
  %v169 = vmul.f32 %v166, %v168
  %v170 = vadd.f32 %v166, %v169
  %vm171 = vweird.f32 %v165
  %vm172 = vweird.f32 %v166
  %vm173 = vmor %vm171, %vm172
  %v174 = vsel %vm173, %v166, %v170
  %v175 = vand.u32 2147483647, %v165
  %vm176 = vcmp.eq.f32.partialorder %v175, 8.507059e+37
  %v177 = vand.u32 %v165, 2147483648
  %v178 = vor.u32 1.1754944e-38, %v177
  %v179 = vsel %vm176, %v178, %v174
  %v180 = vmul.f32 1.0, %v179
  %v181 = vunpack.c.l.bf16 %v158
  %v182 = vadd.f32 %v181, %v154
  %v183 = vxor.u32 %v182, 2147483648
  %v184 = vmul.f32 %v183, 1.442695
  %v185 = vpow.pop %v184
  %v186 = vadd.f32 %v185, 1.0
  %v187 = vrcp.pop %v186
  %v188 = vmul.f32 %v186, %v187
  %v189 = vsub.f32 1.0, %v188
  %v190 = vmul.f32 %v187, %v189
  %v191 = vadd.f32 %v187, %v190
  %vm192 = vweird.f32 %v186
  %vm193 = vweird.f32 %v187
  %vm194 = vmor %vm192, %vm193
  %v195 = vsel %vm194, %v187, %v191
  %v196 = vand.u32 2147483647, %v186
  %vm197 = vcmp.eq.f32.partialorder %v196, 8.507059e+37
  %v198 = vand.u32 %v186, 2147483648
  %v199 = vor.u32 1.1754944e-38, %v198
  %v200 = vsel %vm197, %v199, %v195
  %v201 = vmul.f32 1.0, %v200
  %v202 = vunpack.c.l.bf16 %v159
  %v204 = vperm.slane %v97, 0
  %v210 = vunpack.c.l.b16 %v79
  %v211 = vunpack.c.l.b16 %v80
  %v212 = vunpack.c.l.b16 %v81
  %v213 = vunpack.c.l.b16 %v82
  %v214 = vpack.c.b16 %v211, %v210
  %v215 = vpack.c.b16 %v213, %v212
  %218 = vmatpush.bf16.msra.mxu0 0
  %219 = vmatpush.bf16.msra.mxu0 0
  %220 = vmatpush.bf16.msra.mxu0 0
  %221 = vmatpush.bf16.msra.mxu0 0
  %222 = vmatpush.bf16.msra.mxu0 0
  %223 = vmatpush.bf16.msra.mxu0 0
  %224 = vmatpush.bf16.msra.mxu0 %v215
  %225 = vmatpush.bf16.msra.mxu0 %v214
  %226 = vmatmul.bf16.gmra.mxu0 %v117
  %v227 = vpop.f32.mrf.mxu0
  %v228 = vadd.f32 %v204, %v227
  %v229 = vpop.f32.mrf.mxu0
  %230 = vdwg.mxu0
  %v231 = vmul.f32 %v180, %v228
  %v232 = vadd.f32 %v202, %v231
  %v233 = vtanh.pop %v232
  %v234 = vsub.f32 %v99, %v233
  %v235 = vmul.f32 %v201, %v234
  %v236 = vadd.f32 %v233, %v235
  %vm237 = vcmask 254976
  %238 = vst.msk [vmem:[%s6] sm:$0x3] %vm237, %v236
  %v239 = vpack.c.bf16 %v101, %v101
  %v244 = vunpack.c.l.b16 %v83
  %v245 = vunpack.c.l.b16 %v84
  %v246 = vunpack.c.l.b16 %v85
  %v247 = vunpack.c.l.b16 %v86
  %v248 = vpack.c.b16 %v245, %v244
  %v249 = vpack.c.b16 %v247, %v246
  %v253 = vsel %vm115, %v239, 0
  %255 = vmatpush.bf16.msra.mxu0 0
  %256 = vmatpush.bf16.msra.mxu0 0
  %257 = vmatpush.bf16.msra.mxu0 0
  %258 = vmatpush.bf16.msra.mxu0 0
  %259 = vmatpush.bf16.msra.mxu0 0
  %260 = vmatpush.bf16.msra.mxu0 0
  %261 = vmatpush.bf16.msra.mxu0 %v249
  %262 = vmatpush.bf16.msra.mxu0 %v248
  %263 = vmatmul.bf16.gmra.mxu0 %v253
  %v264 = vpop.f32.mrf.mxu0
  %v265 = vadd.f32 0.0, %v264
  %v266 = vpop.f32.mrf.mxu0
  %267 = vdwg.mxu0
  %v272 = vunpack.c.l.b16 %v88
  %v273 = vunpack.c.l.b16 %v89
  %v274 = vunpack.c.l.b16 %v90
  %v275 = vunpack.c.l.b16 %v91
  %v276 = vpack.c.b16 %v273, %v272
  %v277 = vpack.c.b16 %v275, %v274
  %280 = vmatpush.bf16.msra.mxu0 0
  %281 = vmatpush.bf16.msra.mxu0 0
  %282 = vmatpush.bf16.msra.mxu0 0
  %283 = vmatpush.bf16.msra.mxu0 0
  %284 = vmatpush.bf16.msra.mxu0 0
  %285 = vmatpush.bf16.msra.mxu0 0
  %286 = vmatpush.bf16.msra.mxu0 %v277
  %287 = vmatpush.bf16.msra.mxu0 %v276
  %288 = vmatmul.bf16.gmra.mxu0 %v253
  %v289 = vpop.f32.mrf.mxu0
  %v290 = vadd.f32 0.0, %v289
  %v291 = vpop.f32.mrf.mxu0
  %292 = vdwg.mxu0
  %s293 = scalar_lea.vmem %s50, 21
  %v294 = vld [vmem:[%s293] sm:$0x1]
  %v295 = vld [vmem:[%s293 + $0x1] sm:$0x1]
  %v296 = vld [vmem:[%s293 + $0x2] sm:$0x1]
  %v297 = vunpack.c.l.bf16 %v294
  %v298 = vadd.f32 %v297, %v265
  %v299 = vxor.u32 %v298, 2147483648
  %v300 = vmul.f32 %v299, 1.442695
  %v301 = vpow.pop %v300
  %v302 = vadd.f32 %v301, 1.0
  %v303 = vrcp.pop %v302
  %v304 = vmul.f32 %v302, %v303
  %v305 = vsub.f32 1.0, %v304
  %v306 = vmul.f32 %v303, %v305
  %v307 = vadd.f32 %v303, %v306
  %vm308 = vweird.f32 %v302
  %vm309 = vweird.f32 %v303
  %vm310 = vmor %vm308, %vm309
  %v311 = vsel %vm310, %v303, %v307
  %v312 = vand.u32 2147483647, %v302
  %vm313 = vcmp.eq.f32.partialorder %v312, 8.507059e+37
  %v314 = vand.u32 %v302, 2147483648
  %v315 = vor.u32 1.1754944e-38, %v314
  %v316 = vsel %vm313, %v315, %v311
  %v317 = vmul.f32 1.0, %v316
  %v318 = vunpack.c.l.bf16 %v295
  %v319 = vadd.f32 %v318, %v290
  %v320 = vxor.u32 %v319, 2147483648
  %v321 = vmul.f32 %v320, 1.442695
  %v322 = vpow.pop %v321
  %v323 = vadd.f32 %v322, 1.0
  %v324 = vrcp.pop %v323
  %v325 = vmul.f32 %v323, %v324
  %v326 = vsub.f32 1.0, %v325
  %v327 = vmul.f32 %v324, %v326
  %v328 = vadd.f32 %v324, %v327
  %vm329 = vweird.f32 %v323
  %vm330 = vweird.f32 %v324
  %vm331 = vmor %vm329, %vm330
  %v332 = vsel %vm331, %v324, %v328
  %v333 = vand.u32 2147483647, %v323
  %vm334 = vcmp.eq.f32.partialorder %v333, 8.507059e+37
  %v335 = vand.u32 %v323, 2147483648
  %v336 = vor.u32 1.1754944e-38, %v335
  %v337 = vsel %vm334, %v336, %v332
  %v338 = vmul.f32 1.0, %v337
  %v339 = vunpack.c.l.bf16 %v296
  %v341 = vperm.slane %v98, 0
  %v347 = vunpack.c.l.b16 %v93
  %v348 = vunpack.c.l.b16 %v94
  %v349 = vunpack.c.l.b16 %v95
  %v350 = vunpack.c.l.b16 %v96
  %v351 = vpack.c.b16 %v348, %v347
  %v352 = vpack.c.b16 %v350, %v349
  %355 = vmatpush.bf16.msra.mxu0 0
  %356 = vmatpush.bf16.msra.mxu0 0
  %357 = vmatpush.bf16.msra.mxu0 0
  %358 = vmatpush.bf16.msra.mxu0 0
  %359 = vmatpush.bf16.msra.mxu0 0
  %360 = vmatpush.bf16.msra.mxu0 0
  %361 = vmatpush.bf16.msra.mxu0 %v352
  %362 = vmatpush.bf16.msra.mxu0 %v351
  %363 = vmatmul.bf16.gmra.mxu0 %v253
  %v364 = vpop.f32.mrf.mxu0
  %v365 = vadd.f32 %v341, %v364
  %v366 = vpop.f32.mrf.mxu0
  %367 = vdwg.mxu0
  %v368 = vmul.f32 %v317, %v365
  %v369 = vadd.f32 %v339, %v368
  %v370 = vtanh.pop %v369
  %v371 = vsub.f32 %v101, %v370
  %v372 = vmul.f32 %v338, %v371
  %v373 = vadd.f32 %v370, %v372
  %s374 = scalar_lea.vmem %s58, 14
  %375 = vst.msk [vmem:[%s374] sm:$0x3] %vm237, %v373
  %v376 = vpack.c.bf16 %v236, %v236
  %v378 = vsel %vm115, %v376, 0
  %380 = vmatpush.bf16.msra.mxu0 0
  %381 = vmatpush.bf16.msra.mxu0 0
  %382 = vmatpush.bf16.msra.mxu0 0
  %383 = vmatpush.bf16.msra.mxu0 0
  %384 = vmatpush.bf16.msra.mxu0 0
  %385 = vmatpush.bf16.msra.mxu0 0
  %386 = vmatpush.bf16.msra.mxu0 %v112
  %387 = vmatpush.bf16.msra.mxu0 %v111
  %388 = vmatmul.bf16.gmra.mxu0 %v378
  %v389 = vpop.f32.mrf.mxu0
  %v390 = vadd.f32 0.0, %v389
  %v391 = vpop.f32.mrf.mxu0
  %392 = vdwg.mxu0
  %393 = vmatpush.bf16.msra.mxu0 0
  %394 = vmatpush.bf16.msra.mxu0 0
  %395 = vmatpush.bf16.msra.mxu0 0
  %396 = vmatpush.bf16.msra.mxu0 0
  %397 = vmatpush.bf16.msra.mxu0 0
  %398 = vmatpush.bf16.msra.mxu0 0
  %399 = vmatpush.bf16.msra.mxu0 %v141
  %400 = vmatpush.bf16.msra.mxu0 %v140
  %401 = vmatmul.bf16.gmra.mxu0 %v378
  %v402 = vpop.f32.mrf.mxu0
  %v403 = vadd.f32 0.0, %v402
  %v404 = vpop.f32.mrf.mxu0
  %405 = vdwg.mxu0
  %s406 = scalar_lea.vmem %s0, 3
  %v407 = vld [vmem:[%s406] sm:$0x1]
  %v408 = vld [vmem:[%s406 + $0x1] sm:$0x1]
  %v409 = vld [vmem:[%s406 + $0x2] sm:$0x1]
  %v410 = vunpack.c.l.bf16 %v407
  %v411 = vadd.f32 %v410, %v390
  %v412 = vxor.u32 %v411, 2147483648
  %v413 = vmul.f32 %v412, 1.442695
  %v414 = vpow.pop %v413
  %v415 = vadd.f32 %v414, 1.0
  %v416 = vrcp.pop %v415
  %v417 = vmul.f32 %v415, %v416
  %v418 = vsub.f32 1.0, %v417
  %v419 = vmul.f32 %v416, %v418
  %v420 = vadd.f32 %v416, %v419
  %vm421 = vweird.f32 %v415
  %vm422 = vweird.f32 %v416
  %vm423 = vmor %vm421, %vm422
  %v424 = vsel %vm423, %v416, %v420
  %v425 = vand.u32 2147483647, %v415
  %vm426 = vcmp.eq.f32.partialorder %v425, 8.507059e+37
  %v427 = vand.u32 %v415, 2147483648
  %v428 = vor.u32 1.1754944e-38, %v427
  %v429 = vsel %vm426, %v428, %v424
  %v430 = vmul.f32 1.0, %v429
  %v431 = vunpack.c.l.bf16 %v408
  %v432 = vadd.f32 %v431, %v403
  %v433 = vxor.u32 %v432, 2147483648
  %v434 = vmul.f32 %v433, 1.442695
  %v435 = vpow.pop %v434
  %v436 = vadd.f32 %v435, 1.0
  %v437 = vrcp.pop %v436
  %v438 = vmul.f32 %v436, %v437
  %v439 = vsub.f32 1.0, %v438
  %v440 = vmul.f32 %v437, %v439
  %v441 = vadd.f32 %v437, %v440
  %vm442 = vweird.f32 %v436
  %vm443 = vweird.f32 %v437
  %vm444 = vmor %vm442, %vm443
  %v445 = vsel %vm444, %v437, %v441
  %v446 = vand.u32 2147483647, %v436
  %vm447 = vcmp.eq.f32.partialorder %v446, 8.507059e+37
  %v448 = vand.u32 %v436, 2147483648
  %v449 = vor.u32 1.1754944e-38, %v448
  %v450 = vsel %vm447, %v449, %v445
  %v451 = vmul.f32 1.0, %v450
  %v452 = vunpack.c.l.bf16 %v409
  %453 = vmatpush.bf16.msra.mxu0 0
  %454 = vmatpush.bf16.msra.mxu0 0
  %455 = vmatpush.bf16.msra.mxu0 0
  %456 = vmatpush.bf16.msra.mxu0 0
  %457 = vmatpush.bf16.msra.mxu0 0
  %458 = vmatpush.bf16.msra.mxu0 0
  %459 = vmatpush.bf16.msra.mxu0 %v215
  %460 = vmatpush.bf16.msra.mxu0 %v214
  %461 = vmatmul.bf16.gmra.mxu0 %v378
  %v462 = vpop.f32.mrf.mxu0
  %v463 = vadd.f32 %v204, %v462
  %v464 = vpop.f32.mrf.mxu0
  %465 = vdwg.mxu0
  %v466 = vmul.f32 %v430, %v463
  %v467 = vadd.f32 %v452, %v466
  %v468 = vtanh.pop %v467
  %v469 = vsub.f32 %v236, %v468
  %v470 = vmul.f32 %v451, %v469
  %v471 = vadd.f32 %v468, %v470
  %s472 = scalar_lea.vmem %s6, 2
  %473 = vst.msk [vmem:[%s472] sm:$0x3] %vm237, %v471
  %v474 = vpack.c.bf16 %v373, %v373
  %v476 = vsel %vm115, %v474, 0
  %478 = vmatpush.bf16.msra.mxu0 0
  %479 = vmatpush.bf16.msra.mxu0 0
  %480 = vmatpush.bf16.msra.mxu0 0
  %481 = vmatpush.bf16.msra.mxu0 0
  %482 = vmatpush.bf16.msra.mxu0 0
  %483 = vmatpush.bf16.msra.mxu0 0
  %484 = vmatpush.bf16.msra.mxu0 %v249
  %485 = vmatpush.bf16.msra.mxu0 %v248
  %486 = vmatmul.bf16.gmra.mxu0 %v476
  %v487 = vpop.f32.mrf.mxu0
  %v488 = vadd.f32 0.0, %v487
  %v489 = vpop.f32.mrf.mxu0
  %490 = vdwg.mxu0
  %491 = vmatpush.bf16.msra.mxu0 0
  %492 = vmatpush.bf16.msra.mxu0 0
  %493 = vmatpush.bf16.msra.mxu0 0
  %494 = vmatpush.bf16.msra.mxu0 0
  %495 = vmatpush.bf16.msra.mxu0 0
  %496 = vmatpush.bf16.msra.mxu0 0
  %497 = vmatpush.bf16.msra.mxu0 %v277
  %498 = vmatpush.bf16.msra.mxu0 %v276
  %499 = vmatmul.bf16.gmra.mxu0 %v476
  %v500 = vpop.f32.mrf.mxu0
  %v501 = vadd.f32 0.0, %v500
  %v502 = vpop.f32.mrf.mxu0
  %503 = vdwg.mxu0
  %s504 = scalar_lea.vmem %s50, 18
  %v505 = vld [vmem:[%s504] sm:$0x1]
  %v506 = vld [vmem:[%s504 + $0x1] sm:$0x1]
  %v507 = vld [vmem:[%s504 + $0x2] sm:$0x1]
  %v508 = vunpack.c.l.bf16 %v505
  %v509 = vadd.f32 %v508, %v488
  %v510 = vxor.u32 %v509, 2147483648
  %v511 = vmul.f32 %v510, 1.442695
  %v512 = vpow.pop %v511
  %v513 = vadd.f32 %v512, 1.0
  %v514 = vrcp.pop %v513
  %v515 = vmul.f32 %v513, %v514
  %v516 = vsub.f32 1.0, %v515
  %v517 = vmul.f32 %v514, %v516
  %v518 = vadd.f32 %v514, %v517
  %vm519 = vweird.f32 %v513
  %vm520 = vweird.f32 %v514
  %vm521 = vmor %vm519, %vm520
  %v522 = vsel %vm521, %v514, %v518
  %v523 = vand.u32 2147483647, %v513
  %vm524 = vcmp.eq.f32.partialorder %v523, 8.507059e+37
  %v525 = vand.u32 %v513, 2147483648
  %v526 = vor.u32 1.1754944e-38, %v525
  %v527 = vsel %vm524, %v526, %v522
  %v528 = vmul.f32 1.0, %v527
  %v529 = vunpack.c.l.bf16 %v506
  %v530 = vadd.f32 %v529, %v501
  %v531 = vxor.u32 %v530, 2147483648
  %v532 = vmul.f32 %v531, 1.442695
  %v533 = vpow.pop %v532
  %v534 = vadd.f32 %v533, 1.0
  %v535 = vrcp.pop %v534
  %v536 = vmul.f32 %v534, %v535
  %v537 = vsub.f32 1.0, %v536
  %v538 = vmul.f32 %v535, %v537
  %v539 = vadd.f32 %v535, %v538
  %vm540 = vweird.f32 %v534
  %vm541 = vweird.f32 %v535
  %vm542 = vmor %vm540, %vm541
  %v543 = vsel %vm542, %v535, %v539
  %v544 = vand.u32 2147483647, %v534
  %vm545 = vcmp.eq.f32.partialorder %v544, 8.507059e+37
  %v546 = vand.u32 %v534, 2147483648
  %v547 = vor.u32 1.1754944e-38, %v546
  %v548 = vsel %vm545, %v547, %v543
  %v549 = vmul.f32 1.0, %v548
  %v550 = vunpack.c.l.bf16 %v507
  %551 = vmatpush.bf16.msra.mxu0 0
  %552 = vmatpush.bf16.msra.mxu0 0
  %553 = vmatpush.bf16.msra.mxu0 0
  %554 = vmatpush.bf16.msra.mxu0 0
  %555 = vmatpush.bf16.msra.mxu0 0
  %556 = vmatpush.bf16.msra.mxu0 0
  %557 = vmatpush.bf16.msra.mxu0 %v352
  %558 = vmatpush.bf16.msra.mxu0 %v351
  %559 = vmatmul.bf16.gmra.mxu0 %v476
  %v560 = vpop.f32.mrf.mxu0
  %v561 = vadd.f32 %v341, %v560
  %v562 = vpop.f32.mrf.mxu0
  %563 = vdwg.mxu0
  %v564 = vmul.f32 %v528, %v561
  %v565 = vadd.f32 %v550, %v564
  %v566 = vtanh.pop %v565
  %v567 = vsub.f32 %v373, %v566
  %v568 = vmul.f32 %v549, %v567
  %v569 = vadd.f32 %v566, %v568
  %s570 = scalar_lea.vmem %s58, 12
  %571 = vst.msk [vmem:[%s570] sm:$0x3] %vm237, %v569
  %v572 = vpack.c.bf16 %v471, %v471
  %v574 = vsel %vm115, %v572, 0
  %576 = vmatpush.bf16.msra.mxu0 0
  %577 = vmatpush.bf16.msra.mxu0 0
  %578 = vmatpush.bf16.msra.mxu0 0
  %579 = vmatpush.bf16.msra.mxu0 0
  %580 = vmatpush.bf16.msra.mxu0 0
  %581 = vmatpush.bf16.msra.mxu0 0
  %582 = vmatpush.bf16.msra.mxu0 %v112
  %583 = vmatpush.bf16.msra.mxu0 %v111
  %584 = vmatmul.bf16.gmra.mxu0 %v574
  %v585 = vpop.f32.mrf.mxu0
  %v586 = vadd.f32 0.0, %v585
  %v587 = vpop.f32.mrf.mxu0
  %588 = vdwg.mxu0
  %589 = vmatpush.bf16.msra.mxu0 0
  %590 = vmatpush.bf16.msra.mxu0 0
  %591 = vmatpush.bf16.msra.mxu0 0
  %592 = vmatpush.bf16.msra.mxu0 0
  %593 = vmatpush.bf16.msra.mxu0 0
  %594 = vmatpush.bf16.msra.mxu0 0
  %595 = vmatpush.bf16.msra.mxu0 %v141
  %596 = vmatpush.bf16.msra.mxu0 %v140
  %597 = vmatmul.bf16.gmra.mxu0 %v574
  %v598 = vpop.f32.mrf.mxu0
  %v599 = vadd.f32 0.0, %v598
  %v600 = vpop.f32.mrf.mxu0
  %601 = vdwg.mxu0
  %s602 = scalar_lea.vmem %s0, 6
  %v603 = vld [vmem:[%s602] sm:$0x1]
  %v604 = vld [vmem:[%s602 + $0x1] sm:$0x1]
  %v605 = vld [vmem:[%s602 + $0x2] sm:$0x1]
  %v606 = vunpack.c.l.bf16 %v603
  %v607 = vadd.f32 %v606, %v586
  %v608 = vxor.u32 %v607, 2147483648
  %v609 = vmul.f32 %v608, 1.442695
  %v610 = vpow.pop %v609
  %v611 = vadd.f32 %v610, 1.0
  %v612 = vrcp.pop %v611
  %v613 = vmul.f32 %v611, %v612
  %v614 = vsub.f32 1.0, %v613
  %v615 = vmul.f32 %v612, %v614
  %v616 = vadd.f32 %v612, %v615
  %vm617 = vweird.f32 %v611
  %vm618 = vweird.f32 %v612
  %vm619 = vmor %vm617, %vm618
  %v620 = vsel %vm619, %v612, %v616
  %v621 = vand.u32 2147483647, %v611
  %vm622 = vcmp.eq.f32.partialorder %v621, 8.507059e+37
  %v623 = vand.u32 %v611, 2147483648
  %v624 = vor.u32 1.1754944e-38, %v623
  %v625 = vsel %vm622, %v624, %v620
  %v626 = vmul.f32 1.0, %v625
  %v627 = vunpack.c.l.bf16 %v604
  %v628 = vadd.f32 %v627, %v599
  %v629 = vxor.u32 %v628, 2147483648
  %v630 = vmul.f32 %v629, 1.442695
  %v631 = vpow.pop %v630
  %v632 = vadd.f32 %v631, 1.0
  %v633 = vrcp.pop %v632
  %v634 = vmul.f32 %v632, %v633
  %v635 = vsub.f32 1.0, %v634
  %v636 = vmul.f32 %v633, %v635
  %v637 = vadd.f32 %v633, %v636
  %vm638 = vweird.f32 %v632
  %vm639 = vweird.f32 %v633
  %vm640 = vmor %vm638, %vm639
  %v641 = vsel %vm640, %v633, %v637
  %v642 = vand.u32 2147483647, %v632
  %vm643 = vcmp.eq.f32.partialorder %v642, 8.507059e+37
  %v644 = vand.u32 %v632, 2147483648
  %v645 = vor.u32 1.1754944e-38, %v644
  %v646 = vsel %vm643, %v645, %v641
  %v647 = vmul.f32 1.0, %v646
  %v648 = vunpack.c.l.bf16 %v605
  %649 = vmatpush.bf16.msra.mxu0 0
  %650 = vmatpush.bf16.msra.mxu0 0
  %651 = vmatpush.bf16.msra.mxu0 0
  %652 = vmatpush.bf16.msra.mxu0 0
  %653 = vmatpush.bf16.msra.mxu0 0
  %654 = vmatpush.bf16.msra.mxu0 0
  %655 = vmatpush.bf16.msra.mxu0 %v215
  %656 = vmatpush.bf16.msra.mxu0 %v214
  %657 = vmatmul.bf16.gmra.mxu0 %v574
  %v658 = vpop.f32.mrf.mxu0
  %v659 = vadd.f32 %v204, %v658
  %v660 = vpop.f32.mrf.mxu0
  %661 = vdwg.mxu0
  %v662 = vmul.f32 %v626, %v659
  %v663 = vadd.f32 %v648, %v662
  %v664 = vtanh.pop %v663
  %v665 = vsub.f32 %v471, %v664
  %v666 = vmul.f32 %v647, %v665
  %v667 = vadd.f32 %v664, %v666
  %s668 = scalar_lea.vmem %s6, 4
  %669 = vst.msk [vmem:[%s668] sm:$0x3] %vm237, %v667
  %v670 = vpack.c.bf16 %v569, %v569
  %v672 = vsel %vm115, %v670, 0
  %674 = vmatpush.bf16.msra.mxu0 0
  %675 = vmatpush.bf16.msra.mxu0 0
  %676 = vmatpush.bf16.msra.mxu0 0
  %677 = vmatpush.bf16.msra.mxu0 0
  %678 = vmatpush.bf16.msra.mxu0 0
  %679 = vmatpush.bf16.msra.mxu0 0
  %680 = vmatpush.bf16.msra.mxu0 %v249
  %681 = vmatpush.bf16.msra.mxu0 %v248
  %682 = vmatmul.bf16.gmra.mxu0 %v672
  %v683 = vpop.f32.mrf.mxu0
  %v684 = vadd.f32 0.0, %v683
  %v685 = vpop.f32.mrf.mxu0
  %686 = vdwg.mxu0
  %687 = vmatpush.bf16.msra.mxu0 0
  %688 = vmatpush.bf16.msra.mxu0 0
  %689 = vmatpush.bf16.msra.mxu0 0
  %690 = vmatpush.bf16.msra.mxu0 0
  %691 = vmatpush.bf16.msra.mxu0 0
  %692 = vmatpush.bf16.msra.mxu0 0
  %693 = vmatpush.bf16.msra.mxu0 %v277
  %694 = vmatpush.bf16.msra.mxu0 %v276
  %695 = vmatmul.bf16.gmra.mxu0 %v672
  %v696 = vpop.f32.mrf.mxu0
  %v697 = vadd.f32 0.0, %v696
  %v698 = vpop.f32.mrf.mxu0
  %699 = vdwg.mxu0
  %s700 = scalar_lea.vmem %s50, 15
  %v701 = vld [vmem:[%s700] sm:$0x1]
  %v702 = vld [vmem:[%s700 + $0x1] sm:$0x1]
  %v703 = vld [vmem:[%s700 + $0x2] sm:$0x1]
  %v704 = vunpack.c.l.bf16 %v701
  %v705 = vadd.f32 %v704, %v684
  %v706 = vxor.u32 %v705, 2147483648
  %v707 = vmul.f32 %v706, 1.442695
  %v708 = vpow.pop %v707
  %v709 = vadd.f32 %v708, 1.0
  %v710 = vrcp.pop %v709
  %v711 = vmul.f32 %v709, %v710
  %v712 = vsub.f32 1.0, %v711
  %v713 = vmul.f32 %v710, %v712
  %v714 = vadd.f32 %v710, %v713
  %vm715 = vweird.f32 %v709
  %vm716 = vweird.f32 %v710
  %vm717 = vmor %vm715, %vm716
  %v718 = vsel %vm717, %v710, %v714
  %v719 = vand.u32 2147483647, %v709
  %vm720 = vcmp.eq.f32.partialorder %v719, 8.507059e+37
  %v721 = vand.u32 %v709, 2147483648
  %v722 = vor.u32 1.1754944e-38, %v721
  %v723 = vsel %vm720, %v722, %v718
  %v724 = vmul.f32 1.0, %v723
  %v725 = vunpack.c.l.bf16 %v702
  %v726 = vadd.f32 %v725, %v697
  %v727 = vxor.u32 %v726, 2147483648
  %v728 = vmul.f32 %v727, 1.442695
  %v729 = vpow.pop %v728
  %v730 = vadd.f32 %v729, 1.0
  %v731 = vrcp.pop %v730
  %v732 = vmul.f32 %v730, %v731
  %v733 = vsub.f32 1.0, %v732
  %v734 = vmul.f32 %v731, %v733
  %v735 = vadd.f32 %v731, %v734
  %vm736 = vweird.f32 %v730
  %vm737 = vweird.f32 %v731
  %vm738 = vmor %vm736, %vm737
  %v739 = vsel %vm738, %v731, %v735
  %v740 = vand.u32 2147483647, %v730
  %vm741 = vcmp.eq.f32.partialorder %v740, 8.507059e+37
  %v742 = vand.u32 %v730, 2147483648
  %v743 = vor.u32 1.1754944e-38, %v742
  %v744 = vsel %vm741, %v743, %v739
  %v745 = vmul.f32 1.0, %v744
  %v746 = vunpack.c.l.bf16 %v703
  %747 = vmatpush.bf16.msra.mxu0 0
  %748 = vmatpush.bf16.msra.mxu0 0
  %749 = vmatpush.bf16.msra.mxu0 0
  %750 = vmatpush.bf16.msra.mxu0 0
  %751 = vmatpush.bf16.msra.mxu0 0
  %752 = vmatpush.bf16.msra.mxu0 0
  %753 = vmatpush.bf16.msra.mxu0 %v352
  %754 = vmatpush.bf16.msra.mxu0 %v351
  %755 = vmatmul.bf16.gmra.mxu0 %v672
  %v756 = vpop.f32.mrf.mxu0
  %v757 = vadd.f32 %v341, %v756
  %v758 = vpop.f32.mrf.mxu0
  %759 = vdwg.mxu0
  %v760 = vmul.f32 %v724, %v757
  %v761 = vadd.f32 %v746, %v760
  %v762 = vtanh.pop %v761
  %v763 = vsub.f32 %v569, %v762
  %v764 = vmul.f32 %v745, %v763
  %v765 = vadd.f32 %v762, %v764
  %s766 = scalar_lea.vmem %s58, 10
  %767 = vst.msk [vmem:[%s766] sm:$0x3] %vm237, %v765
  %v768 = vpack.c.bf16 %v667, %v667
  %v770 = vsel %vm115, %v768, 0
  %772 = vmatpush.bf16.msra.mxu0 0
  %773 = vmatpush.bf16.msra.mxu0 0
  %774 = vmatpush.bf16.msra.mxu0 0
  %775 = vmatpush.bf16.msra.mxu0 0
  %776 = vmatpush.bf16.msra.mxu0 0
  %777 = vmatpush.bf16.msra.mxu0 0
  %778 = vmatpush.bf16.msra.mxu0 %v112
  %779 = vmatpush.bf16.msra.mxu0 %v111
  %780 = vmatmul.bf16.gmra.mxu0 %v770
  %v781 = vpop.f32.mrf.mxu0
  %v782 = vadd.f32 0.0, %v781
  %v783 = vpop.f32.mrf.mxu0
  %784 = vdwg.mxu0
  %785 = vmatpush.bf16.msra.mxu0 0
  %786 = vmatpush.bf16.msra.mxu0 0
  %787 = vmatpush.bf16.msra.mxu0 0
  %788 = vmatpush.bf16.msra.mxu0 0
  %789 = vmatpush.bf16.msra.mxu0 0
  %790 = vmatpush.bf16.msra.mxu0 0
  %791 = vmatpush.bf16.msra.mxu0 %v141
  %792 = vmatpush.bf16.msra.mxu0 %v140
  %793 = vmatmul.bf16.gmra.mxu0 %v770
  %v794 = vpop.f32.mrf.mxu0
  %v795 = vadd.f32 0.0, %v794
  %v796 = vpop.f32.mrf.mxu0
  %797 = vdwg.mxu0
  %s798 = scalar_lea.vmem %s0, 9
  %v799 = vld [vmem:[%s798] sm:$0x1]
  %v800 = vld [vmem:[%s798 + $0x1] sm:$0x1]
  %v801 = vld [vmem:[%s798 + $0x2] sm:$0x1]
  %v802 = vunpack.c.l.bf16 %v799
  %v803 = vadd.f32 %v802, %v782
  %v804 = vxor.u32 %v803, 2147483648
  %v805 = vmul.f32 %v804, 1.442695
  %v806 = vpow.pop %v805
  %v807 = vadd.f32 %v806, 1.0
  %v808 = vrcp.pop %v807
  %v809 = vmul.f32 %v807, %v808
  %v810 = vsub.f32 1.0, %v809
  %v811 = vmul.f32 %v808, %v810
  %v812 = vadd.f32 %v808, %v811
  %vm813 = vweird.f32 %v807
  %vm814 = vweird.f32 %v808
  %vm815 = vmor %vm813, %vm814
  %v816 = vsel %vm815, %v808, %v812
  %v817 = vand.u32 2147483647, %v807
  %vm818 = vcmp.eq.f32.partialorder %v817, 8.507059e+37
  %v819 = vand.u32 %v807, 2147483648
  %v820 = vor.u32 1.1754944e-38, %v819
  %v821 = vsel %vm818, %v820, %v816
  %v822 = vmul.f32 1.0, %v821
  %v823 = vunpack.c.l.bf16 %v800
  %v824 = vadd.f32 %v823, %v795
  %v825 = vxor.u32 %v824, 2147483648
  %v826 = vmul.f32 %v825, 1.442695
  %v827 = vpow.pop %v826
  %v828 = vadd.f32 %v827, 1.0
  %v829 = vrcp.pop %v828
  %v830 = vmul.f32 %v828, %v829
  %v831 = vsub.f32 1.0, %v830
  %v832 = vmul.f32 %v829, %v831
  %v833 = vadd.f32 %v829, %v832
  %vm834 = vweird.f32 %v828
  %vm835 = vweird.f32 %v829
  %vm836 = vmor %vm834, %vm835
  %v837 = vsel %vm836, %v829, %v833
  %v838 = vand.u32 2147483647, %v828
  %vm839 = vcmp.eq.f32.partialorder %v838, 8.507059e+37
  %v840 = vand.u32 %v828, 2147483648
  %v841 = vor.u32 1.1754944e-38, %v840
  %v842 = vsel %vm839, %v841, %v837
  %v843 = vmul.f32 1.0, %v842
  %v844 = vunpack.c.l.bf16 %v801
  %845 = vmatpush.bf16.msra.mxu0 0
  %846 = vmatpush.bf16.msra.mxu0 0
  %847 = vmatpush.bf16.msra.mxu0 0
  %848 = vmatpush.bf16.msra.mxu0 0
  %849 = vmatpush.bf16.msra.mxu0 0
  %850 = vmatpush.bf16.msra.mxu0 0
  %851 = vmatpush.bf16.msra.mxu0 %v215
  %852 = vmatpush.bf16.msra.mxu0 %v214
  %853 = vmatmul.bf16.gmra.mxu0 %v770
  %v854 = vpop.f32.mrf.mxu0
  %v855 = vadd.f32 %v204, %v854
  %v856 = vpop.f32.mrf.mxu0
  %857 = vdwg.mxu0
  %v858 = vmul.f32 %v822, %v855
  %v859 = vadd.f32 %v844, %v858
  %v860 = vtanh.pop %v859
  %v861 = vsub.f32 %v667, %v860
  %v862 = vmul.f32 %v843, %v861
  %v863 = vadd.f32 %v860, %v862
  %s864 = scalar_lea.vmem %s6, 6
  %865 = vst.msk [vmem:[%s864] sm:$0x3] %vm237, %v863
  %v866 = vpack.c.bf16 %v765, %v765
  %v868 = vsel %vm115, %v866, 0
  %870 = vmatpush.bf16.msra.mxu0 0
  %871 = vmatpush.bf16.msra.mxu0 0
  %872 = vmatpush.bf16.msra.mxu0 0
  %873 = vmatpush.bf16.msra.mxu0 0
  %874 = vmatpush.bf16.msra.mxu0 0
  %875 = vmatpush.bf16.msra.mxu0 0
  %876 = vmatpush.bf16.msra.mxu0 %v249
  %877 = vmatpush.bf16.msra.mxu0 %v248
  %878 = vmatmul.bf16.gmra.mxu0 %v868
  %v879 = vpop.f32.mrf.mxu0
  %v880 = vadd.f32 0.0, %v879
  %v881 = vpop.f32.mrf.mxu0
  %882 = vdwg.mxu0
  %883 = vmatpush.bf16.msra.mxu0 0
  %884 = vmatpush.bf16.msra.mxu0 0
  %885 = vmatpush.bf16.msra.mxu0 0
  %886 = vmatpush.bf16.msra.mxu0 0
  %887 = vmatpush.bf16.msra.mxu0 0
  %888 = vmatpush.bf16.msra.mxu0 0
  %889 = vmatpush.bf16.msra.mxu0 %v277
  %890 = vmatpush.bf16.msra.mxu0 %v276
  %891 = vmatmul.bf16.gmra.mxu0 %v868
  %v892 = vpop.f32.mrf.mxu0
  %v893 = vadd.f32 0.0, %v892
  %v894 = vpop.f32.mrf.mxu0
  %895 = vdwg.mxu0
  %s896 = scalar_lea.vmem %s50, 12
  %v897 = vld [vmem:[%s896] sm:$0x1]
  %v898 = vld [vmem:[%s896 + $0x1] sm:$0x1]
  %v899 = vld [vmem:[%s896 + $0x2] sm:$0x1]
  %v900 = vunpack.c.l.bf16 %v897
  %v901 = vadd.f32 %v900, %v880
  %v902 = vxor.u32 %v901, 2147483648
  %v903 = vmul.f32 %v902, 1.442695
  %v904 = vpow.pop %v903
  %v905 = vadd.f32 %v904, 1.0
  %v906 = vrcp.pop %v905
  %v907 = vmul.f32 %v905, %v906
  %v908 = vsub.f32 1.0, %v907
  %v909 = vmul.f32 %v906, %v908
  %v910 = vadd.f32 %v906, %v909
  %vm911 = vweird.f32 %v905
  %vm912 = vweird.f32 %v906
  %vm913 = vmor %vm911, %vm912
  %v914 = vsel %vm913, %v906, %v910
  %v915 = vand.u32 2147483647, %v905
  %vm916 = vcmp.eq.f32.partialorder %v915, 8.507059e+37
  %v917 = vand.u32 %v905, 2147483648
  %v918 = vor.u32 1.1754944e-38, %v917
  %v919 = vsel %vm916, %v918, %v914
  %v920 = vmul.f32 1.0, %v919
  %v921 = vunpack.c.l.bf16 %v898
  %v922 = vadd.f32 %v921, %v893
  %v923 = vxor.u32 %v922, 2147483648
  %v924 = vmul.f32 %v923, 1.442695
  %v925 = vpow.pop %v924
  %v926 = vadd.f32 %v925, 1.0
  %v927 = vrcp.pop %v926
  %v928 = vmul.f32 %v926, %v927
  %v929 = vsub.f32 1.0, %v928
  %v930 = vmul.f32 %v927, %v929
  %v931 = vadd.f32 %v927, %v930
  %vm932 = vweird.f32 %v926
  %vm933 = vweird.f32 %v927
  %vm934 = vmor %vm932, %vm933
  %v935 = vsel %vm934, %v927, %v931
  %v936 = vand.u32 2147483647, %v926
  %vm937 = vcmp.eq.f32.partialorder %v936, 8.507059e+37
  %v938 = vand.u32 %v926, 2147483648
  %v939 = vor.u32 1.1754944e-38, %v938
  %v940 = vsel %vm937, %v939, %v935
  %v941 = vmul.f32 1.0, %v940
  %v942 = vunpack.c.l.bf16 %v899
  %943 = vmatpush.bf16.msra.mxu0 0
  %944 = vmatpush.bf16.msra.mxu0 0
  %945 = vmatpush.bf16.msra.mxu0 0
  %946 = vmatpush.bf16.msra.mxu0 0
  %947 = vmatpush.bf16.msra.mxu0 0
  %948 = vmatpush.bf16.msra.mxu0 0
  %949 = vmatpush.bf16.msra.mxu0 %v352
  %950 = vmatpush.bf16.msra.mxu0 %v351
  %951 = vmatmul.bf16.gmra.mxu0 %v868
  %v952 = vpop.f32.mrf.mxu0
  %v953 = vadd.f32 %v341, %v952
  %v954 = vpop.f32.mrf.mxu0
  %955 = vdwg.mxu0
  %v956 = vmul.f32 %v920, %v953
  %v957 = vadd.f32 %v942, %v956
  %v958 = vtanh.pop %v957
  %v959 = vsub.f32 %v765, %v958
  %v960 = vmul.f32 %v941, %v959
  %v961 = vadd.f32 %v958, %v960
  %s962 = scalar_lea.vmem %s58, 8
  %963 = vst.msk [vmem:[%s962] sm:$0x3] %vm237, %v961
  %v964 = vpack.c.bf16 %v863, %v863
  %v966 = vsel %vm115, %v964, 0
  %968 = vmatpush.bf16.msra.mxu0 0
  %969 = vmatpush.bf16.msra.mxu0 0
  %970 = vmatpush.bf16.msra.mxu0 0
  %971 = vmatpush.bf16.msra.mxu0 0
  %972 = vmatpush.bf16.msra.mxu0 0
  %973 = vmatpush.bf16.msra.mxu0 0
  %974 = vmatpush.bf16.msra.mxu0 %v112
  %975 = vmatpush.bf16.msra.mxu0 %v111
  %976 = vmatmul.bf16.gmra.mxu0 %v966
  %v977 = vpop.f32.mrf.mxu0
  %v978 = vadd.f32 0.0, %v977
  %v979 = vpop.f32.mrf.mxu0
  %980 = vdwg.mxu0
  %981 = vmatpush.bf16.msra.mxu0 0
  %982 = vmatpush.bf16.msra.mxu0 0
  %983 = vmatpush.bf16.msra.mxu0 0
  %984 = vmatpush.bf16.msra.mxu0 0
  %985 = vmatpush.bf16.msra.mxu0 0
  %986 = vmatpush.bf16.msra.mxu0 0
  %987 = vmatpush.bf16.msra.mxu0 %v141
  %988 = vmatpush.bf16.msra.mxu0 %v140
  %989 = vmatmul.bf16.gmra.mxu0 %v966
  %v990 = vpop.f32.mrf.mxu0
  %v991 = vadd.f32 0.0, %v990
  %v992 = vpop.f32.mrf.mxu0
  %993 = vdwg.mxu0
  %s994 = scalar_lea.vmem %s0, 12
  %v995 = vld [vmem:[%s994] sm:$0x1]
  %v996 = vld [vmem:[%s994 + $0x1] sm:$0x1]
  %v997 = vld [vmem:[%s994 + $0x2] sm:$0x1]
  %v998 = vunpack.c.l.bf16 %v995
  %v999 = vadd.f32 %v998, %v978
  %v1000 = vxor.u32 %v999, 2147483648
  %v1001 = vmul.f32 %v1000, 1.442695
  %v1002 = vpow.pop %v1001
  %v1003 = vadd.f32 %v1002, 1.0
  %v1004 = vrcp.pop %v1003
  %v1005 = vmul.f32 %v1003, %v1004
  %v1006 = vsub.f32 1.0, %v1005
  %v1007 = vmul.f32 %v1004, %v1006
  %v1008 = vadd.f32 %v1004, %v1007
  %vm1009 = vweird.f32 %v1003
  %vm1010 = vweird.f32 %v1004
  %vm1011 = vmor %vm1009, %vm1010
  %v1012 = vsel %vm1011, %v1004, %v1008
  %v1013 = vand.u32 2147483647, %v1003
  %vm1014 = vcmp.eq.f32.partialorder %v1013, 8.507059e+37
  %v1015 = vand.u32 %v1003, 2147483648
  %v1016 = vor.u32 1.1754944e-38, %v1015
  %v1017 = vsel %vm1014, %v1016, %v1012
  %v1018 = vmul.f32 1.0, %v1017
  %v1019 = vunpack.c.l.bf16 %v996
  %v1020 = vadd.f32 %v1019, %v991
  %v1021 = vxor.u32 %v1020, 2147483648
  %v1022 = vmul.f32 %v1021, 1.442695
  %v1023 = vpow.pop %v1022
  %v1024 = vadd.f32 %v1023, 1.0
  %v1025 = vrcp.pop %v1024
  %v1026 = vmul.f32 %v1024, %v1025
  %v1027 = vsub.f32 1.0, %v1026
  %v1028 = vmul.f32 %v1025, %v1027
  %v1029 = vadd.f32 %v1025, %v1028
  %vm1030 = vweird.f32 %v1024
  %vm1031 = vweird.f32 %v1025
  %vm1032 = vmor %vm1030, %vm1031
  %v1033 = vsel %vm1032, %v1025, %v1029
  %v1034 = vand.u32 2147483647, %v1024
  %vm1035 = vcmp.eq.f32.partialorder %v1034, 8.507059e+37
  %v1036 = vand.u32 %v1024, 2147483648
  %v1037 = vor.u32 1.1754944e-38, %v1036
  %v1038 = vsel %vm1035, %v1037, %v1033
  %v1039 = vmul.f32 1.0, %v1038
  %v1040 = vunpack.c.l.bf16 %v997
  %1041 = vmatpush.bf16.msra.mxu0 0
  %1042 = vmatpush.bf16.msra.mxu0 0
  %1043 = vmatpush.bf16.msra.mxu0 0
  %1044 = vmatpush.bf16.msra.mxu0 0
  %1045 = vmatpush.bf16.msra.mxu0 0
  %1046 = vmatpush.bf16.msra.mxu0 0
  %1047 = vmatpush.bf16.msra.mxu0 %v215
  %1048 = vmatpush.bf16.msra.mxu0 %v214
  %1049 = vmatmul.bf16.gmra.mxu0 %v966
  %v1050 = vpop.f32.mrf.mxu0
  %v1051 = vadd.f32 %v204, %v1050
  %v1052 = vpop.f32.mrf.mxu0
  %1053 = vdwg.mxu0
  %v1054 = vmul.f32 %v1018, %v1051
  %v1055 = vadd.f32 %v1040, %v1054
  %v1056 = vtanh.pop %v1055
  %v1057 = vsub.f32 %v863, %v1056
  %v1058 = vmul.f32 %v1039, %v1057
  %v1059 = vadd.f32 %v1056, %v1058
  %s1060 = scalar_lea.vmem %s6, 8
  %1061 = vst.msk [vmem:[%s1060] sm:$0x3] %vm237, %v1059
  %v1062 = vpack.c.bf16 %v961, %v961
  %v1064 = vsel %vm115, %v1062, 0
  %1066 = vmatpush.bf16.msra.mxu0 0
  %1067 = vmatpush.bf16.msra.mxu0 0
  %1068 = vmatpush.bf16.msra.mxu0 0
  %1069 = vmatpush.bf16.msra.mxu0 0
  %1070 = vmatpush.bf16.msra.mxu0 0
  %1071 = vmatpush.bf16.msra.mxu0 0
  %1072 = vmatpush.bf16.msra.mxu0 %v249
  %1073 = vmatpush.bf16.msra.mxu0 %v248
  %1074 = vmatmul.bf16.gmra.mxu0 %v1064
  %v1075 = vpop.f32.mrf.mxu0
  %v1076 = vadd.f32 0.0, %v1075
  %v1077 = vpop.f32.mrf.mxu0
  %1078 = vdwg.mxu0
  %1079 = vmatpush.bf16.msra.mxu0 0
  %1080 = vmatpush.bf16.msra.mxu0 0
  %1081 = vmatpush.bf16.msra.mxu0 0
  %1082 = vmatpush.bf16.msra.mxu0 0
  %1083 = vmatpush.bf16.msra.mxu0 0
  %1084 = vmatpush.bf16.msra.mxu0 0
  %1085 = vmatpush.bf16.msra.mxu0 %v277
  %1086 = vmatpush.bf16.msra.mxu0 %v276
  %1087 = vmatmul.bf16.gmra.mxu0 %v1064
  %v1088 = vpop.f32.mrf.mxu0
  %v1089 = vadd.f32 0.0, %v1088
  %v1090 = vpop.f32.mrf.mxu0
  %1091 = vdwg.mxu0
  %s1092 = scalar_lea.vmem %s50, 9
  %v1093 = vld [vmem:[%s1092] sm:$0x1]
  %v1094 = vld [vmem:[%s1092 + $0x1] sm:$0x1]
  %v1095 = vld [vmem:[%s1092 + $0x2] sm:$0x1]
  %v1096 = vunpack.c.l.bf16 %v1093
  %v1097 = vadd.f32 %v1096, %v1076
  %v1098 = vxor.u32 %v1097, 2147483648
  %v1099 = vmul.f32 %v1098, 1.442695
  %v1100 = vpow.pop %v1099
  %v1101 = vadd.f32 %v1100, 1.0
  %v1102 = vrcp.pop %v1101
  %v1103 = vmul.f32 %v1101, %v1102
  %v1104 = vsub.f32 1.0, %v1103
  %v1105 = vmul.f32 %v1102, %v1104
  %v1106 = vadd.f32 %v1102, %v1105
  %vm1107 = vweird.f32 %v1101
  %vm1108 = vweird.f32 %v1102
  %vm1109 = vmor %vm1107, %vm1108
  %v1110 = vsel %vm1109, %v1102, %v1106
  %v1111 = vand.u32 2147483647, %v1101
  %vm1112 = vcmp.eq.f32.partialorder %v1111, 8.507059e+37
  %v1113 = vand.u32 %v1101, 2147483648
  %v1114 = vor.u32 1.1754944e-38, %v1113
  %v1115 = vsel %vm1112, %v1114, %v1110
  %v1116 = vmul.f32 1.0, %v1115
  %v1117 = vunpack.c.l.bf16 %v1094
  %v1118 = vadd.f32 %v1117, %v1089
  %v1119 = vxor.u32 %v1118, 2147483648
  %v1120 = vmul.f32 %v1119, 1.442695
  %v1121 = vpow.pop %v1120
  %v1122 = vadd.f32 %v1121, 1.0
  %v1123 = vrcp.pop %v1122
  %v1124 = vmul.f32 %v1122, %v1123
  %v1125 = vsub.f32 1.0, %v1124
  %v1126 = vmul.f32 %v1123, %v1125
  %v1127 = vadd.f32 %v1123, %v1126
  %vm1128 = vweird.f32 %v1122
  %vm1129 = vweird.f32 %v1123
  %vm1130 = vmor %vm1128, %vm1129
  %v1131 = vsel %vm1130, %v1123, %v1127
  %v1132 = vand.u32 2147483647, %v1122
  %vm1133 = vcmp.eq.f32.partialorder %v1132, 8.507059e+37
  %v1134 = vand.u32 %v1122, 2147483648
  %v1135 = vor.u32 1.1754944e-38, %v1134
  %v1136 = vsel %vm1133, %v1135, %v1131
  %v1137 = vmul.f32 1.0, %v1136
  %v1138 = vunpack.c.l.bf16 %v1095
  %1139 = vmatpush.bf16.msra.mxu0 0
  %1140 = vmatpush.bf16.msra.mxu0 0
  %1141 = vmatpush.bf16.msra.mxu0 0
  %1142 = vmatpush.bf16.msra.mxu0 0
  %1143 = vmatpush.bf16.msra.mxu0 0
  %1144 = vmatpush.bf16.msra.mxu0 0
  %1145 = vmatpush.bf16.msra.mxu0 %v352
  %1146 = vmatpush.bf16.msra.mxu0 %v351
  %1147 = vmatmul.bf16.gmra.mxu0 %v1064
  %v1148 = vpop.f32.mrf.mxu0
  %v1149 = vadd.f32 %v341, %v1148
  %v1150 = vpop.f32.mrf.mxu0
  %1151 = vdwg.mxu0
  %v1152 = vmul.f32 %v1116, %v1149
  %v1153 = vadd.f32 %v1138, %v1152
  %v1154 = vtanh.pop %v1153
  %v1155 = vsub.f32 %v961, %v1154
  %v1156 = vmul.f32 %v1137, %v1155
  %v1157 = vadd.f32 %v1154, %v1156
  %s1158 = scalar_lea.vmem %s58, 6
  %1159 = vst.msk [vmem:[%s1158] sm:$0x3] %vm237, %v1157
  %v1160 = vpack.c.bf16 %v1059, %v1059
  %v1162 = vsel %vm115, %v1160, 0
  %1164 = vmatpush.bf16.msra.mxu0 0
  %1165 = vmatpush.bf16.msra.mxu0 0
  %1166 = vmatpush.bf16.msra.mxu0 0
  %1167 = vmatpush.bf16.msra.mxu0 0
  %1168 = vmatpush.bf16.msra.mxu0 0
  %1169 = vmatpush.bf16.msra.mxu0 0
  %1170 = vmatpush.bf16.msra.mxu0 %v112
  %1171 = vmatpush.bf16.msra.mxu0 %v111
  %1172 = vmatmul.bf16.gmra.mxu0 %v1162
  %v1173 = vpop.f32.mrf.mxu0
  %v1174 = vadd.f32 0.0, %v1173
  %v1175 = vpop.f32.mrf.mxu0
  %1176 = vdwg.mxu0
  %1177 = vmatpush.bf16.msra.mxu0 0
  %1178 = vmatpush.bf16.msra.mxu0 0
  %1179 = vmatpush.bf16.msra.mxu0 0
  %1180 = vmatpush.bf16.msra.mxu0 0
  %1181 = vmatpush.bf16.msra.mxu0 0
  %1182 = vmatpush.bf16.msra.mxu0 0
  %1183 = vmatpush.bf16.msra.mxu0 %v141
  %1184 = vmatpush.bf16.msra.mxu0 %v140
  %1185 = vmatmul.bf16.gmra.mxu0 %v1162
  %v1186 = vpop.f32.mrf.mxu0
  %v1187 = vadd.f32 0.0, %v1186
  %v1188 = vpop.f32.mrf.mxu0
  %1189 = vdwg.mxu0
  %s1190 = scalar_lea.vmem %s0, 15
  %v1191 = vld [vmem:[%s1190] sm:$0x1]
  %v1192 = vld [vmem:[%s1190 + $0x1] sm:$0x1]
  %v1193 = vld [vmem:[%s1190 + $0x2] sm:$0x1]
  %v1194 = vunpack.c.l.bf16 %v1191
  %v1195 = vadd.f32 %v1194, %v1174
  %v1196 = vxor.u32 %v1195, 2147483648
  %v1197 = vmul.f32 %v1196, 1.442695
  %v1198 = vpow.pop %v1197
  %v1199 = vadd.f32 %v1198, 1.0
  %v1200 = vrcp.pop %v1199
  %v1201 = vmul.f32 %v1199, %v1200
  %v1202 = vsub.f32 1.0, %v1201
  %v1203 = vmul.f32 %v1200, %v1202
  %v1204 = vadd.f32 %v1200, %v1203
  %vm1205 = vweird.f32 %v1199
  %vm1206 = vweird.f32 %v1200
  %vm1207 = vmor %vm1205, %vm1206
  %v1208 = vsel %vm1207, %v1200, %v1204
  %v1209 = vand.u32 2147483647, %v1199
  %vm1210 = vcmp.eq.f32.partialorder %v1209, 8.507059e+37
  %v1211 = vand.u32 %v1199, 2147483648
  %v1212 = vor.u32 1.1754944e-38, %v1211
  %v1213 = vsel %vm1210, %v1212, %v1208
  %v1214 = vmul.f32 1.0, %v1213
  %v1215 = vunpack.c.l.bf16 %v1192
  %v1216 = vadd.f32 %v1215, %v1187
  %v1217 = vxor.u32 %v1216, 2147483648
  %v1218 = vmul.f32 %v1217, 1.442695
  %v1219 = vpow.pop %v1218
  %v1220 = vadd.f32 %v1219, 1.0
  %v1221 = vrcp.pop %v1220
  %v1222 = vmul.f32 %v1220, %v1221
  %v1223 = vsub.f32 1.0, %v1222
  %v1224 = vmul.f32 %v1221, %v1223
  %v1225 = vadd.f32 %v1221, %v1224
  %vm1226 = vweird.f32 %v1220
  %vm1227 = vweird.f32 %v1221
  %vm1228 = vmor %vm1226, %vm1227
  %v1229 = vsel %vm1228, %v1221, %v1225
  %v1230 = vand.u32 2147483647, %v1220
  %vm1231 = vcmp.eq.f32.partialorder %v1230, 8.507059e+37
  %v1232 = vand.u32 %v1220, 2147483648
  %v1233 = vor.u32 1.1754944e-38, %v1232
  %v1234 = vsel %vm1231, %v1233, %v1229
  %v1235 = vmul.f32 1.0, %v1234
  %v1236 = vunpack.c.l.bf16 %v1193
  %1237 = vmatpush.bf16.msra.mxu0 0
  %1238 = vmatpush.bf16.msra.mxu0 0
  %1239 = vmatpush.bf16.msra.mxu0 0
  %1240 = vmatpush.bf16.msra.mxu0 0
  %1241 = vmatpush.bf16.msra.mxu0 0
  %1242 = vmatpush.bf16.msra.mxu0 0
  %1243 = vmatpush.bf16.msra.mxu0 %v215
  %1244 = vmatpush.bf16.msra.mxu0 %v214
  %1245 = vmatmul.bf16.gmra.mxu0 %v1162
  %v1246 = vpop.f32.mrf.mxu0
  %v1247 = vadd.f32 %v204, %v1246
  %v1248 = vpop.f32.mrf.mxu0
  %1249 = vdwg.mxu0
  %v1250 = vmul.f32 %v1214, %v1247
  %v1251 = vadd.f32 %v1236, %v1250
  %v1252 = vtanh.pop %v1251
  %v1253 = vsub.f32 %v1059, %v1252
  %v1254 = vmul.f32 %v1235, %v1253
  %v1255 = vadd.f32 %v1252, %v1254
  %s1256 = scalar_lea.vmem %s6, 10
  %1257 = vst.msk [vmem:[%s1256] sm:$0x3] %vm237, %v1255
  %v1258 = vpack.c.bf16 %v1157, %v1157
  %v1260 = vsel %vm115, %v1258, 0
  %1262 = vmatpush.bf16.msra.mxu0 0
  %1263 = vmatpush.bf16.msra.mxu0 0
  %1264 = vmatpush.bf16.msra.mxu0 0
  %1265 = vmatpush.bf16.msra.mxu0 0
  %1266 = vmatpush.bf16.msra.mxu0 0
  %1267 = vmatpush.bf16.msra.mxu0 0
  %1268 = vmatpush.bf16.msra.mxu0 %v249
  %1269 = vmatpush.bf16.msra.mxu0 %v248
  %1270 = vmatmul.bf16.gmra.mxu0 %v1260
  %v1271 = vpop.f32.mrf.mxu0
  %v1272 = vadd.f32 0.0, %v1271
  %v1273 = vpop.f32.mrf.mxu0
  %1274 = vdwg.mxu0
  %1275 = vmatpush.bf16.msra.mxu0 0
  %1276 = vmatpush.bf16.msra.mxu0 0
  %1277 = vmatpush.bf16.msra.mxu0 0
  %1278 = vmatpush.bf16.msra.mxu0 0
  %1279 = vmatpush.bf16.msra.mxu0 0
  %1280 = vmatpush.bf16.msra.mxu0 0
  %1281 = vmatpush.bf16.msra.mxu0 %v277
  %1282 = vmatpush.bf16.msra.mxu0 %v276
  %1283 = vmatmul.bf16.gmra.mxu0 %v1260
  %v1284 = vpop.f32.mrf.mxu0
  %v1285 = vadd.f32 0.0, %v1284
  %v1286 = vpop.f32.mrf.mxu0
  %1287 = vdwg.mxu0
  %s1288 = scalar_lea.vmem %s50, 6
  %v1289 = vld [vmem:[%s1288] sm:$0x1]
  %v1290 = vld [vmem:[%s1288 + $0x1] sm:$0x1]
  %v1291 = vld [vmem:[%s1288 + $0x2] sm:$0x1]
  %v1292 = vunpack.c.l.bf16 %v1289
  %v1293 = vadd.f32 %v1292, %v1272
  %v1294 = vxor.u32 %v1293, 2147483648
  %v1295 = vmul.f32 %v1294, 1.442695
  %v1296 = vpow.pop %v1295
  %v1297 = vadd.f32 %v1296, 1.0
  %v1298 = vrcp.pop %v1297
  %v1299 = vmul.f32 %v1297, %v1298
  %v1300 = vsub.f32 1.0, %v1299
  %v1301 = vmul.f32 %v1298, %v1300
  %v1302 = vadd.f32 %v1298, %v1301
  %vm1303 = vweird.f32 %v1297
  %vm1304 = vweird.f32 %v1298
  %vm1305 = vmor %vm1303, %vm1304
  %v1306 = vsel %vm1305, %v1298, %v1302
  %v1307 = vand.u32 2147483647, %v1297
  %vm1308 = vcmp.eq.f32.partialorder %v1307, 8.507059e+37
  %v1309 = vand.u32 %v1297, 2147483648
  %v1310 = vor.u32 1.1754944e-38, %v1309
  %v1311 = vsel %vm1308, %v1310, %v1306
  %v1312 = vmul.f32 1.0, %v1311
  %v1313 = vunpack.c.l.bf16 %v1290
  %v1314 = vadd.f32 %v1313, %v1285
  %v1315 = vxor.u32 %v1314, 2147483648
  %v1316 = vmul.f32 %v1315, 1.442695
  %v1317 = vpow.pop %v1316
  %v1318 = vadd.f32 %v1317, 1.0
  %v1319 = vrcp.pop %v1318
  %v1320 = vmul.f32 %v1318, %v1319
  %v1321 = vsub.f32 1.0, %v1320
  %v1322 = vmul.f32 %v1319, %v1321
  %v1323 = vadd.f32 %v1319, %v1322
  %vm1324 = vweird.f32 %v1318
  %vm1325 = vweird.f32 %v1319
  %vm1326 = vmor %vm1324, %vm1325
  %v1327 = vsel %vm1326, %v1319, %v1323
  %v1328 = vand.u32 2147483647, %v1318
  %vm1329 = vcmp.eq.f32.partialorder %v1328, 8.507059e+37
  %v1330 = vand.u32 %v1318, 2147483648
  %v1331 = vor.u32 1.1754944e-38, %v1330
  %v1332 = vsel %vm1329, %v1331, %v1327
  %v1333 = vmul.f32 1.0, %v1332
  %v1334 = vunpack.c.l.bf16 %v1291
  %1335 = vmatpush.bf16.msra.mxu0 0
  %1336 = vmatpush.bf16.msra.mxu0 0
  %1337 = vmatpush.bf16.msra.mxu0 0
  %1338 = vmatpush.bf16.msra.mxu0 0
  %1339 = vmatpush.bf16.msra.mxu0 0
  %1340 = vmatpush.bf16.msra.mxu0 0
  %1341 = vmatpush.bf16.msra.mxu0 %v352
  %1342 = vmatpush.bf16.msra.mxu0 %v351
  %1343 = vmatmul.bf16.gmra.mxu0 %v1260
  %v1344 = vpop.f32.mrf.mxu0
  %v1345 = vadd.f32 %v341, %v1344
  %v1346 = vpop.f32.mrf.mxu0
  %1347 = vdwg.mxu0
  %v1348 = vmul.f32 %v1312, %v1345
  %v1349 = vadd.f32 %v1334, %v1348
  %v1350 = vtanh.pop %v1349
  %v1351 = vsub.f32 %v1157, %v1350
  %v1352 = vmul.f32 %v1333, %v1351
  %v1353 = vadd.f32 %v1350, %v1352
  %s1354 = scalar_lea.vmem %s58, 4
  %1355 = vst.msk [vmem:[%s1354] sm:$0x3] %vm237, %v1353
  %v1356 = vpack.c.bf16 %v1255, %v1255
  %v1358 = vsel %vm115, %v1356, 0
  %1360 = vmatpush.bf16.msra.mxu0 0
  %1361 = vmatpush.bf16.msra.mxu0 0
  %1362 = vmatpush.bf16.msra.mxu0 0
  %1363 = vmatpush.bf16.msra.mxu0 0
  %1364 = vmatpush.bf16.msra.mxu0 0
  %1365 = vmatpush.bf16.msra.mxu0 0
  %1366 = vmatpush.bf16.msra.mxu0 %v112
  %1367 = vmatpush.bf16.msra.mxu0 %v111
  %1368 = vmatmul.bf16.gmra.mxu0 %v1358
  %v1369 = vpop.f32.mrf.mxu0
  %v1370 = vadd.f32 0.0, %v1369
  %v1371 = vpop.f32.mrf.mxu0
  %1372 = vdwg.mxu0
  %1373 = vmatpush.bf16.msra.mxu0 0
  %1374 = vmatpush.bf16.msra.mxu0 0
  %1375 = vmatpush.bf16.msra.mxu0 0
  %1376 = vmatpush.bf16.msra.mxu0 0
  %1377 = vmatpush.bf16.msra.mxu0 0
  %1378 = vmatpush.bf16.msra.mxu0 0
  %1379 = vmatpush.bf16.msra.mxu0 %v141
  %1380 = vmatpush.bf16.msra.mxu0 %v140
  %1381 = vmatmul.bf16.gmra.mxu0 %v1358
  %v1382 = vpop.f32.mrf.mxu0
  %v1383 = vadd.f32 0.0, %v1382
  %v1384 = vpop.f32.mrf.mxu0
  %1385 = vdwg.mxu0
  %s1386 = scalar_lea.vmem %s0, 18
  %v1387 = vld [vmem:[%s1386] sm:$0x1]
  %v1388 = vld [vmem:[%s1386 + $0x1] sm:$0x1]
  %v1389 = vld [vmem:[%s1386 + $0x2] sm:$0x1]
  %v1390 = vunpack.c.l.bf16 %v1387
  %v1391 = vadd.f32 %v1390, %v1370
  %v1392 = vxor.u32 %v1391, 2147483648
  %v1393 = vmul.f32 %v1392, 1.442695
  %v1394 = vpow.pop %v1393
  %v1395 = vadd.f32 %v1394, 1.0
  %v1396 = vrcp.pop %v1395
  %v1397 = vmul.f32 %v1395, %v1396
  %v1398 = vsub.f32 1.0, %v1397
  %v1399 = vmul.f32 %v1396, %v1398
  %v1400 = vadd.f32 %v1396, %v1399
  %vm1401 = vweird.f32 %v1395
  %vm1402 = vweird.f32 %v1396
  %vm1403 = vmor %vm1401, %vm1402
  %v1404 = vsel %vm1403, %v1396, %v1400
  %v1405 = vand.u32 2147483647, %v1395
  %vm1406 = vcmp.eq.f32.partialorder %v1405, 8.507059e+37
  %v1407 = vand.u32 %v1395, 2147483648
  %v1408 = vor.u32 1.1754944e-38, %v1407
  %v1409 = vsel %vm1406, %v1408, %v1404
  %v1410 = vmul.f32 1.0, %v1409
  %v1411 = vunpack.c.l.bf16 %v1388
  %v1412 = vadd.f32 %v1411, %v1383
  %v1413 = vxor.u32 %v1412, 2147483648
  %v1414 = vmul.f32 %v1413, 1.442695
  %v1415 = vpow.pop %v1414
  %v1416 = vadd.f32 %v1415, 1.0
  %v1417 = vrcp.pop %v1416
  %v1418 = vmul.f32 %v1416, %v1417
  %v1419 = vsub.f32 1.0, %v1418
  %v1420 = vmul.f32 %v1417, %v1419
  %v1421 = vadd.f32 %v1417, %v1420
  %vm1422 = vweird.f32 %v1416
  %vm1423 = vweird.f32 %v1417
  %vm1424 = vmor %vm1422, %vm1423
  %v1425 = vsel %vm1424, %v1417, %v1421
  %v1426 = vand.u32 2147483647, %v1416
  %vm1427 = vcmp.eq.f32.partialorder %v1426, 8.507059e+37
  %v1428 = vand.u32 %v1416, 2147483648
  %v1429 = vor.u32 1.1754944e-38, %v1428
  %v1430 = vsel %vm1427, %v1429, %v1425
  %v1431 = vmul.f32 1.0, %v1430
  %v1432 = vunpack.c.l.bf16 %v1389
  %1433 = vmatpush.bf16.msra.mxu0 0
  %1434 = vmatpush.bf16.msra.mxu0 0
  %1435 = vmatpush.bf16.msra.mxu0 0
  %1436 = vmatpush.bf16.msra.mxu0 0
  %1437 = vmatpush.bf16.msra.mxu0 0
  %1438 = vmatpush.bf16.msra.mxu0 0
  %1439 = vmatpush.bf16.msra.mxu0 %v215
  %1440 = vmatpush.bf16.msra.mxu0 %v214
  %1441 = vmatmul.bf16.gmra.mxu0 %v1358
  %v1442 = vpop.f32.mrf.mxu0
  %v1443 = vadd.f32 %v204, %v1442
  %v1444 = vpop.f32.mrf.mxu0
  %1445 = vdwg.mxu0
  %v1446 = vmul.f32 %v1410, %v1443
  %v1447 = vadd.f32 %v1432, %v1446
  %v1448 = vtanh.pop %v1447
  %v1449 = vsub.f32 %v1255, %v1448
  %v1450 = vmul.f32 %v1431, %v1449
  %v1451 = vadd.f32 %v1448, %v1450
  %s1452 = scalar_lea.vmem %s6, 12
  %1453 = vst.msk [vmem:[%s1452] sm:$0x3] %vm237, %v1451
  %v1454 = vpack.c.bf16 %v1353, %v1353
  %v1456 = vsel %vm115, %v1454, 0
  %1458 = vmatpush.bf16.msra.mxu0 0
  %1459 = vmatpush.bf16.msra.mxu0 0
  %1460 = vmatpush.bf16.msra.mxu0 0
  %1461 = vmatpush.bf16.msra.mxu0 0
  %1462 = vmatpush.bf16.msra.mxu0 0
  %1463 = vmatpush.bf16.msra.mxu0 0
  %1464 = vmatpush.bf16.msra.mxu0 %v249
  %1465 = vmatpush.bf16.msra.mxu0 %v248
  %1466 = vmatmul.bf16.gmra.mxu0 %v1456
  %v1467 = vpop.f32.mrf.mxu0
  %v1468 = vadd.f32 0.0, %v1467
  %v1469 = vpop.f32.mrf.mxu0
  %1470 = vdwg.mxu0
  %1471 = vmatpush.bf16.msra.mxu0 0
  %1472 = vmatpush.bf16.msra.mxu0 0
  %1473 = vmatpush.bf16.msra.mxu0 0
  %1474 = vmatpush.bf16.msra.mxu0 0
  %1475 = vmatpush.bf16.msra.mxu0 0
  %1476 = vmatpush.bf16.msra.mxu0 0
  %1477 = vmatpush.bf16.msra.mxu0 %v277
  %1478 = vmatpush.bf16.msra.mxu0 %v276
  %1479 = vmatmul.bf16.gmra.mxu0 %v1456
  %v1480 = vpop.f32.mrf.mxu0
  %v1481 = vadd.f32 0.0, %v1480
  %v1482 = vpop.f32.mrf.mxu0
  %1483 = vdwg.mxu0
  %s1484 = scalar_lea.vmem %s50, 3
  %v1485 = vld [vmem:[%s1484] sm:$0x1]
  %v1486 = vld [vmem:[%s1484 + $0x1] sm:$0x1]
  %v1487 = vld [vmem:[%s1484 + $0x2] sm:$0x1]
  %v1488 = vunpack.c.l.bf16 %v1485
  %v1489 = vadd.f32 %v1488, %v1468
  %v1490 = vxor.u32 %v1489, 2147483648
  %v1491 = vmul.f32 %v1490, 1.442695
  %v1492 = vpow.pop %v1491
  %v1493 = vadd.f32 %v1492, 1.0
  %v1494 = vrcp.pop %v1493
  %v1495 = vmul.f32 %v1493, %v1494
  %v1496 = vsub.f32 1.0, %v1495
  %v1497 = vmul.f32 %v1494, %v1496
  %v1498 = vadd.f32 %v1494, %v1497
  %vm1499 = vweird.f32 %v1493
  %vm1500 = vweird.f32 %v1494
  %vm1501 = vmor %vm1499, %vm1500
  %v1502 = vsel %vm1501, %v1494, %v1498
  %v1503 = vand.u32 2147483647, %v1493
  %vm1504 = vcmp.eq.f32.partialorder %v1503, 8.507059e+37
  %v1505 = vand.u32 %v1493, 2147483648
  %v1506 = vor.u32 1.1754944e-38, %v1505
  %v1507 = vsel %vm1504, %v1506, %v1502
  %v1508 = vmul.f32 1.0, %v1507
  %v1509 = vunpack.c.l.bf16 %v1486
  %v1510 = vadd.f32 %v1509, %v1481
  %v1511 = vxor.u32 %v1510, 2147483648
  %v1512 = vmul.f32 %v1511, 1.442695
  %v1513 = vpow.pop %v1512
  %v1514 = vadd.f32 %v1513, 1.0
  %v1515 = vrcp.pop %v1514
  %v1516 = vmul.f32 %v1514, %v1515
  %v1517 = vsub.f32 1.0, %v1516
  %v1518 = vmul.f32 %v1515, %v1517
  %v1519 = vadd.f32 %v1515, %v1518
  %vm1520 = vweird.f32 %v1514
  %vm1521 = vweird.f32 %v1515
  %vm1522 = vmor %vm1520, %vm1521
  %v1523 = vsel %vm1522, %v1515, %v1519
  %v1524 = vand.u32 2147483647, %v1514
  %vm1525 = vcmp.eq.f32.partialorder %v1524, 8.507059e+37
  %v1526 = vand.u32 %v1514, 2147483648
  %v1527 = vor.u32 1.1754944e-38, %v1526
  %v1528 = vsel %vm1525, %v1527, %v1523
  %v1529 = vmul.f32 1.0, %v1528
  %v1530 = vunpack.c.l.bf16 %v1487
  %1531 = vmatpush.bf16.msra.mxu0 0
  %1532 = vmatpush.bf16.msra.mxu0 0
  %1533 = vmatpush.bf16.msra.mxu0 0
  %1534 = vmatpush.bf16.msra.mxu0 0
  %1535 = vmatpush.bf16.msra.mxu0 0
  %1536 = vmatpush.bf16.msra.mxu0 0
  %1537 = vmatpush.bf16.msra.mxu0 %v352
  %1538 = vmatpush.bf16.msra.mxu0 %v351
  %1539 = vmatmul.bf16.gmra.mxu0 %v1456
  %v1540 = vpop.f32.mrf.mxu0
  %v1541 = vadd.f32 %v341, %v1540
  %v1542 = vpop.f32.mrf.mxu0
  %1543 = vdwg.mxu0
  %v1544 = vmul.f32 %v1508, %v1541
  %v1545 = vadd.f32 %v1530, %v1544
  %v1546 = vtanh.pop %v1545
  %v1547 = vsub.f32 %v1353, %v1546
  %v1548 = vmul.f32 %v1529, %v1547
  %v1549 = vadd.f32 %v1546, %v1548
  %s1550 = scalar_lea.vmem %s58, 2
  %1551 = vst.msk [vmem:[%s1550] sm:$0x3] %vm237, %v1549
  %v1552 = vpack.c.bf16 %v1451, %v1451
  %v1554 = vsel %vm115, %v1552, 0
  %1556 = vmatpush.bf16.msra.mxu0 0
  %1557 = vmatpush.bf16.msra.mxu0 0
  %1558 = vmatpush.bf16.msra.mxu0 0
  %1559 = vmatpush.bf16.msra.mxu0 0
  %1560 = vmatpush.bf16.msra.mxu0 0
  %1561 = vmatpush.bf16.msra.mxu0 0
  %1562 = vmatpush.bf16.msra.mxu0 %v112
  %1563 = vmatpush.bf16.msra.mxu0 %v111
  %1564 = vmatmul.bf16.gmra.mxu0 %v1554
  %v1565 = vpop.f32.mrf.mxu0
  %v1566 = vadd.f32 0.0, %v1565
  %v1567 = vpop.f32.mrf.mxu0
  %1568 = vdwg.mxu0
  %1569 = vmatpush.bf16.msra.mxu0 0
  %1570 = vmatpush.bf16.msra.mxu0 0
  %1571 = vmatpush.bf16.msra.mxu0 0
  %1572 = vmatpush.bf16.msra.mxu0 0
  %1573 = vmatpush.bf16.msra.mxu0 0
  %1574 = vmatpush.bf16.msra.mxu0 0
  %1575 = vmatpush.bf16.msra.mxu0 %v141
  %1576 = vmatpush.bf16.msra.mxu0 %v140
  %1577 = vmatmul.bf16.gmra.mxu0 %v1554
  %v1578 = vpop.f32.mrf.mxu0
  %v1579 = vadd.f32 0.0, %v1578
  %v1580 = vpop.f32.mrf.mxu0
  %1581 = vdwg.mxu0
  %s1582 = scalar_lea.vmem %s0, 21
  %v1583 = vld [vmem:[%s1582] sm:$0x1]
  %v1584 = vld [vmem:[%s1582 + $0x1] sm:$0x1]
  %v1585 = vld [vmem:[%s1582 + $0x2] sm:$0x1]
  %v1586 = vunpack.c.l.bf16 %v1583
  %v1587 = vadd.f32 %v1586, %v1566
  %v1588 = vxor.u32 %v1587, 2147483648
  %v1589 = vmul.f32 %v1588, 1.442695
  %v1590 = vpow.pop %v1589
  %v1591 = vadd.f32 %v1590, 1.0
  %v1592 = vrcp.pop %v1591
  %v1593 = vmul.f32 %v1591, %v1592
  %v1594 = vsub.f32 1.0, %v1593
  %v1595 = vmul.f32 %v1592, %v1594
  %v1596 = vadd.f32 %v1592, %v1595
  %vm1597 = vweird.f32 %v1591
  %vm1598 = vweird.f32 %v1592
  %vm1599 = vmor %vm1597, %vm1598
  %v1600 = vsel %vm1599, %v1592, %v1596
  %v1601 = vand.u32 2147483647, %v1591
  %vm1602 = vcmp.eq.f32.partialorder %v1601, 8.507059e+37
  %v1603 = vand.u32 %v1591, 2147483648
  %v1604 = vor.u32 1.1754944e-38, %v1603
  %v1605 = vsel %vm1602, %v1604, %v1600
  %v1606 = vmul.f32 1.0, %v1605
  %v1607 = vunpack.c.l.bf16 %v1584
  %v1608 = vadd.f32 %v1607, %v1579
  %v1609 = vxor.u32 %v1608, 2147483648
  %v1610 = vmul.f32 %v1609, 1.442695
  %v1611 = vpow.pop %v1610
  %v1612 = vadd.f32 %v1611, 1.0
  %v1613 = vrcp.pop %v1612
  %v1614 = vmul.f32 %v1612, %v1613
  %v1615 = vsub.f32 1.0, %v1614
  %v1616 = vmul.f32 %v1613, %v1615
  %v1617 = vadd.f32 %v1613, %v1616
  %vm1618 = vweird.f32 %v1612
  %vm1619 = vweird.f32 %v1613
  %vm1620 = vmor %vm1618, %vm1619
  %v1621 = vsel %vm1620, %v1613, %v1617
  %v1622 = vand.u32 2147483647, %v1612
  %vm1623 = vcmp.eq.f32.partialorder %v1622, 8.507059e+37
  %v1624 = vand.u32 %v1612, 2147483648
  %v1625 = vor.u32 1.1754944e-38, %v1624
  %v1626 = vsel %vm1623, %v1625, %v1621
  %v1627 = vmul.f32 1.0, %v1626
  %v1628 = vunpack.c.l.bf16 %v1585
  %1629 = vmatpush.bf16.msra.mxu0 0
  %1630 = vmatpush.bf16.msra.mxu0 0
  %1631 = vmatpush.bf16.msra.mxu0 0
  %1632 = vmatpush.bf16.msra.mxu0 0
  %1633 = vmatpush.bf16.msra.mxu0 0
  %1634 = vmatpush.bf16.msra.mxu0 0
  %1635 = vmatpush.bf16.msra.mxu0 %v215
  %1636 = vmatpush.bf16.msra.mxu0 %v214
  %1637 = vmatmul.bf16.gmra.mxu0 %v1554
  %v1638 = vpop.f32.mrf.mxu0
  %v1639 = vadd.f32 %v204, %v1638
  %v1640 = vpop.f32.mrf.mxu0
  %1641 = vdwg.mxu0
  %v1642 = vmul.f32 %v1606, %v1639
  %v1643 = vadd.f32 %v1628, %v1642
  %v1644 = vtanh.pop %v1643
  %v1645 = vsub.f32 %v1451, %v1644
  %v1646 = vmul.f32 %v1627, %v1645
  %v1647 = vadd.f32 %v1644, %v1646
  %s1648 = scalar_lea.vmem %s6, 14
  %1649 = vst.msk [vmem:[%s1648] sm:$0x3] %vm237, %v1647
  %v1650 = vpack.c.bf16 %v1549, %v1549
  %v1652 = vsel %vm115, %v1650, 0
  %1654 = vmatpush.bf16.msra.mxu0 0
  %1655 = vmatpush.bf16.msra.mxu0 0
  %1656 = vmatpush.bf16.msra.mxu0 0
  %1657 = vmatpush.bf16.msra.mxu0 0
  %1658 = vmatpush.bf16.msra.mxu0 0
  %1659 = vmatpush.bf16.msra.mxu0 0
  %1660 = vmatpush.bf16.msra.mxu0 %v249
  %1661 = vmatpush.bf16.msra.mxu0 %v248
  %1662 = vmatmul.bf16.gmra.mxu0 %v1652
  %v1663 = vpop.f32.mrf.mxu0
  %v1664 = vadd.f32 0.0, %v1663
  %v1665 = vpop.f32.mrf.mxu0
  %1666 = vdwg.mxu0
  %1667 = vmatpush.bf16.msra.mxu0 0
  %1668 = vmatpush.bf16.msra.mxu0 0
  %1669 = vmatpush.bf16.msra.mxu0 0
  %1670 = vmatpush.bf16.msra.mxu0 0
  %1671 = vmatpush.bf16.msra.mxu0 0
  %1672 = vmatpush.bf16.msra.mxu0 0
  %1673 = vmatpush.bf16.msra.mxu0 %v277
  %1674 = vmatpush.bf16.msra.mxu0 %v276
  %1675 = vmatmul.bf16.gmra.mxu0 %v1652
  %v1676 = vpop.f32.mrf.mxu0
  %v1677 = vadd.f32 0.0, %v1676
  %v1678 = vpop.f32.mrf.mxu0
  %1679 = vdwg.mxu0
  %v1680 = vld [vmem:[%s50] sm:$0x1]
  %v1681 = vld [vmem:[%s50 + $0x1] sm:$0x1]
  %v1682 = vld [vmem:[%s50 + $0x2] sm:$0x1]
  %v1683 = vunpack.c.l.bf16 %v1680
  %v1684 = vadd.f32 %v1683, %v1664
  %v1685 = vxor.u32 %v1684, 2147483648
  %v1686 = vmul.f32 %v1685, 1.442695
  %v1687 = vpow.pop %v1686
  %v1688 = vadd.f32 %v1687, 1.0
  %v1689 = vrcp.pop %v1688
  %v1690 = vmul.f32 %v1688, %v1689
  %v1691 = vsub.f32 1.0, %v1690
  %v1692 = vmul.f32 %v1689, %v1691
  %v1693 = vadd.f32 %v1689, %v1692
  %vm1694 = vweird.f32 %v1688
  %vm1695 = vweird.f32 %v1689
  %vm1696 = vmor %vm1694, %vm1695
  %v1697 = vsel %vm1696, %v1689, %v1693
  %v1698 = vand.u32 2147483647, %v1688
  %vm1699 = vcmp.eq.f32.partialorder %v1698, 8.507059e+37
  %v1700 = vand.u32 %v1688, 2147483648
  %v1701 = vor.u32 1.1754944e-38, %v1700
  %v1702 = vsel %vm1699, %v1701, %v1697
  %v1703 = vmul.f32 1.0, %v1702
  %v1704 = vunpack.c.l.bf16 %v1681
  %v1705 = vadd.f32 %v1704, %v1677
  %v1706 = vxor.u32 %v1705, 2147483648
  %v1707 = vmul.f32 %v1706, 1.442695
  %v1708 = vpow.pop %v1707
  %v1709 = vadd.f32 %v1708, 1.0
  %v1710 = vrcp.pop %v1709
  %v1711 = vmul.f32 %v1709, %v1710
  %v1712 = vsub.f32 1.0, %v1711
  %v1713 = vmul.f32 %v1710, %v1712
  %v1714 = vadd.f32 %v1710, %v1713
  %vm1715 = vweird.f32 %v1709
  %vm1716 = vweird.f32 %v1710
  %vm1717 = vmor %vm1715, %vm1716
  %v1718 = vsel %vm1717, %v1710, %v1714
  %v1719 = vand.u32 2147483647, %v1709
  %vm1720 = vcmp.eq.f32.partialorder %v1719, 8.507059e+37
  %v1721 = vand.u32 %v1709, 2147483648
  %v1722 = vor.u32 1.1754944e-38, %v1721
  %v1723 = vsel %vm1720, %v1722, %v1718
  %v1724 = vmul.f32 1.0, %v1723
  %v1725 = vunpack.c.l.bf16 %v1682
  %1726 = vmatpush.bf16.msra.mxu0 0
  %1727 = vmatpush.bf16.msra.mxu0 0
  %1728 = vmatpush.bf16.msra.mxu0 0
  %1729 = vmatpush.bf16.msra.mxu0 0
  %1730 = vmatpush.bf16.msra.mxu0 0
  %1731 = vmatpush.bf16.msra.mxu0 0
  %1732 = vmatpush.bf16.msra.mxu0 %v352
  %1733 = vmatpush.bf16.msra.mxu0 %v351
  %1734 = vmatmul.bf16.gmra.mxu0 %v1652
  %v1735 = vpop.f32.mrf.mxu0
  %v1736 = vadd.f32 %v341, %v1735
  %v1737 = vpop.f32.mrf.mxu0
  %1738 = vdwg.mxu0
  %v1739 = vmul.f32 %v1703, %v1736
  %v1740 = vadd.f32 %v1725, %v1739
  %v1741 = vtanh.pop %v1740
  %v1742 = vsub.f32 %v1549, %v1741
  %v1743 = vmul.f32 %v1724, %v1742
  %v1744 = vadd.f32 %v1741, %v1743
  %1745 = vst.msk [vmem:[%s58] sm:$0x3] %vm237, %v1744
  %1746 = vst.msk [vmem:[#allocation2] sm:$0x3] %vm237, %v1647
  %1747 = vst.msk [vmem:[%s100] sm:$0x3] %vm237, %v1744
  %s1748 = ssub.s32 0, 0
  %s1749 = smul.u32 8, %s1748
  %p1750 = scmp.lt.s32.totalorder %s1749, 7
  %s1751 = scalar_select %p1750, %s1749, 7
  %s1752 = smul.addr %s1751, 2
  %s1753 = scalar_lea.vmem %s7, %s1752
  // Predicated region
  $region30: #{gru_pt_forward.2} parent=0 // pred_check
    _
  $region31: #{gru_pt_forward.2} parent=0 // pred_check_branch
    %1755 = sbr.rel (0) target = $region33
  $region32: #{gru_pt_forward.2} parent=0 // pred_region
    _
  $region33: #{gru_pt_forward.2} parent=0 // pred_fallthru
    _
  // Predicated region
  $region34: #{gru_pt_forward.2} parent=0 // pred_check
    _
  $region35: #{gru_pt_forward.2} parent=0 // pred_check_branch
    %1757 = sbr.rel (0) target = $region37
  $region36: #{gru_pt_forward.2} parent=0 // pred_region
    %s1758 = ssub.s32 0, 0
    %s1759 = smul.u32 8, %s1758
  $region37: #{gru_pt_forward.2} parent=0 // pred_fallthru
    _
  // Predicated region
  $region38: #{gru_pt_forward.2} parent=0 // pred_check
    _
  $region39: #{gru_pt_forward.2} parent=0 // pred_check_branch
    %1761 = sbr.rel (0) target = $region41
  $region40: #{gru_pt_forward.2} parent=0 // pred_region
    _
  $region41: #{gru_pt_forward.2} parent=0 // pred_fallthru
    _
  // Predicated region
  $region42: #{gru_pt_forward.2} parent=0 // pred_check
    _
  $region43: #{gru_pt_forward.2} parent=0 // pred_check_branch
    %1763 = sbr.rel (0) target = $region45
  $region44: #{gru_pt_forward.2} parent=0 // pred_region
    %s1764 = ssub.s32 0, 0
    %s1765 = smul.u32 8, %s1764
    %p1766 = scmp.lt.s32.totalorder %s1765, 7
    %s1767 = scalar_select %p1766, %s1765, 7
    %s1768 = smul.addr %s1767, 2
    %s1769 = scalar_lea.vmem %s7, %s1768
  $region45: #{gru_pt_forward.2} parent=0 // pred_fallthru
    _

</llo_original>
